<compile_context>
chip_gen: v6e
topology: v6e:2x2x1
jax: 0.10.0
libtpu: 0.0.40
codegen_flags: <defaults>
</compile_context>

<pallas_src>
import jax
import jax.numpy as jnp
from jax import lax
from jax.experimental import pallas as pl
from jax.experimental.pallas import tpu as pltpu

EPS = 1e-5
# Budgeted against v7x's 64 MiB/TC; worst-case live VMEM here is well under this.
VMEM_LIMIT = 48 * 1024 * 1024


def _compiler_params(sem):
    return pltpu.CompilerParams(dimension_semantics=sem,
                                vmem_limit_bytes=VMEM_LIMIT)


def _pick_rb(h, w, target=512):
    """Largest divisor rb of h with rb*w <= target (MXU M-dimension per dot)."""
    best = 1
    for rb in range(1, h + 1):
        if h % rb == 0 and rb * w <= target:
            best = rb
    return best


# -----------------------------------------------------------------------------
# Kernel A: 3x3 conv, stride 1, padding 1, fused:
#   optional pre-BN affine (interior only; padding stays zero, as in PyTorch),
#   post-BN affine, optional PReLU, optional residual add.
# Grid = (N, H//RB). Input stays resident across the row-block axis; the padded
# (pre-affine applied) scratch is built once per image at hb == 0. Each grid step
# is a single (RB*W, 9*Cin) @ (9*Cin, Cout) bf16 MXU matmul with f32 accumulation.
# -----------------------------------------------------------------------------
def _make_conv3x3_s1_kernel(H, W, Cin, Cout, RB, use_pre, use_prelu,
                            use_residual):
    NB = H // RB

    def kernel(*args):
        it = iter(args)
        x_ref = next(it)
        w_ref = next(it)
        pre_s_ref = next(it) if use_pre else None
        pre_b_ref = next(it) if use_pre else None
        post_s_ref = next(it)
        post_b_ref = next(it)
        alpha_ref = next(it) if use_prelu else None
        res_ref = next(it) if use_residual else None
        out_ref = next(it)
        xp_ref = next(it)

        hb = pl.program_id(1)

        @pl.when(hb == 0)
        def _fill():
            # Zero only the 1-pixel ring (conv zero-padding of the *pre-BN output*);
            # the interior is fully overwritten below. Re-done per image since the
            # scratch persists across grid steps.
            xp_ref[0:1, :, :] = jnp.zeros((1, W + 2, Cin), xp_ref.dtype)
            xp_ref[H + 1:H + 2, :, :] = jnp.zeros((1, W + 2, Cin), xp_ref.dtype)
            xp_ref[:, 0:1, :] = jnp.zeros((H + 2, 1, Cin), xp_ref.dtype)
            xp_ref[:, W + 1:W + 2, :] = jnp.zeros((H + 2, 1, Cin), xp_ref.dtype)

            if use_pre:
                pre_s = pre_s_ref[...]
                pre_b = pre_b_ref[...]

            def fill(i, carry):
                h0 = i * RB
                blk = x_ref[0, pl.ds(h0, RB)]
                if use_pre:
                    blk = blk * pre_s + pre_b
                xp_ref[pl.ds(h0 + 1, RB), 1:W + 1, :] = blk
                return carry

            if NB <= 4:
                for i in range(NB):          # static unroll for short loops
                    fill(i, 0)
            else:
                lax.fori_loop(0, NB, fill, 0)

        post_s = post_s_ref[...]
        post_b = post_b_ref[...]
        if use_prelu:
            alpha = alpha_ref[...]

        h0 = hb * RB
        parts = []
        for dy in range(3):
            for dx in range(3):
                parts.append(
                    xp_ref[pl.ds(h0 + dy, RB), dx:dx + W, :].astype(jnp.bfloat16))
        lhs = jnp.concatenate(parts, axis=-1).reshape(RB * W, 9 * Cin)
        r = jnp.dot(lhs, w_ref[...], preferred_element_type=jnp.float32)
        r = r * post_s + post_b
        if use_prelu:
            r = jnp.where(r >= 0, r, alpha * r)
        r = r.reshape(RB, W, Cout)
        if use_residual:
            r = r + res_ref[0]
        out_ref[0] = r

    return kernel


def conv3x3_s1(x, w, post_s, post_b, *, pre_s=None, pre_b=None, alpha=None,
               res=None):
    N, H, W, Cin = x.shape
    Cout = w.shape[-1]
    use_pre = pre_s is not None
    use_prelu = alpha is not None
    use_residual = res is not None
    RB = _pick_rb(H, W)
    NB = H // RB
    kernel = _make_conv3x3_s1_kernel(H, W, Cin, Cout, RB, use_pre, use_prelu,
                                     use_residual)
    # (dy, dx, cin) flattened -> im2col order; bf16 operand for the MXU.
    w2 = w.reshape(9 * Cin, Cout).astype(jnp.bfloat16)

    def vec(c):
        return pl.BlockSpec((1, c), lambda n, hb: (0, 0))

    in_specs = [pl.BlockSpec((1, H, W, Cin), lambda n, hb: (n, 0, 0, 0)),
                pl.BlockSpec((9 * Cin, Cout), lambda n, hb: (0, 0))]
    args = [x, w2]
    if use_pre:
        in_specs += [vec(Cin), vec(Cin)]
        args += [pre_s, pre_b]
    in_specs += [vec(Cout), vec(Cout)]
    args += [post_s, post_b]
    if use_prelu:
        in_specs.append(vec(Cout))
        args.append(alpha)
    if use_residual:
        in_specs.append(pl.BlockSpec((1, RB, W, Cout),
                                     lambda n, hb: (n, hb, 0, 0)))
        args.append(res)

    return pl.pallas_call(
        kernel,
        out_shape=jax.ShapeDtypeStruct((N, H, W, Cout), jnp.float32),
        grid_spec=pltpu.PrefetchScalarGridSpec(
            num_scalar_prefetch=0,
            grid=(N, NB),
            in_specs=in_specs,
            out_specs=pl.BlockSpec((1, RB, W, Cout),
                                   lambda n, hb: (n, hb, 0, 0)),
            scratch_shapes=[pltpu.VMEM((H + 2, W + 2, Cin), jnp.float32)],
        ),
        compiler_params=_compiler_params(("parallel", "arbitrary")),
    )(*args)


# -----------------------------------------------------------------------------
# Kernel B: 3x3 conv stride 2 + bn3 affine, fused with the downsample path
# (1x1 conv stride 2 + BN affine) and the residual add.
# The padded input is parity-split (in glue) into four even/odd row/col sub-grids
# so every conv tap is a contiguous slice.  Grid = (N, Hout//RB): one
# (RB*Wout, 9*Cin) bf16 matmul plus one downsample matmul per grid step.
# -----------------------------------------------------------------------------
def _make_block_s2_kernel(Hout, Wout, Cin, Cx, Cout, RB):

    def kernel(ee_ref, eo_ref, oe_ref, oo_ref, w_ref, s3_ref, b3_ref,
               xs_ref, wd_ref, ds_ref, db_ref, out_ref):
        srcs = (ee_ref, eo_ref, oe_ref, oo_ref)
        s3 = s3_ref[...]
        b3 = b3_ref[...]
        ds = ds_ref[...]
        db = db_ref[...]

        hb = pl.program_id(1)
        h0 = hb * RB
        parts = []
        for dy in range(3):
            for dx in range(3):
                src = srcs[(dy % 2) * 2 + (dx % 2)]
                r0 = dy // 2
                c0 = dx // 2
                parts.append(
                    src[0, pl.ds(h0 + r0, RB), c0:c0 + Wout, :].astype(jnp.bfloat16))
        lhs = jnp.concatenate(parts, axis=-1).reshape(RB * Wout, 9 * Cin)
        r = jnp.dot(lhs, w_ref[...],
                    preferred_element_type=jnp.float32) * s3 + b3
        xsb = xs_ref[0].astype(jnp.bfloat16).reshape(RB * Wout, Cx)
        ident = jnp.dot(xsb, wd_ref[...],
                        preferred_element_type=jnp.float32) * ds + db
        out_ref[0] = (r + ident).reshape(RB, Wout, Cout)

    return kernel


def block_s2_fused(y, w, s3, b3, x, wd, ds, db):
    """bn3(conv3x3_s2(y)) + bn_d(conv1x1_s2(x))."""
    N, H, W, Cin = y.shape
    Cout = w.shape[-1]
    Cx = x.shape[-1]
    assert H % 2 == 0 and W % 2 == 0
    Hout, Wout = H // 2, W // 2
    # Parity split of the zero-padded y: every conv tap becomes a contiguous slice.
    # TODO(synk): this pad + parity-split still round-trips HBM in XLA glue; a further
    # step would be to emit the split layout directly from Kernel A's stores.
    yp = jnp.pad(y, ((0, 0), (1, 1), (1, 1), (0, 0)))
    ee = yp[:, 0::2, 0::2, :]
    eo = yp[:, 0::2, 1::2, :]
    oe = yp[:, 1::2, 0::2, :]
    oo = yp[:, 1::2, 1::2, :]
    xs = x[:, 0::2, 0::2, :]
    RB = _pick_rb(Hout, Wout)
    NB = Hout // RB
    Hs, Ws = Hout + 1, Wout + 1
    split_spec = pl.BlockSpec((1, Hs, Ws, Cin), lambda n, hb: (n, 0, 0, 0))

    def vec(c):
        return pl.BlockSpec((1, c), lambda n, hb: (0, 0))

    return pl.pallas_call(
        _make_block_s2_kernel(Hout, Wout, Cin, Cx, Cout, RB),
        out_shape=jax.ShapeDtypeStruct((N, Hout, Wout, Cout), jnp.float32),
        grid_spec=pltpu.PrefetchScalarGridSpec(
            num_scalar_prefetch=0,
            grid=(N, NB),
            in_specs=[split_spec, split_spec, split_spec, split_spec,
                      pl.BlockSpec((9 * Cin, Cout), lambda n, hb: (0, 0)),
                      vec(Cout), vec(Cout),
                      pl.BlockSpec((1, RB, Wout, Cx),
                                   lambda n, hb: (n, hb, 0, 0)),
                      pl.BlockSpec((Cx, Cout), lambda n, hb: (0, 0)),
                      vec(Cout), vec(Cout)],
            out_specs=pl.BlockSpec((1, RB, Wout, Cout),
                                   lambda n, hb: (n, hb, 0, 0)),
        ),
        compiler_params=_compiler_params(("parallel", "arbitrary")),
    )(ee, eo, oe, oo, w.reshape(9 * Cin, Cout).astype(jnp.bfloat16), s3, b3,
      xs, wd.astype(jnp.bfloat16), ds, db)


# -----------------------------------------------------------------------------
# Kernel S: stem conv (Cin=3) as glue im2col + one fused bf16 matmul + bn1 + PReLU.
# -----------------------------------------------------------------------------
def _stem_kernel(p_ref, w_ref, s_ref, b_ref, a_ref, out_ref):
    r = jnp.dot(p_ref[...], w_ref[...], preferred_element_type=jnp.float32)
    r = r * s_ref[...] + b_ref[...]
    out_ref[...] = jnp.where(r >= 0, r, a_ref[...] * r)


def stem_conv(x, w, s, b, alpha, tm=3136):
    N, H, W, Cin = x.shape
    Cout = w.shape[-1]
    K = 9 * Cin                       # 27
    Kp = ((K + 31) // 32) * 32        # pad to 32 for clean alignment
    xp = jnp.pad(x, ((0, 0), (1, 1), (1, 1), (0, 0)))
    patches = jnp.concatenate(
        [xp[:, dy:dy + H, dx:dx + W, :] for dy in range(3) for dx in range(3)],
        axis=-1).reshape(N * H * W, K)
    patches = jnp.pad(patches, ((0, 0), (0, Kp - K))).astype(jnp.bfloat16)
    w2 = jnp.pad(w.reshape(K, Cout), ((0, Kp - K), (0, 0))).astype(jnp.bfloat16)
    M = N * H * W
    if M % tm != 0:
        tm = H * W

    out = pl.pallas_call(
        _stem_kernel,
        out_shape=jax.ShapeDtypeStruct((M, Cout), jnp.float32),
        grid_spec=pltpu.PrefetchScalarGridSpec(
            num_scalar_prefetch=0,
            grid=(M // tm,),
            in_specs=[pl.BlockSpec((tm, Kp), lambda m: (m, 0)),
                      pl.BlockSpec((Kp, Cout), lambda m: (0, 0)),
                      pl.BlockSpec((1, Cout), lambda m: (0, 0)),
                      pl.BlockSpec((1, Cout), lambda m: (0, 0)),
                      pl.BlockSpec((1, Cout), lambda m: (0, 0))],
            out_specs=pl.BlockSpec((tm, Cout), lambda m: (m, 0)),
        ),
        compiler_params=_compiler_params(("parallel",)),
    )(patches, w2, s, b, alpha)
    return out.reshape(N, H, W, Cout)


# -----------------------------------------------------------------------------
# Kernel F: head = bn2 (per-feature pre-affine on the flattened input)
#           + Linear(25088 -> num_features) + BatchNorm1d affine.
# Grid = (feature_split, k_tiles): the feature dim is split across the leading
# "parallel" axis (both v7x TCs stream half the bf16 weight each); K is tiled
# over the inner "arbitrary" axis with a resident output accumulator.
# -----------------------------------------------------------------------------
def _fc_kernel(x_ref, w_ref, pre_s_ref, pre_b_ref, bias_ref, fs_ref, fb_ref,
               out_ref):
    k = pl.program_id(1)

    @pl.when(k == 0)
    def _():
        out_ref[...] = jnp.zeros_like(out_ref)

    xb = (x_ref[...] * pre_s_ref[...] + pre_b_ref[...]).astype(jnp.bfloat16)
    out_ref[...] += jnp.dot(xb, w_ref[...], preferred_element_type=jnp.float32)

    @pl.when(k == pl.num_programs(1) - 1)
    def _():
        out_ref[...] = (out_ref[...] + bias_ref[...]) * fs_ref[...] + fb_ref[...]


def fc_head(x_flat, w, bias, pre_s, pre_b, feat_s, feat_b, tk=3584, fsplit=2):
    N, K = x_flat.shape
    F = w.shape[1]
    assert K % tk == 0 and tk % 128 == 0
    assert F % fsplit == 0 and (F // fsplit) % 128 == 0
    nk = K // tk
    Fb = F // fsplit
    w_bf16 = w.astype(jnp.bfloat16)
    return pl.pallas_call(
        _fc_kernel,
        out_shape=jax.ShapeDtypeStruct((N, F), jnp.float32),
        grid_spec=pltpu.PrefetchScalarGridSpec(
            num_scalar_prefetch=0,
            grid=(fsplit, nk),
            in_specs=[pl.BlockSpec((N, tk), lambda j, k: (0, k)),
                      pl.BlockSpec((tk, Fb), lambda j, k: (k, j)),
                      pl.BlockSpec((1, tk), lambda j, k: (0, k)),
                      pl.BlockSpec((1, tk), lambda j, k: (0, k)),
                      pl.BlockSpec((1, Fb), lambda j, k: (0, j)),
                      pl.BlockSpec((1, Fb), lambda j, k: (0, j)),
                      pl.BlockSpec((1, Fb), lambda j, k: (0, j))],
            out_specs=pl.BlockSpec((N, Fb), lambda j, k: (0, j)),
        ),
        compiler_params=_compiler_params(("parallel", "arbitrary")),
    )(x_flat, w_bf16, pre_s, pre_b, bias, feat_s, feat_b)


# -----------------------------------------------------------------------------
# Parameters (deterministic synthetic init, mirroring the module's __init__).
# -----------------------------------------------------------------------------
def make_bn(c):
    # nn.BatchNorm2d/1d with weight=1, bias=0, running_mean=0, running_var=1.
    return {'gamma': jnp.ones((c,), jnp.float32),
            'beta': jnp.zeros((c,), jnp.float32),
            'mean': jnp.zeros((c,), jnp.float32),
            'var': jnp.ones((c,), jnp.float32)}


def bn_affine(bn):
    s = bn['gamma'] / jnp.sqrt(bn['var'] + EPS)
    b = bn['beta'] - bn['mean'] * s
    return s.reshape(1, -1), b.reshape(1, -1)


def init_params(layers=(1, 1, 1, 1), num_features=512, seed=0):
    keys = iter(jax.random.split(jax.random.PRNGKey(seed), 256))

    def conv_w(kh, kw, cin, cout):
        # nn.init.normal_(weight, 0, 0.1), stored as HWIO.
        return 0.1 * jax.random.normal(next(keys), (kh, kw, cin, cout),
                                       jnp.float32)

    p = {'conv1': conv_w(3, 3, 3, 64),
         'bn1': make_bn(64),
         'prelu': 0.25 * jnp.ones((1, 64), jnp.float32),
         'layers': []}
    inplanes = 64
    for planes, nblocks in zip((64, 128, 256, 512), layers):
        blocks = []
        for bi in range(nblocks):
            stride = 2 if bi == 0 else 1
            blk = {'stride': stride,
                   'bn1': make_bn(inplanes),
                   'conv1': conv_w(3, 3, inplanes, planes),
                   'bn2': make_bn(planes),
                   'prelu': 0.25 * jnp.ones((1, planes), jnp.float32),
                   'conv2': conv_w(3, 3, planes, planes),
                   'bn3': make_bn(planes)}
            if stride != 1 or inplanes != planes:
                blk['down_w'] = 0.1 * jax.random.normal(
                    next(keys), (inplanes, planes), jnp.float32)
                blk['down_bn'] = make_bn(planes)
            blocks.append(blk)
            inplanes = planes
        p['layers'].append(blocks)
    p['bn2'] = make_bn(512)
    # nn.Linear(512*7*7, num_features); deterministic synthetic init.
    p['fc_w'] = 0.02 * jax.random.normal(next(keys), (512 * 49, num_features),
                                         jnp.float32)
    p['fc_b'] = 0.01 * jax.random.normal(next(keys), (num_features,),
                                         jnp.float32)
    p['features'] = make_bn(num_features)
    return p


# -----------------------------------------------------------------------------
# Glue: bilinear resize matching torch interpolate(mode='bilinear', align_corners=False).
# -----------------------------------------------------------------------------
def bilinear_resize_nhwc(x, out_h, out_w):
    N, H, W, C = x.shape

    def coords(out_size, in_size):
        scale = in_size / out_size
        src = (jnp.arange(out_size, dtype=jnp.float32) + 0.5) * scale - 0.5
        src = jnp.maximum(src, 0.0)
        i0 = jnp.minimum(jnp.floor(src).astype(jnp.int32), in_size - 1)
        i1 = jnp.minimum(i0 + 1, in_size - 1)
        w1 = src - i0.astype(jnp.float32)
        return i0, i1, 1.0 - w1, w1

    r0, r1, rw0, rw1 = coords(out_h, H)
    c0, c1, cw0, cw1 = coords(out_w, W)
    rows = (x[:, r0, :, :] * rw0[None, :, None, None]
            + x[:, r1, :, :] * rw1[None, :, None, None])
    out = (rows[:, :, c0, :] * cw0[None, None, :, None]
           + rows[:, :, c1, :] * cw1[None, None, :, None])
    return out


# -----------------------------------------------------------------------------
# IBasicBlock / IResNet forward.
# -----------------------------------------------------------------------------
def block_forward(x, blk):
    s1, b1 = bn_affine(blk['bn1'])
    s2, b2 = bn_affine(blk['bn2'])
    # bn1 -> conv1(3x3, s1) -> bn2 -> PReLU, fused in Kernel A.
    y = conv3x3_s1(x, blk['conv1'], s2, b2, pre_s=s1, pre_b=b1,
                   alpha=blk['prelu'])
    s3, b3 = bn_affine(blk['bn3'])
    if blk['stride'] == 2:
        # conv2(3x3, s2) -> bn3, plus downsample(1x1 s2 conv -> BN) and the add,
        # all fused in Kernel B.
        ds, db = bn_affine(blk['down_bn'])
        return block_s2_fused(y, blk['conv2'], s3, b3, x, blk['down_w'], ds, db)
    # stride-1 block: conv2(3x3, s1) -> bn3 -> + identity(x), fused in Kernel A.
    return conv3x3_s1(y, blk['conv2'], s3, b3, res=x)


def iresnet_forward(params, x_nchw):
    x = jnp.transpose(x_nchw, (0, 2, 3, 1)).astype(jnp.float32)  # NCHW -> NHWC
    x = bilinear_resize_nhwc(x, 112, 112)
    # stem: conv1 -> bn1 -> PReLU, fused in Kernel S.
    s1, b1 = bn_affine(params['bn1'])
    x = stem_conv(x, params['conv1'], s1, b1, params['prelu'])
    for layer in params['layers']:
        for blk in layer:
            x = block_forward(x, blk)
    # bn2 fused into the fc kernel as a per-feature affine; flatten matches
    # torch.flatten on NCHW; Dropout(p=0, eval) is identity.
    s2, b2 = bn_affine(params['bn2'])
    N, H, W, C = x.shape
    x_flat = jnp.transpose(x, (0, 3, 1, 2)).reshape(N, C * H * W)
    pre_s = jnp.repeat(s2.reshape(-1), H * W).reshape(1, -1)
    pre_b = jnp.repeat(b2.reshape(-1), H * W).reshape(1, -1)
    fs, fb = bn_affine(params['features'])
    bias = params['fc_b'].reshape(1, -1)
    return fc_head(x_flat, params['fc_w'], bias, pre_s, pre_b, fs, fb)


if __name__ == "__main__":
    # Small input; the module always resizes the image to 112x112.
    x = jax.random.normal(jax.random.PRNGKey(0), (2, 3, 16, 16), jnp.float32)
    # IResNet(IBasicBlock, layers=[1, 1, 1, 1], num_features=512)
    params = init_params(layers=(1, 1, 1, 1), num_features=512)
    out = iresnet_forward(params, x)
    jax.block_until_ready(out)
    assert out.shape == (2, 512)
    assert bool(jnp.all(jnp.isfinite(out)))
    print("KERNEL_OK")
</pallas_src>

<mosaic_0001>
module attributes {stable_mosaic.version = 11 : i64} {
  func.func @_stem_kernel(%arg0: i32, %arg1: memref<3136x32xbf16, #tpu.memory_space<vmem>>, %arg2: memref<32x64xbf16, #tpu.memory_space<vmem>>, %arg3: memref<1x64xf32, #tpu.memory_space<vmem>>, %arg4: memref<1x64xf32, #tpu.memory_space<vmem>>, %arg5: memref<1x64xf32, #tpu.memory_space<vmem>>, %arg6: memref<3136x64xf32, #tpu.memory_space<vmem>>) attributes {dimension_semantics = [#tpu.dimension_semantics<parallel>], iteration_bounds = array<i64: 8>, scalar_prefetch = 0 : i64, scratch_operands = 0 : i64, tpu.core_type = #tpu.core_type<tc>, window_params = [{transform_indices = @transform_0, window_bounds = array<i64: 3136, 32>}, {pipeline_mode = #tpu.pipeline_mode<synchronous>, transform_indices = @transform_1, window_bounds = array<i64: 32, 64>}, {pipeline_mode = #tpu.pipeline_mode<synchronous>, transform_indices = @transform_2, window_bounds = array<i64: 1, 64>}, {pipeline_mode = #tpu.pipeline_mode<synchronous>, transform_indices = @transform_3, window_bounds = array<i64: 1, 64>}, {pipeline_mode = #tpu.pipeline_mode<synchronous>, transform_indices = @transform_4, window_bounds = array<i64: 1, 64>}, {transform_indices = @transform_5, window_bounds = array<i64: 3136, 64>}]} {
    %c0 = arith.constant 0 : index
    %c0_0 = arith.constant 0 : index
    %0 = vector.load %arg1[%c0, %c0_0] : memref<3136x32xbf16, #tpu.memory_space<vmem>>, vector<3136x32xbf16>
    %c0_1 = arith.constant 0 : index
    %c0_2 = arith.constant 0 : index
    %1 = vector.load %arg2[%c0_1, %c0_2] : memref<32x64xbf16, #tpu.memory_space<vmem>>, vector<32x64xbf16>
    %cst = arith.constant dense<0.000000e+00> : vector<3136x64xf32>
    %2 = tpu.matmul %0, %1, %cst {dimension_numbers = #tpu.dot_dimension_numbers<[1], [0], [0], [1], [0, 0, 1, 1], [], []>} : vector<3136x32xbf16>, vector<32x64xbf16>, vector<3136x64xf32> -> vector<3136x64xf32>
    %c0_3 = arith.constant 0 : index
    %c0_4 = arith.constant 0 : index
    %3 = vector.load %arg3[%c0_3, %c0_4] : memref<1x64xf32, #tpu.memory_space<vmem>>, vector<1x64xf32>
    %4 = vector.broadcast %3 : vector<1x64xf32> to vector<3136x64xf32>
    %5 = arith.mulf %2, %4 : vector<3136x64xf32>
    %c0_5 = arith.constant 0 : index
    %c0_6 = arith.constant 0 : index
    %6 = vector.load %arg4[%c0_5, %c0_6] : memref<1x64xf32, #tpu.memory_space<vmem>>, vector<1x64xf32>
    %7 = vector.broadcast %6 : vector<1x64xf32> to vector<3136x64xf32>
    %8 = arith.addf %5, %7 : vector<3136x64xf32>
    %cst_7 = arith.constant 0.000000e+00 : f32
    %9 = vector.broadcast %cst_7 : f32 to vector<3136x64xf32>
    %10 = arith.cmpf oge, %8, %9 : vector<3136x64xf32>
    %c0_8 = arith.constant 0 : index
    %c0_9 = arith.constant 0 : index
    %11 = vector.load %arg5[%c0_8, %c0_9] : memref<1x64xf32, #tpu.memory_space<vmem>>, vector<1x64xf32>
    %12 = vector.broadcast %11 : vector<1x64xf32> to vector<3136x64xf32>
    %13 = arith.mulf %12, %8 : vector<3136x64xf32>
    %14 = arith.select %10, %8, %13 : vector<3136x64xi1>, vector<3136x64xf32>
    %c0_10 = arith.constant 0 : index
    %c0_11 = arith.constant 0 : index
    %15 = vector.load %arg6[%c0_10, %c0_11] : memref<3136x64xf32, #tpu.memory_space<vmem>>, vector<3136x64xf32>
    tpu.vector_store %arg6[%c0_10, %c0_11], %14 {strides = array<i32>} : memref<3136x64xf32, #tpu.memory_space<vmem>>, vector<3136x64xf32>,
    return
  }
  func.func @transform_0(%arg0: i32) -> (i32, i32) {
    %c0_i32 = arith.constant 0 : i32
    %c0_i32_0 = arith.constant 0 : i32
    return %arg0, %c0_i32 : i32, i32
  }
  func.func @transform_1(%arg0: i32) -> (i32, i32) {
    %c0_i32 = arith.constant 0 : i32
    %c0_i32_0 = arith.constant 0 : i32
    %c0_i32_1 = arith.constant 0 : i32
    return %c0_i32, %c0_i32_0 : i32, i32
  }
  func.func @transform_2(%arg0: i32) -> (i32, i32) {
    %c0_i32 = arith.constant 0 : i32
    %c0_i32_0 = arith.constant 0 : i32
    %c0_i32_1 = arith.constant 0 : i32
    return %c0_i32, %c0_i32_0 : i32, i32
  }
  func.func @transform_3(%arg0: i32) -> (i32, i32) {
    %c0_i32 = arith.constant 0 : i32
    %c0_i32_0 = arith.constant 0 : i32
    %c0_i32_1 = arith.constant 0 : i32
    return %c0_i32, %c0_i32_0 : i32, i32
  }
  func.func @transform_4(%arg0: i32) -> (i32, i32) {
    %c0_i32 = arith.constant 0 : i32
    %c0_i32_0 = arith.constant 0 : i32
    %c0_i32_1 = arith.constant 0 : i32
    return %c0_i32, %c0_i32_0 : i32, i32
  }
  func.func @transform_5(%arg0: i32) -> (i32, i32) {
    %c0_i32 = arith.constant 0 : i32
    %c0_i32_0 = arith.constant 0 : i32
    return %arg0, %c0_i32 : i32, i32
  }
}

</mosaic_0001>

<llo_original>
// kernel: tpu_custom_call.1
$region0: #{tpu_custom_call.1}
  #allocation0 [shape = 'u32[]', space=smem, size = 0x4, offset = 0x4, fixed_abs, tag = 'smem constant byte address 0x4 - core index']
  #allocation1 [shape = 'u32[144,128]{1,0:T(1,128)}', space=vmem, size = 0x12000, scoped, tag = 'internal scratch']
  %s0 = inlined_call_operand.vmem [shape: bf16[25088,32], index: 0, kind: input, shape index: {}]
  %s1 = inlined_call_operand.vmem [shape: bf16[32,64], index: 1, kind: input, shape index: {}]
  %s2 = inlined_call_operand.vmem [shape: f32[1,64], index: 2, kind: input, shape index: {}]
  %s3 = inlined_call_operand.vmem [shape: f32[1,64], index: 3, kind: input, shape index: {}]
  %s4 = inlined_call_operand.vmem [shape: f32[1,64], index: 4, kind: input, shape index: {}]
  %s5 = inlined_call_operand.vmem [shape: f32[25088,64], index: 5, kind: output, shape index: {}]
  %s6 = sld [smem:[#allocation0]]
  $region53: #{tpu_custom_call.1} parent=0
    _
  %s8 = ssub.s32 1, %s6
  %s9 = scalar_select 0, %s8, %s6
  loop: start=0, step=1, limit=10
  $region2: #{tpu_custom_call.1} parent=0 // loop_pre_header
    _
  $region3: #{tpu_custom_call.1} parent=0 // loop_header
    %s11 = sphi 0, %s15
    %p12 = scmp.ge.s32.totalorder %s11, 10
    %s21 = sphi 0, %s23
    %s24 = sphi 0, %s21
    %s25 = sphi 0, %s24
    %s41 = sphi 0, %s25
    %s45 = sphi 0, %s45
    %s47 = sphi 0, %s45
    %s48 = sphi 0, %s47
    %s62 = sphi 0, %s48
    %s66 = sphi 0, %s66
    %s68 = sphi 0, %s66
    %s69 = sphi 0, %s68
    %s83 = sphi 0, %s69
    %s87 = sphi 0, %s87
    %s89 = sphi 0, %s87
    %s90 = sphi 0, %s89
    %s104 = sphi 0, %s90
    %s108 = sphi 0, %s108
    %s110 = sphi 0, %s108
    %s111 = sphi 0, %s110
    %s125 = sphi 0, %s111
    %s131 = sphi 0, %s133
    %s134 = sphi 0, %s131
    %s135 = sphi 0, %s134
    %s151 = sphi 0, %s135
  $region4: #{tpu_custom_call.1} parent=0 // loop_header_branch
    %14 = sbr.rel (%p12) target = $region8
  $region5: #{tpu_custom_call.1} parent=0 // loop_body
    %s16 = ssub.s32 %s11, 1
    %s17 = ssub.s32 %s11, 2
    %s18 = sadd.s32 %s11, 1
    %s19 = ssub.s32 %s11, %s18
    %p20 = scmp.eq.s32.totalorder %s19, 0
    %s22 = sadd.s32 %s21, 1
    %s23 = scalar_select %p20, %s21, %s22
    %p26 = pneg %p20
    %p27 = scmp.eq.s32.totalorder %s11, 7
    %p28 = por %p26, %p27
    %p29 = scmp.ne.s32.totalorder %s21, %s24
    %p30 = scmp.eq.s32.totalorder %s11, 0
    %p31 = por %p29, %p30
    %p32 = scmp.ne.s32.totalorder %s21, %s24
    %p33 = scmp.eq.s32.totalorder %s16, 7
    %p34 = por %p32, %p33
    %p35 = scmp.ne.s32.totalorder %s24, %s25
    %p36 = scmp.eq.s32.totalorder %s16, 0
    %p37 = por %p35, %p36
    %p38 = scmp.ne.s32.totalorder %s24, %s25
    %p39 = scmp.eq.s32.totalorder %s17, 7
    %p40 = por %p38, %p39
    %p42 = scmp.ne.s32.totalorder %s25, %s41
    %p43 = scmp.eq.s32.totalorder %s17, 0
    %p44 = por %p42, %p43
    %s46 = sadd.s32 %s45, 1
    %p49 = scmp.eq.s32.totalorder %s11, 7
    %p50 = scmp.ne.s32.totalorder %s45, %s47
    %p51 = scmp.eq.s32.totalorder %s11, 0
    %p52 = por %p50, %p51
    %p53 = scmp.ne.s32.totalorder %s45, %s47
    %p54 = scmp.eq.s32.totalorder %s16, 7
    %p55 = por %p53, %p54
    %p56 = scmp.ne.s32.totalorder %s47, %s48
    %p57 = scmp.eq.s32.totalorder %s16, 0
    %p58 = por %p56, %p57
    %p59 = scmp.ne.s32.totalorder %s47, %s48
    %p60 = scmp.eq.s32.totalorder %s17, 7
    %p61 = por %p59, %p60
    %p63 = scmp.ne.s32.totalorder %s48, %s62
    %p64 = scmp.eq.s32.totalorder %s17, 0
    %p65 = por %p63, %p64
    %s67 = sadd.s32 %s66, 1
    %p70 = scmp.eq.s32.totalorder %s11, 7
    %p71 = scmp.ne.s32.totalorder %s66, %s68
    %p72 = scmp.eq.s32.totalorder %s11, 0
    %p73 = por %p71, %p72
    %p74 = scmp.ne.s32.totalorder %s66, %s68
    %p75 = scmp.eq.s32.totalorder %s16, 7
    %p76 = por %p74, %p75
    %p77 = scmp.ne.s32.totalorder %s68, %s69
    %p78 = scmp.eq.s32.totalorder %s16, 0
    %p79 = por %p77, %p78
    %p80 = scmp.ne.s32.totalorder %s68, %s69
    %p81 = scmp.eq.s32.totalorder %s17, 7
    %p82 = por %p80, %p81
    %p84 = scmp.ne.s32.totalorder %s69, %s83
    %p85 = scmp.eq.s32.totalorder %s17, 0
    %p86 = por %p84, %p85
    %s88 = sadd.s32 %s87, 1
    %p91 = scmp.eq.s32.totalorder %s11, 7
    %p92 = scmp.ne.s32.totalorder %s87, %s89
    %p93 = scmp.eq.s32.totalorder %s11, 0
    %p94 = por %p92, %p93
    %p95 = scmp.ne.s32.totalorder %s87, %s89
    %p96 = scmp.eq.s32.totalorder %s16, 7
    %p97 = por %p95, %p96
    %p98 = scmp.ne.s32.totalorder %s89, %s90
    %p99 = scmp.eq.s32.totalorder %s16, 0
    %p100 = por %p98, %p99
    %p101 = scmp.ne.s32.totalorder %s89, %s90
    %p102 = scmp.eq.s32.totalorder %s17, 7
    %p103 = por %p101, %p102
    %p105 = scmp.ne.s32.totalorder %s90, %s104
    %p106 = scmp.eq.s32.totalorder %s17, 0
    %p107 = por %p105, %p106
    %s109 = sadd.s32 %s108, 1
    %p112 = scmp.eq.s32.totalorder %s11, 7
    %p113 = scmp.ne.s32.totalorder %s108, %s110
    %p114 = scmp.eq.s32.totalorder %s11, 0
    %p115 = por %p113, %p114
    %p116 = scmp.ne.s32.totalorder %s108, %s110
    %p117 = scmp.eq.s32.totalorder %s16, 7
    %p118 = por %p116, %p117
    %p119 = scmp.ne.s32.totalorder %s110, %s111
    %p120 = scmp.eq.s32.totalorder %s16, 0
    %p121 = por %p119, %p120
    %p122 = scmp.ne.s32.totalorder %s110, %s111
    %p123 = scmp.eq.s32.totalorder %s17, 7
    %p124 = por %p122, %p123
    %p126 = scmp.ne.s32.totalorder %s111, %s125
    %p127 = scmp.eq.s32.totalorder %s17, 0
    %p128 = por %p126, %p127
    %s129 = ssub.s32 %s11, %s18
    %p130 = scmp.eq.s32.totalorder %s129, 0
    %s132 = sadd.s32 %s131, 1
    %s133 = scalar_select %p130, %s131, %s132
    %p136 = pneg %p130
    %p137 = scmp.eq.s32.totalorder %s11, 7
    %p138 = por %p136, %p137
    %p139 = scmp.ne.s32.totalorder %s131, %s134
    %p140 = scmp.eq.s32.totalorder %s11, 0
    %p141 = por %p139, %p140
    %p142 = scmp.ne.s32.totalorder %s131, %s134
    %p143 = scmp.eq.s32.totalorder %s16, 7
    %p144 = por %p142, %p143
    %p145 = scmp.ne.s32.totalorder %s134, %s135
    %p146 = scmp.eq.s32.totalorder %s16, 0
    %p147 = por %p145, %p146
    %p148 = scmp.ne.s32.totalorder %s134, %s135
    %p149 = scmp.eq.s32.totalorder %s17, 7
    %p150 = por %p148, %p149
    %p152 = scmp.ne.s32.totalorder %s135, %s151
    %p153 = scmp.eq.s32.totalorder %s17, 0
    %p154 = por %p152, %p153
    %p155 = scmp.le.s32.totalorder 1, %s11
    %p156 = scmp.lt.s32.totalorder %s11, 9
    %p157 = pnand %p155, %p156
    %p158 = pneg %p157
    // Predicated region
    $region9: #{tpu_custom_call.1} parent=5 // pred_check
      _
    $region10: #{tpu_custom_call.1} parent=5 // pred_check_branch
      %160 = sbr.rel (%p157) target = $region12
    $region11: #{tpu_custom_call.1} parent=5 // pred_region
      %s161 = ssub.s32 %s11, 1
      // Predicated region
      $region13: #{tpu_custom_call.1} parent=11 // pred_check
        %p162 = pneg %p58
      $region14: #{tpu_custom_call.1} parent=11 // pred_check_branch
        %164 = sbr.rel (%p162) target = $region16
      $region15: #{tpu_custom_call.1} parent=11 // pred_region
        _
      $region16: #{tpu_custom_call.1} parent=11 // pred_fallthru
        _
      // Predicated region
      $region17: #{tpu_custom_call.1} parent=11 // pred_check
        %p165 = pneg %p79
      $region18: #{tpu_custom_call.1} parent=11 // pred_check_branch
        %167 = sbr.rel (%p165) target = $region20
      $region19: #{tpu_custom_call.1} parent=11 // pred_region
        _
      $region20: #{tpu_custom_call.1} parent=11 // pred_fallthru
        _
      // Predicated region
      $region21: #{tpu_custom_call.1} parent=11 // pred_check
        %p168 = pneg %p100
      $region22: #{tpu_custom_call.1} parent=11 // pred_check_branch
        %170 = sbr.rel (%p168) target = $region24
      $region23: #{tpu_custom_call.1} parent=11 // pred_region
        _
      $region24: #{tpu_custom_call.1} parent=11 // pred_fallthru
        _
      // Predicated region
      $region25: #{tpu_custom_call.1} parent=11 // pred_check
        %p171 = pneg %p121
      $region26: #{tpu_custom_call.1} parent=11 // pred_check_branch
        %173 = sbr.rel (%p171) target = $region28
      $region27: #{tpu_custom_call.1} parent=11 // pred_region
        _
      $region28: #{tpu_custom_call.1} parent=11 // pred_fallthru
        _
    $region12: #{tpu_custom_call.1} parent=5 // pred_fallthru
      _
    %p174 = scmp.lt.s32.totalorder %s11, 8
    // Predicated region
    $region29: #{tpu_custom_call.1} parent=5 // pred_check
      %p175 = pneg %p174
    $region30: #{tpu_custom_call.1} parent=5 // pred_check_branch
      %177 = sbr.rel (%p175) target = $region32
    $region31: #{tpu_custom_call.1} parent=5 // pred_region
      // Predicated region
      $region33: #{tpu_custom_call.1} parent=31 // pred_check
        %p178 = pneg %p31
      $region34: #{tpu_custom_call.1} parent=31 // pred_check_branch
        %180 = sbr.rel (%p178) target = $region36
      $region35: #{tpu_custom_call.1} parent=31 // pred_region
        %s181 = smul.u32 392, %s11
        %p182 = scmp.lt.s32.totalorder %s181, 3135
        %s183 = scalar_select %p182, %s181, 3135
        %s184 = smul.addr %s183, 4
        %s185 = scalar_lea.vmem %s0, %s184
        %s186 = smul.u32 392, %s11
      $region36: #{tpu_custom_call.1} parent=31 // pred_fallthru
        _
    $region32: #{tpu_custom_call.1} parent=5 // pred_fallthru
      _
    %p187 = scmp.le.s32.totalorder 1, %s11
    %p188 = scmp.lt.s32.totalorder %s11, 9
    %p189 = pnand %p187, %p188
    %p190 = pneg %p189
    // Predicated region
    $region37: #{tpu_custom_call.1} parent=5 // pred_check
      _
    $region38: #{tpu_custom_call.1} parent=5 // pred_check_branch
      %192 = sbr.rel (%p189) target = $region40
    $region39: #{tpu_custom_call.1} parent=5 // pred_region
      %s193 = ssub.s32 %s11, 1
      %s194 = smul.u32 392, %s16
      %p195 = scmp.lt.s32.totalorder %s194, 3135
      %s196 = scalar_select %p195, %s194, 3135
      %s197 = smul.addr %s196, 4
      %s198 = scalar_lea.vmem %s0, %s197
      %p199 = pneg %p37
      %p200 = pneg %p34
      %p201 = pneg %p58
      %p202 = pneg %p55
      %p203 = pneg %p79
      %p204 = pneg %p76
      %p205 = pneg %p100
      %p206 = pneg %p97
      %p207 = pneg %p121
      %p208 = pneg %p118
      %p209 = pneg %p147
      %p210 = pneg %p144
      %s211 = smul.u32 392, %s16
      %p212 = scmp.lt.s32.totalorder %s211, 3135
      %s213 = scalar_select %p212, %s211, 3135
      %s214 = smul.addr %s213, 8
      %s215 = scalar_lea.vmem %s5, %s214
      %s216 = smul.u32 392, %s16
      %p217 = scmp.lt.s32.totalorder %s216, 3135
      %s218 = scalar_select %p217, %s216, 3135
      %s219 = smul.addr %s218, 4
      %s220 = scalar_lea.vmem %s0, %s219
      %s221 = smul.u32 392, %s16
      %s222 = smul.u32 392, %s16
      %p223 = scmp.lt.s32.totalorder %s222, 3135
      %s224 = scalar_select %p223, %s222, 3135
      %s225 = smul.addr %s224, 8
      %s226 = scalar_lea.vmem %s5, %s225
      %s227 = smul.u32 392, %s16
      %v229 = vld [vmem:[%s220] sm:$0xf]
      %v230 = vld [vmem:[%s220 + $0x4] sm:$0xf]
      %v231 = vld [vmem:[%s220 + $0x8] sm:$0xf]
      %v232 = vld [vmem:[%s220 + $0xc] sm:$0xf]
      %v233 = vld [vmem:[%s220 + $0x10] sm:$0xf]
      %v234 = vld [vmem:[%s220 + $0x14] sm:$0xf]
      %v235 = vld [vmem:[%s220 + $0x18] sm:$0xf]
      %v236 = vld [vmem:[%s220 + $0x1c] sm:$0xf]
      %v237 = vld [vmem:[%s220 + $0x20] sm:$0xf]
      %v238 = vld [vmem:[%s220 + $0x24] sm:$0xf]
      %v239 = vld [vmem:[%s220 + $0x28] sm:$0xf]
      %v240 = vld [vmem:[%s220 + $0x2c] sm:$0xf]
      %v241 = vld [vmem:[%s220 + $0x30] sm:$0xf]
      %v242 = vld [vmem:[%s220 + $0x34] sm:$0xf]
      %v243 = vld [vmem:[%s220 + $0x38] sm:$0xf]
      %v244 = vld [vmem:[%s220 + $0x3c] sm:$0xf]
      %v245 = vld [vmem:[%s220 + $0x40] sm:$0xf]
      %v246 = vld [vmem:[%s220 + $0x44] sm:$0xf]
      %v247 = vld [vmem:[%s220 + $0x48] sm:$0xf]
      %v248 = vld [vmem:[%s220 + $0x4c] sm:$0xf]
      %v249 = vld [vmem:[%s220 + $0x50] sm:$0xf]
      %v250 = vld [vmem:[%s220 + $0x54] sm:$0xf]
      %v251 = vld [vmem:[%s220 + $0x58] sm:$0xf]
      %v252 = vld [vmem:[%s220 + $0x5c] sm:$0xf]
      %v253 = vld [vmem:[%s220 + $0x60] sm:$0xf]
      %v254 = vld [vmem:[%s220 + $0x64] sm:$0xf]
      %v255 = vld [vmem:[%s220 + $0x68] sm:$0xf]
      %v256 = vld [vmem:[%s220 + $0x6c] sm:$0xf]
      %v257 = vld [vmem:[%s220 + $0x70] sm:$0xf]
      %v258 = vld [vmem:[%s220 + $0x74] sm:$0xf]
      %v259 = vld [vmem:[%s220 + $0x78] sm:$0xf]
      %v260 = vld [vmem:[%s220 + $0x7c] sm:$0xf]
      %v261 = vld [vmem:[%s220 + $0x80] sm:$0xf]
      %v262 = vld [vmem:[%s220 + $0x84] sm:$0xf]
      %v263 = vld [vmem:[%s220 + $0x88] sm:$0xf]
      %v264 = vld [vmem:[%s220 + $0x8c] sm:$0xf]
      %v265 = vld [vmem:[%s220 + $0x90] sm:$0xf]
      %v266 = vld [vmem:[%s220 + $0x94] sm:$0xf]
      %v267 = vld [vmem:[%s220 + $0x98] sm:$0xf]
      %v268 = vld [vmem:[%s220 + $0x9c] sm:$0xf]
      %v269 = vld [vmem:[%s220 + $0xa0] sm:$0xf]
      %v270 = vld [vmem:[%s220 + $0xa4] sm:$0xf]
      %v271 = vld [vmem:[%s220 + $0xa8] sm:$0xf]
      %v272 = vld [vmem:[%s220 + $0xac] sm:$0xf]
      %v273 = vld [vmem:[%s220 + $0xb0] sm:$0xf]
      %v274 = vld [vmem:[%s220 + $0xb4] sm:$0xf]
      %v275 = vld [vmem:[%s220 + $0xb8] sm:$0xf]
      %v276 = vld [vmem:[%s220 + $0xbc] sm:$0xf]
      %v277 = vld [vmem:[%s220 + $0xc0] sm:$0xf]
      %v278 = vld [vmem:[%s220 + $0xc4] sm:$0xf]
      %v279 = vld [vmem:[%s220 + $0xc8] sm:$0xf]
      %v280 = vld [vmem:[%s220 + $0xcc] sm:$0xf]
      %v281 = vld [vmem:[%s220 + $0xd0] sm:$0xf]
      %v282 = vld [vmem:[%s220 + $0xd4] sm:$0xf]
      %v283 = vld [vmem:[%s220 + $0xd8] sm:$0xf]
      %v284 = vld [vmem:[%s220 + $0xdc] sm:$0xf]
      %v285 = vld [vmem:[%s220 + $0xe0] sm:$0xf]
      %v286 = vld [vmem:[%s220 + $0xe4] sm:$0xf]
      %v287 = vld [vmem:[%s220 + $0xe8] sm:$0xf]
      %v288 = vld [vmem:[%s220 + $0xec] sm:$0xf]
      %v289 = vld [vmem:[%s220 + $0xf0] sm:$0xf]
      %v290 = vld [vmem:[%s220 + $0xf4] sm:$0xf]
      %v291 = vld [vmem:[%s220 + $0xf8] sm:$0xf]
      %v292 = vld [vmem:[%s220 + $0xfc] sm:$0xf]
      %v293 = vld [vmem:[%s220 + $0x100] sm:$0xf]
      %v294 = vld [vmem:[%s220 + $0x104] sm:$0xf]
      %v295 = vld [vmem:[%s220 + $0x108] sm:$0xf]
      %v296 = vld [vmem:[%s220 + $0x10c] sm:$0xf]
      %v297 = vld [vmem:[%s220 + $0x110] sm:$0xf]
      %v298 = vld [vmem:[%s220 + $0x114] sm:$0xf]
      %v299 = vld [vmem:[%s220 + $0x118] sm:$0xf]
      %v300 = vld [vmem:[%s220 + $0x11c] sm:$0xf]
      %v301 = vld [vmem:[%s220 + $0x120] sm:$0xf]
      %v302 = vld [vmem:[%s220 + $0x124] sm:$0xf]
      %v303 = vld [vmem:[%s220 + $0x128] sm:$0xf]
      %v304 = vld [vmem:[%s220 + $0x12c] sm:$0xf]
      %v305 = vld [vmem:[%s220 + $0x130] sm:$0xf]
      %v306 = vld [vmem:[%s220 + $0x134] sm:$0xf]
      %v307 = vld [vmem:[%s220 + $0x138] sm:$0xf]
      %v308 = vld [vmem:[%s220 + $0x13c] sm:$0xf]
      %v309 = vld [vmem:[%s220 + $0x140] sm:$0xf]
      %v310 = vld [vmem:[%s220 + $0x144] sm:$0xf]
      %v311 = vld [vmem:[%s220 + $0x148] sm:$0xf]
      %v312 = vld [vmem:[%s220 + $0x14c] sm:$0xf]
      %v313 = vld [vmem:[%s220 + $0x150] sm:$0xf]
      %v314 = vld [vmem:[%s220 + $0x154] sm:$0xf]
      %v315 = vld [vmem:[%s220 + $0x158] sm:$0xf]
      %v316 = vld [vmem:[%s220 + $0x15c] sm:$0xf]
      %v317 = vld [vmem:[%s220 + $0x160] sm:$0xf]
      %v318 = vld [vmem:[%s220 + $0x164] sm:$0xf]
      %v319 = vld [vmem:[%s220 + $0x168] sm:$0xf]
      %v320 = vld [vmem:[%s220 + $0x16c] sm:$0xf]
      %v321 = vld [vmem:[%s220 + $0x170] sm:$0xf]
      %v322 = vld [vmem:[%s220 + $0x174] sm:$0xf]
      %v323 = vld [vmem:[%s220 + $0x178] sm:$0xf]
      %v324 = vld [vmem:[%s220 + $0x17c] sm:$0xf]
      %v325 = vld [vmem:[%s220 + $0x180] sm:$0xf]
      %v326 = vld [vmem:[%s220 + $0x184] sm:$0xf]
      %v327 = vld [vmem:[%s220 + $0x188] sm:$0xf]
      %v328 = vld [vmem:[%s220 + $0x18c] sm:$0xf]
      %v329 = vld [vmem:[%s220 + $0x190] sm:$0xf]
      %v330 = vld [vmem:[%s220 + $0x194] sm:$0xf]
      %v331 = vld [vmem:[%s220 + $0x198] sm:$0xf]
      %v332 = vld [vmem:[%s220 + $0x19c] sm:$0xf]
      %v333 = vld [vmem:[%s220 + $0x1a0] sm:$0xf]
      %v334 = vld [vmem:[%s220 + $0x1a4] sm:$0xf]
      %v335 = vld [vmem:[%s220 + $0x1a8] sm:$0xf]
      %v336 = vld [vmem:[%s220 + $0x1ac] sm:$0xf]
      %v337 = vld [vmem:[%s220 + $0x1b0] sm:$0xf]
      %v338 = vld [vmem:[%s220 + $0x1b4] sm:$0xf]
      %v339 = vld [vmem:[%s220 + $0x1b8] sm:$0xf]
      %v340 = vld [vmem:[%s220 + $0x1bc] sm:$0xf]
      %v341 = vld [vmem:[%s220 + $0x1c0] sm:$0xf]
      %v342 = vld [vmem:[%s220 + $0x1c4] sm:$0xf]
      %v343 = vld [vmem:[%s220 + $0x1c8] sm:$0xf]
      %v344 = vld [vmem:[%s220 + $0x1cc] sm:$0xf]
      %v345 = vld [vmem:[%s220 + $0x1d0] sm:$0xf]
      %v346 = vld [vmem:[%s220 + $0x1d4] sm:$0xf]
      %v347 = vld [vmem:[%s220 + $0x1d8] sm:$0xf]
      %v348 = vld [vmem:[%s220 + $0x1dc] sm:$0xf]
      %v349 = vld [vmem:[%s220 + $0x1e0] sm:$0xf]
      %v350 = vld [vmem:[%s220 + $0x1e4] sm:$0xf]
      %v351 = vld [vmem:[%s220 + $0x1e8] sm:$0xf]
      %v352 = vld [vmem:[%s220 + $0x1ec] sm:$0xf]
      %v353 = vld [vmem:[%s220 + $0x1f0] sm:$0xf]
      %v354 = vld [vmem:[%s220 + $0x1f4] sm:$0xf]
      %v355 = vld [vmem:[%s220 + $0x1f8] sm:$0xf]
      %v356 = vld [vmem:[%s220 + $0x1fc] sm:$0xf]
      %v357 = vld [vmem:[%s220 + $0x200] sm:$0xf]
      %v358 = vld [vmem:[%s220 + $0x204] sm:$0xf]
      %v359 = vld [vmem:[%s220 + $0x208] sm:$0xf]
      %v360 = vld [vmem:[%s220 + $0x20c] sm:$0xf]
      %v361 = vld [vmem:[%s220 + $0x210] sm:$0xf]
      %v362 = vld [vmem:[%s220 + $0x214] sm:$0xf]
      %v363 = vld [vmem:[%s220 + $0x218] sm:$0xf]
      %v364 = vld [vmem:[%s220 + $0x21c] sm:$0xf]
      %v365 = vld [vmem:[%s220 + $0x220] sm:$0xf]
      %v366 = vld [vmem:[%s220 + $0x224] sm:$0xf]
      %v367 = vld [vmem:[%s220 + $0x228] sm:$0xf]
      %v368 = vld [vmem:[%s220 + $0x22c] sm:$0xf]
      %v369 = vld [vmem:[%s220 + $0x230] sm:$0xf]
      %v370 = vld [vmem:[%s220 + $0x234] sm:$0xf]
      %v371 = vld [vmem:[%s220 + $0x238] sm:$0xf]
      %v372 = vld [vmem:[%s220 + $0x23c] sm:$0xf]
      %v373 = vld [vmem:[%s220 + $0x240] sm:$0xf]
      %v374 = vld [vmem:[%s220 + $0x244] sm:$0xf]
      %v375 = vld [vmem:[%s220 + $0x248] sm:$0xf]
      %v376 = vld [vmem:[%s220 + $0x24c] sm:$0xf]
      %v377 = vld [vmem:[%s220 + $0x250] sm:$0xf]
      %v378 = vld [vmem:[%s220 + $0x254] sm:$0xf]
      %v379 = vld [vmem:[%s220 + $0x258] sm:$0xf]
      %v380 = vld [vmem:[%s220 + $0x25c] sm:$0xf]
      %v381 = vld [vmem:[%s220 + $0x260] sm:$0xf]
      %v382 = vld [vmem:[%s220 + $0x264] sm:$0xf]
      %v383 = vld [vmem:[%s220 + $0x268] sm:$0xf]
      %v384 = vld [vmem:[%s220 + $0x26c] sm:$0xf]
      %v385 = vld [vmem:[%s220 + $0x270] sm:$0xf]
      %v386 = vld [vmem:[%s220 + $0x274] sm:$0xf]
      %v387 = vld [vmem:[%s220 + $0x278] sm:$0xf]
      %v388 = vld [vmem:[%s220 + $0x27c] sm:$0xf]
      %v389 = vld [vmem:[%s220 + $0x280] sm:$0xf]
      %v390 = vld [vmem:[%s220 + $0x284] sm:$0xf]
      %v391 = vld [vmem:[%s220 + $0x288] sm:$0xf]
      %v392 = vld [vmem:[%s220 + $0x28c] sm:$0xf]
      %v393 = vld [vmem:[%s220 + $0x290] sm:$0xf]
      %v394 = vld [vmem:[%s220 + $0x294] sm:$0xf]
      %v395 = vld [vmem:[%s220 + $0x298] sm:$0xf]
      %v396 = vld [vmem:[%s220 + $0x29c] sm:$0xf]
      %v397 = vld [vmem:[%s220 + $0x2a0] sm:$0xf]
      %v398 = vld [vmem:[%s220 + $0x2a4] sm:$0xf]
      %v399 = vld [vmem:[%s220 + $0x2a8] sm:$0xf]
      %v400 = vld [vmem:[%s220 + $0x2ac] sm:$0xf]
      %v401 = vld [vmem:[%s220 + $0x2b0] sm:$0xf]
      %v402 = vld [vmem:[%s220 + $0x2b4] sm:$0xf]
      %v403 = vld [vmem:[%s220 + $0x2b8] sm:$0xf]
      %v404 = vld [vmem:[%s220 + $0x2bc] sm:$0xf]
      %v405 = vld [vmem:[%s220 + $0x2c0] sm:$0xf]
      %v406 = vld [vmem:[%s220 + $0x2c4] sm:$0xf]
      %v407 = vld [vmem:[%s220 + $0x2c8] sm:$0xf]
      %v408 = vld [vmem:[%s220 + $0x2cc] sm:$0xf]
      %v409 = vld [vmem:[%s220 + $0x2d0] sm:$0xf]
      %v410 = vld [vmem:[%s220 + $0x2d4] sm:$0xf]
      %v411 = vld [vmem:[%s220 + $0x2d8] sm:$0xf]
      %v412 = vld [vmem:[%s220 + $0x2dc] sm:$0xf]
      %v413 = vld [vmem:[%s220 + $0x2e0] sm:$0xf]
      %v414 = vld [vmem:[%s220 + $0x2e4] sm:$0xf]
      %v415 = vld [vmem:[%s220 + $0x2e8] sm:$0xf]
      %v416 = vld [vmem:[%s220 + $0x2ec] sm:$0xf]
      %v417 = vld [vmem:[%s220 + $0x2f0] sm:$0xf]
      %v418 = vld [vmem:[%s220 + $0x2f4] sm:$0xf]
      %v419 = vld [vmem:[%s220 + $0x2f8] sm:$0xf]
      %v420 = vld [vmem:[%s220 + $0x2fc] sm:$0xf]
      %v421 = vld [vmem:[%s220 + $0x300] sm:$0xf]
      %v422 = vld [vmem:[%s220 + $0x304] sm:$0xf]
      %v423 = vld [vmem:[%s220 + $0x308] sm:$0xf]
      %v424 = vld [vmem:[%s220 + $0x30c] sm:$0xf]
      %v425 = vld [vmem:[%s220 + $0x310] sm:$0xf]
      %v426 = vld [vmem:[%s220 + $0x314] sm:$0xf]
      %v427 = vld [vmem:[%s220 + $0x318] sm:$0xf]
      %v428 = vld [vmem:[%s220 + $0x31c] sm:$0xf]
      %v429 = vld [vmem:[%s220 + $0x320] sm:$0xf]
      %v430 = vld [vmem:[%s220 + $0x324] sm:$0xf]
      %v431 = vld [vmem:[%s220 + $0x328] sm:$0xf]
      %v432 = vld [vmem:[%s220 + $0x32c] sm:$0xf]
      %v433 = vld [vmem:[%s220 + $0x330] sm:$0xf]
      %v434 = vld [vmem:[%s220 + $0x334] sm:$0xf]
      %v435 = vld [vmem:[%s220 + $0x338] sm:$0xf]
      %v436 = vld [vmem:[%s220 + $0x33c] sm:$0xf]
      %v437 = vld [vmem:[%s220 + $0x340] sm:$0xf]
      %v438 = vld [vmem:[%s220 + $0x344] sm:$0xf]
      %v439 = vld [vmem:[%s220 + $0x348] sm:$0xf]
      %v440 = vld [vmem:[%s220 + $0x34c] sm:$0xf]
      %v441 = vld [vmem:[%s220 + $0x350] sm:$0xf]
      %v442 = vld [vmem:[%s220 + $0x354] sm:$0xf]
      %v443 = vld [vmem:[%s220 + $0x358] sm:$0xf]
      %v444 = vld [vmem:[%s220 + $0x35c] sm:$0xf]
      %v445 = vld [vmem:[%s220 + $0x360] sm:$0xf]
      %v446 = vld [vmem:[%s220 + $0x364] sm:$0xf]
      %v447 = vld [vmem:[%s220 + $0x368] sm:$0xf]
      %v448 = vld [vmem:[%s220 + $0x36c] sm:$0xf]
      %v449 = vld [vmem:[%s220 + $0x370] sm:$0xf]
      %v450 = vld [vmem:[%s220 + $0x374] sm:$0xf]
      %v451 = vld [vmem:[%s220 + $0x378] sm:$0xf]
      %v452 = vld [vmem:[%s220 + $0x37c] sm:$0xf]
      %v453 = vld [vmem:[%s220 + $0x380] sm:$0xf]
      %v454 = vld [vmem:[%s220 + $0x384] sm:$0xf]
      %v455 = vld [vmem:[%s220 + $0x388] sm:$0xf]
      %v456 = vld [vmem:[%s220 + $0x38c] sm:$0xf]
      %v457 = vld [vmem:[%s220 + $0x390] sm:$0xf]
      %v458 = vld [vmem:[%s220 + $0x394] sm:$0xf]
      %v459 = vld [vmem:[%s220 + $0x398] sm:$0xf]
      %v460 = vld [vmem:[%s220 + $0x39c] sm:$0xf]
      %v461 = vld [vmem:[%s220 + $0x3a0] sm:$0xf]
      %v462 = vld [vmem:[%s220 + $0x3a4] sm:$0xf]
      %v463 = vld [vmem:[%s220 + $0x3a8] sm:$0xf]
      %v464 = vld [vmem:[%s220 + $0x3ac] sm:$0xf]
      %v465 = vld [vmem:[%s220 + $0x3b0] sm:$0xf]
      %v466 = vld [vmem:[%s220 + $0x3b4] sm:$0xf]
      %v467 = vld [vmem:[%s220 + $0x3b8] sm:$0xf]
      %v468 = vld [vmem:[%s220 + $0x3bc] sm:$0xf]
      %v469 = vld [vmem:[%s220 + $0x3c0] sm:$0xf]
      %v470 = vld [vmem:[%s220 + $0x3c4] sm:$0xf]
      %v471 = vld [vmem:[%s220 + $0x3c8] sm:$0xf]
      %v472 = vld [vmem:[%s220 + $0x3cc] sm:$0xf]
      %v473 = vld [vmem:[%s220 + $0x3d0] sm:$0xf]
      %v474 = vld [vmem:[%s220 + $0x3d4] sm:$0xf]
      %v475 = vld [vmem:[%s220 + $0x3d8] sm:$0xf]
      %v476 = vld [vmem:[%s220 + $0x3dc] sm:$0xf]
      %v477 = vld [vmem:[%s220 + $0x3e0] sm:$0xf]
      %v478 = vld [vmem:[%s220 + $0x3e4] sm:$0xf]
      %v479 = vld [vmem:[%s220 + $0x3e8] sm:$0xf]
      %v480 = vld [vmem:[%s220 + $0x3ec] sm:$0xf]
      %v481 = vld [vmem:[%s220 + $0x3f0] sm:$0xf]
      %v482 = vld [vmem:[%s220 + $0x3f4] sm:$0xf]
      %v483 = vld [vmem:[%s220 + $0x3f8] sm:$0xf]
      %v484 = vld [vmem:[%s220 + $0x3fc] sm:$0xf]
      %v485 = vld [vmem:[%s220 + $0x400] sm:$0xf]
      %v486 = vld [vmem:[%s220 + $0x404] sm:$0xf]
      %v487 = vld [vmem:[%s220 + $0x408] sm:$0xf]
      %v488 = vld [vmem:[%s220 + $0x40c] sm:$0xf]
      %v489 = vld [vmem:[%s220 + $0x410] sm:$0xf]
      %v490 = vld [vmem:[%s220 + $0x414] sm:$0xf]
      %v491 = vld [vmem:[%s220 + $0x418] sm:$0xf]
      %v492 = vld [vmem:[%s220 + $0x41c] sm:$0xf]
      %v493 = vld [vmem:[%s220 + $0x420] sm:$0xf]
      %v494 = vld [vmem:[%s220 + $0x424] sm:$0xf]
      %v495 = vld [vmem:[%s220 + $0x428] sm:$0xf]
      %v496 = vld [vmem:[%s220 + $0x42c] sm:$0xf]
      %v497 = vld [vmem:[%s220 + $0x430] sm:$0xf]
      %v498 = vld [vmem:[%s220 + $0x434] sm:$0xf]
      %v499 = vld [vmem:[%s220 + $0x438] sm:$0xf]
      %v500 = vld [vmem:[%s220 + $0x43c] sm:$0xf]
      %v501 = vld [vmem:[%s220 + $0x440] sm:$0xf]
      %v502 = vld [vmem:[%s220 + $0x444] sm:$0xf]
      %v503 = vld [vmem:[%s220 + $0x448] sm:$0xf]
      %v504 = vld [vmem:[%s220 + $0x44c] sm:$0xf]
      %v505 = vld [vmem:[%s220 + $0x450] sm:$0xf]
      %v506 = vld [vmem:[%s220 + $0x454] sm:$0xf]
      %v507 = vld [vmem:[%s220 + $0x458] sm:$0xf]
      %v508 = vld [vmem:[%s220 + $0x45c] sm:$0xf]
      %v509 = vld [vmem:[%s220 + $0x460] sm:$0xf]
      %v510 = vld [vmem:[%s220 + $0x464] sm:$0xf]
      %v511 = vld [vmem:[%s220 + $0x468] sm:$0xf]
      %v512 = vld [vmem:[%s220 + $0x46c] sm:$0xf]
      %v513 = vld [vmem:[%s220 + $0x470] sm:$0xf]
      %v514 = vld [vmem:[%s220 + $0x474] sm:$0xf]
      %v515 = vld [vmem:[%s220 + $0x478] sm:$0xf]
      %v516 = vld [vmem:[%s220 + $0x47c] sm:$0xf]
      %v517 = vld [vmem:[%s220 + $0x480] sm:$0xf]
      %v518 = vld [vmem:[%s220 + $0x484] sm:$0xf]
      %v519 = vld [vmem:[%s220 + $0x488] sm:$0xf]
      %v520 = vld [vmem:[%s220 + $0x48c] sm:$0xf]
      %v521 = vld [vmem:[%s220 + $0x490] sm:$0xf]
      %v522 = vld [vmem:[%s220 + $0x494] sm:$0xf]
      %v523 = vld [vmem:[%s220 + $0x498] sm:$0xf]
      %v524 = vld [vmem:[%s220 + $0x49c] sm:$0xf]
      %v525 = vld [vmem:[%s220 + $0x4a0] sm:$0xf]
      %v526 = vld [vmem:[%s220 + $0x4a4] sm:$0xf]
      %v527 = vld [vmem:[%s220 + $0x4a8] sm:$0xf]
      %v528 = vld [vmem:[%s220 + $0x4ac] sm:$0xf]
      %v529 = vld [vmem:[%s220 + $0x4b0] sm:$0xf]
      %v530 = vld [vmem:[%s220 + $0x4b4] sm:$0xf]
      %v531 = vld [vmem:[%s220 + $0x4b8] sm:$0xf]
      %v532 = vld [vmem:[%s220 + $0x4bc] sm:$0xf]
      %v533 = vld [vmem:[%s220 + $0x4c0] sm:$0xf]
      %v534 = vld [vmem:[%s220 + $0x4c4] sm:$0xf]
      %v535 = vld [vmem:[%s220 + $0x4c8] sm:$0xf]
      %v536 = vld [vmem:[%s220 + $0x4cc] sm:$0xf]
      %v537 = vld [vmem:[%s220 + $0x4d0] sm:$0xf]
      %v538 = vld [vmem:[%s220 + $0x4d4] sm:$0xf]
      %v539 = vld [vmem:[%s220 + $0x4d8] sm:$0xf]
      %v540 = vld [vmem:[%s220 + $0x4dc] sm:$0xf]
      %v541 = vld [vmem:[%s220 + $0x4e0] sm:$0xf]
      %v542 = vld [vmem:[%s220 + $0x4e4] sm:$0xf]
      %v543 = vld [vmem:[%s220 + $0x4e8] sm:$0xf]
      %v544 = vld [vmem:[%s220 + $0x4ec] sm:$0xf]
      %v545 = vld [vmem:[%s220 + $0x4f0] sm:$0xf]
      %v546 = vld [vmem:[%s220 + $0x4f4] sm:$0xf]
      %v547 = vld [vmem:[%s220 + $0x4f8] sm:$0xf]
      %v548 = vld [vmem:[%s220 + $0x4fc] sm:$0xf]
      %v549 = vld [vmem:[%s220 + $0x500] sm:$0xf]
      %v550 = vld [vmem:[%s220 + $0x504] sm:$0xf]
      %v551 = vld [vmem:[%s220 + $0x508] sm:$0xf]
      %v552 = vld [vmem:[%s220 + $0x50c] sm:$0xf]
      %v553 = vld [vmem:[%s220 + $0x510] sm:$0xf]
      %v554 = vld [vmem:[%s220 + $0x514] sm:$0xf]
      %v555 = vld [vmem:[%s220 + $0x518] sm:$0xf]
      %v556 = vld [vmem:[%s220 + $0x51c] sm:$0xf]
      %v557 = vld [vmem:[%s220 + $0x520] sm:$0xf]
      %v558 = vld [vmem:[%s220 + $0x524] sm:$0xf]
      %v559 = vld [vmem:[%s220 + $0x528] sm:$0xf]
      %v560 = vld [vmem:[%s220 + $0x52c] sm:$0xf]
      %v561 = vld [vmem:[%s220 + $0x530] sm:$0xf]
      %v562 = vld [vmem:[%s220 + $0x534] sm:$0xf]
      %v563 = vld [vmem:[%s220 + $0x538] sm:$0xf]
      %v564 = vld [vmem:[%s220 + $0x53c] sm:$0xf]
      %v565 = vld [vmem:[%s220 + $0x540] sm:$0xf]
      %v566 = vld [vmem:[%s220 + $0x544] sm:$0xf]
      %v567 = vld [vmem:[%s220 + $0x548] sm:$0xf]
      %v568 = vld [vmem:[%s220 + $0x54c] sm:$0xf]
      %v569 = vld [vmem:[%s220 + $0x550] sm:$0xf]
      %v570 = vld [vmem:[%s220 + $0x554] sm:$0xf]
      %v571 = vld [vmem:[%s220 + $0x558] sm:$0xf]
      %v572 = vld [vmem:[%s220 + $0x55c] sm:$0xf]
      %v573 = vld [vmem:[%s220 + $0x560] sm:$0xf]
      %v574 = vld [vmem:[%s220 + $0x564] sm:$0xf]
      %v575 = vld [vmem:[%s220 + $0x568] sm:$0xf]
      %v576 = vld [vmem:[%s220 + $0x56c] sm:$0xf]
      %v577 = vld [vmem:[%s220 + $0x570] sm:$0xf]
      %v578 = vld [vmem:[%s220 + $0x574] sm:$0xf]
      %v579 = vld [vmem:[%s220 + $0x578] sm:$0xf]
      %v580 = vld [vmem:[%s220 + $0x57c] sm:$0xf]
      %v581 = vld [vmem:[%s220 + $0x580] sm:$0xf]
      %v582 = vld [vmem:[%s220 + $0x584] sm:$0xf]
      %v583 = vld [vmem:[%s220 + $0x588] sm:$0xf]
      %v584 = vld [vmem:[%s220 + $0x58c] sm:$0xf]
      %v585 = vld [vmem:[%s220 + $0x590] sm:$0xf]
      %v586 = vld [vmem:[%s220 + $0x594] sm:$0xf]
      %v587 = vld [vmem:[%s220 + $0x598] sm:$0xf]
      %v588 = vld [vmem:[%s220 + $0x59c] sm:$0xf]
      %v589 = vld [vmem:[%s220 + $0x5a0] sm:$0xf]
      %v590 = vld [vmem:[%s220 + $0x5a4] sm:$0xf]
      %v591 = vld [vmem:[%s220 + $0x5a8] sm:$0xf]
      %v592 = vld [vmem:[%s220 + $0x5ac] sm:$0xf]
      %v593 = vld [vmem:[%s220 + $0x5b0] sm:$0xf]
      %v594 = vld [vmem:[%s220 + $0x5b4] sm:$0xf]
      %v595 = vld [vmem:[%s220 + $0x5b8] sm:$0xf]
      %v596 = vld [vmem:[%s220 + $0x5bc] sm:$0xf]
      %v597 = vld [vmem:[%s220 + $0x5c0] sm:$0xf]
      %v598 = vld [vmem:[%s220 + $0x5c4] sm:$0xf]
      %v599 = vld [vmem:[%s220 + $0x5c8] sm:$0xf]
      %v600 = vld [vmem:[%s220 + $0x5cc] sm:$0xf]
      %v601 = vld [vmem:[%s220 + $0x5d0] sm:$0xf]
      %v602 = vld [vmem:[%s220 + $0x5d4] sm:$0xf]
      %v603 = vld [vmem:[%s220 + $0x5d8] sm:$0xf]
      %v604 = vld [vmem:[%s220 + $0x5dc] sm:$0xf]
      %v605 = vld [vmem:[%s220 + $0x5e0] sm:$0xf]
      %v606 = vld [vmem:[%s220 + $0x5e4] sm:$0xf]
      %v607 = vld [vmem:[%s220 + $0x5e8] sm:$0xf]
      %v608 = vld [vmem:[%s220 + $0x5ec] sm:$0xf]
      %v609 = vld [vmem:[%s220 + $0x5f0] sm:$0xf]
      %v610 = vld [vmem:[%s220 + $0x5f4] sm:$0xf]
      %v611 = vld [vmem:[%s220 + $0x5f8] sm:$0xf]
      %v612 = vld [vmem:[%s220 + $0x5fc] sm:$0xf]
      %v613 = vld [vmem:[%s220 + $0x600] sm:$0xf]
      %v614 = vld [vmem:[%s220 + $0x604] sm:$0xf]
      %v615 = vld [vmem:[%s220 + $0x608] sm:$0xf]
      %v616 = vld [vmem:[%s220 + $0x60c] sm:$0xf]
      %v617 = vld [vmem:[%s220 + $0x610] sm:$0xf]
      %v618 = vld [vmem:[%s220 + $0x614] sm:$0xf]
      %v619 = vld [vmem:[%s220 + $0x618] sm:$0xf]
      %v620 = vld [vmem:[%s220 + $0x61c] sm:$0xf]
      %v621 = vld [vmem:[%s1] sm:$0xf]
      %v622 = vld [vmem:[%s1 + $0x4] sm:$0xf]
      %v623 = vld [vmem:[%s1 + $0x8] sm:$0xf]
      %v624 = vld [vmem:[%s1 + $0xc] sm:$0xf]
      %v1017 = vunpack.c.l.b16 %v229
      %v1018 = vunpack.c.l.b16 %v230
      %v1019 = vunpack.c.l.b16 %v231
      %v1020 = vunpack.c.l.b16 %v232
      %v1021 = vunpack.c.l.b16 %v233
      %v1022 = vunpack.c.l.b16 %v234
      %v1023 = vunpack.c.l.b16 %v235
      %v1024 = vunpack.c.l.b16 %v236
      %v1025 = vunpack.c.l.b16 %v237
      %v1026 = vunpack.c.l.b16 %v238
      %v1027 = vunpack.c.l.b16 %v239
      %v1028 = vunpack.c.l.b16 %v240
      %v1029 = vunpack.c.l.b16 %v241
      %v1030 = vunpack.c.l.b16 %v242
      %v1031 = vunpack.c.l.b16 %v243
      %v1032 = vunpack.c.l.b16 %v244
      %v1033 = vunpack.c.l.b16 %v245
      %v1034 = vunpack.c.l.b16 %v246
      %v1035 = vunpack.c.l.b16 %v247
      %v1036 = vunpack.c.l.b16 %v248
      %v1037 = vunpack.c.l.b16 %v249
      %v1038 = vunpack.c.l.b16 %v250
      %v1039 = vunpack.c.l.b16 %v251
      %v1040 = vunpack.c.l.b16 %v252
      %v1041 = vunpack.c.l.b16 %v253
      %v1042 = vunpack.c.l.b16 %v254
      %v1043 = vunpack.c.l.b16 %v255
      %v1044 = vunpack.c.l.b16 %v256
      %v1045 = vunpack.c.l.b16 %v257
      %v1046 = vunpack.c.l.b16 %v258
      %v1047 = vunpack.c.l.b16 %v259
      %v1048 = vunpack.c.l.b16 %v260
      %v1049 = vunpack.c.l.b16 %v261
      %v1050 = vunpack.c.l.b16 %v262
      %v1051 = vunpack.c.l.b16 %v263
      %v1052 = vunpack.c.l.b16 %v264
      %v1053 = vunpack.c.l.b16 %v265
      %v1054 = vunpack.c.l.b16 %v266
      %v1055 = vunpack.c.l.b16 %v267
      %v1056 = vunpack.c.l.b16 %v268
      %v1057 = vunpack.c.l.b16 %v269
      %v1058 = vunpack.c.l.b16 %v270
      %v1059 = vunpack.c.l.b16 %v271
      %v1060 = vunpack.c.l.b16 %v272
      %v1061 = vunpack.c.l.b16 %v273
      %v1062 = vunpack.c.l.b16 %v274
      %v1063 = vunpack.c.l.b16 %v275
      %v1064 = vunpack.c.l.b16 %v276
      %v1065 = vunpack.c.l.b16 %v277
      %v1066 = vunpack.c.l.b16 %v278
      %v1067 = vunpack.c.l.b16 %v279
      %v1068 = vunpack.c.l.b16 %v280
      %v1069 = vunpack.c.l.b16 %v281
      %v1070 = vunpack.c.l.b16 %v282
      %v1071 = vunpack.c.l.b16 %v283
      %v1072 = vunpack.c.l.b16 %v284
      %v1073 = vunpack.c.l.b16 %v285
      %v1074 = vunpack.c.l.b16 %v286
      %v1075 = vunpack.c.l.b16 %v287
      %v1076 = vunpack.c.l.b16 %v288
      %v1077 = vunpack.c.l.b16 %v289
      %v1078 = vunpack.c.l.b16 %v290
      %v1079 = vunpack.c.l.b16 %v291
      %v1080 = vunpack.c.l.b16 %v292
      %v1081 = vunpack.c.l.b16 %v293
      %v1082 = vunpack.c.l.b16 %v294
      %v1083 = vunpack.c.l.b16 %v295
      %v1084 = vunpack.c.l.b16 %v296
      %v1085 = vunpack.c.l.b16 %v297
      %v1086 = vunpack.c.l.b16 %v298
      %v1087 = vunpack.c.l.b16 %v299
      %v1088 = vunpack.c.l.b16 %v300
      %v1089 = vunpack.c.l.b16 %v301
      %v1090 = vunpack.c.l.b16 %v302
      %v1091 = vunpack.c.l.b16 %v303
      %v1092 = vunpack.c.l.b16 %v304
      %v1093 = vunpack.c.l.b16 %v305
      %v1094 = vunpack.c.l.b16 %v306
      %v1095 = vunpack.c.l.b16 %v307
      %v1096 = vunpack.c.l.b16 %v308
      %v1097 = vunpack.c.l.b16 %v309
      %v1098 = vunpack.c.l.b16 %v310
      %v1099 = vunpack.c.l.b16 %v311
      %v1100 = vunpack.c.l.b16 %v312
      %v1101 = vunpack.c.l.b16 %v313
      %v1102 = vunpack.c.l.b16 %v314
      %v1103 = vunpack.c.l.b16 %v315
      %v1104 = vunpack.c.l.b16 %v316
      %v1105 = vunpack.c.l.b16 %v317
      %v1106 = vunpack.c.l.b16 %v318
      %v1107 = vunpack.c.l.b16 %v319
      %v1108 = vunpack.c.l.b16 %v320
      %v1109 = vunpack.c.l.b16 %v321
      %v1110 = vunpack.c.l.b16 %v322
      %v1111 = vunpack.c.l.b16 %v323
      %v1112 = vunpack.c.l.b16 %v324
      %v1113 = vunpack.c.l.b16 %v325
      %v1114 = vunpack.c.l.b16 %v326
      %v1115 = vunpack.c.l.b16 %v327
      %v1116 = vunpack.c.l.b16 %v328
      %v1117 = vunpack.c.l.b16 %v329
      %v1118 = vunpack.c.l.b16 %v330
      %v1119 = vunpack.c.l.b16 %v331
      %v1120 = vunpack.c.l.b16 %v332
      %v1121 = vunpack.c.l.b16 %v333
      %v1122 = vunpack.c.l.b16 %v334
      %v1123 = vunpack.c.l.b16 %v335
      %v1124 = vunpack.c.l.b16 %v336
      %v1125 = vunpack.c.l.b16 %v337
      %v1126 = vunpack.c.l.b16 %v338
      %v1127 = vunpack.c.l.b16 %v339
      %v1128 = vunpack.c.l.b16 %v340
      %v1129 = vunpack.c.l.b16 %v341
      %v1130 = vunpack.c.l.b16 %v342
      %v1131 = vunpack.c.l.b16 %v343
      %v1132 = vunpack.c.l.b16 %v344
      %v1133 = vunpack.c.l.b16 %v345
      %v1134 = vunpack.c.l.b16 %v346
      %v1135 = vunpack.c.l.b16 %v347
      %v1136 = vunpack.c.l.b16 %v348
      %v1137 = vunpack.c.l.b16 %v349
      %v1138 = vunpack.c.l.b16 %v350
      %v1139 = vunpack.c.l.b16 %v351
      %v1140 = vunpack.c.l.b16 %v352
      %v1141 = vunpack.c.l.b16 %v353
      %v1142 = vunpack.c.l.b16 %v354
      %v1143 = vunpack.c.l.b16 %v355
      %v1144 = vunpack.c.l.b16 %v356
      %v1145 = vunpack.c.l.b16 %v357
      %v1146 = vunpack.c.l.b16 %v358
      %v1147 = vunpack.c.l.b16 %v359
      %v1148 = vunpack.c.l.b16 %v360
      %v1149 = vunpack.c.l.b16 %v361
      %v1150 = vunpack.c.l.b16 %v362
      %v1151 = vunpack.c.l.b16 %v363
      %v1152 = vunpack.c.l.b16 %v364
      %v1153 = vunpack.c.l.b16 %v365
      %v1154 = vunpack.c.l.b16 %v366
      %v1155 = vunpack.c.l.b16 %v367
      %v1156 = vunpack.c.l.b16 %v368
      %v1157 = vunpack.c.l.b16 %v369
      %v1158 = vunpack.c.l.b16 %v370
      %v1159 = vunpack.c.l.b16 %v371
      %v1160 = vunpack.c.l.b16 %v372
      %v1161 = vunpack.c.l.b16 %v373
      %v1162 = vunpack.c.l.b16 %v374
      %v1163 = vunpack.c.l.b16 %v375
      %v1164 = vunpack.c.l.b16 %v376
      %v1165 = vunpack.c.l.b16 %v377
      %v1166 = vunpack.c.l.b16 %v378
      %v1167 = vunpack.c.l.b16 %v379
      %v1168 = vunpack.c.l.b16 %v380
      %v1169 = vunpack.c.l.b16 %v381
      %v1170 = vunpack.c.l.b16 %v382
      %v1171 = vunpack.c.l.b16 %v383
      %v1172 = vunpack.c.l.b16 %v384
      %v1173 = vunpack.c.l.b16 %v385
      %v1174 = vunpack.c.l.b16 %v386
      %v1175 = vunpack.c.l.b16 %v387
      %v1176 = vunpack.c.l.b16 %v388
      %v1177 = vunpack.c.l.b16 %v389
      %v1178 = vunpack.c.l.b16 %v390
      %v1179 = vunpack.c.l.b16 %v391
      %v1180 = vunpack.c.l.b16 %v392
      %v1181 = vunpack.c.l.b16 %v393
      %v1182 = vunpack.c.l.b16 %v394
      %v1183 = vunpack.c.l.b16 %v395
      %v1184 = vunpack.c.l.b16 %v396
      %v1185 = vunpack.c.l.b16 %v397
      %v1186 = vunpack.c.l.b16 %v398
      %v1187 = vunpack.c.l.b16 %v399
      %v1188 = vunpack.c.l.b16 %v400
      %v1189 = vunpack.c.l.b16 %v401
      %v1190 = vunpack.c.l.b16 %v402
      %v1191 = vunpack.c.l.b16 %v403
      %v1192 = vunpack.c.l.b16 %v404
      %v1193 = vunpack.c.l.b16 %v405
      %v1194 = vunpack.c.l.b16 %v406
      %v1195 = vunpack.c.l.b16 %v407
      %v1196 = vunpack.c.l.b16 %v408
      %v1197 = vunpack.c.l.b16 %v409
      %v1198 = vunpack.c.l.b16 %v410
      %v1199 = vunpack.c.l.b16 %v411
      %v1200 = vunpack.c.l.b16 %v412
      %v1201 = vunpack.c.l.b16 %v413
      %v1202 = vunpack.c.l.b16 %v414
      %v1203 = vunpack.c.l.b16 %v415
      %v1204 = vunpack.c.l.b16 %v416
      %v1205 = vunpack.c.l.b16 %v417
      %v1206 = vunpack.c.l.b16 %v418
      %v1207 = vunpack.c.l.b16 %v419
      %v1208 = vunpack.c.l.b16 %v420
      %v1209 = vunpack.c.l.b16 %v421
      %v1210 = vunpack.c.l.b16 %v422
      %v1211 = vunpack.c.l.b16 %v423
      %v1212 = vunpack.c.l.b16 %v424
      %v1213 = vunpack.c.l.b16 %v425
      %v1214 = vunpack.c.l.b16 %v426
      %v1215 = vunpack.c.l.b16 %v427
      %v1216 = vunpack.c.l.b16 %v428
      %v1217 = vunpack.c.l.b16 %v429
      %v1218 = vunpack.c.l.b16 %v430
      %v1219 = vunpack.c.l.b16 %v431
      %v1220 = vunpack.c.l.b16 %v432
      %v1221 = vunpack.c.l.b16 %v433
      %v1222 = vunpack.c.l.b16 %v434
      %v1223 = vunpack.c.l.b16 %v435
      %v1224 = vunpack.c.l.b16 %v436
      %v1225 = vunpack.c.l.b16 %v437
      %v1226 = vunpack.c.l.b16 %v438
      %v1227 = vunpack.c.l.b16 %v439
      %v1228 = vunpack.c.l.b16 %v440
      %v1229 = vunpack.c.l.b16 %v441
      %v1230 = vunpack.c.l.b16 %v442
      %v1231 = vunpack.c.l.b16 %v443
      %v1232 = vunpack.c.l.b16 %v444
      %v1233 = vunpack.c.l.b16 %v445
      %v1234 = vunpack.c.l.b16 %v446
      %v1235 = vunpack.c.l.b16 %v447
      %v1236 = vunpack.c.l.b16 %v448
      %v1237 = vunpack.c.l.b16 %v449
      %v1238 = vunpack.c.l.b16 %v450
      %v1239 = vunpack.c.l.b16 %v451
      %v1240 = vunpack.c.l.b16 %v452
      %v1241 = vunpack.c.l.b16 %v453
      %v1242 = vunpack.c.l.b16 %v454
      %v1243 = vunpack.c.l.b16 %v455
      %v1244 = vunpack.c.l.b16 %v456
      %v1245 = vunpack.c.l.b16 %v457
      %v1246 = vunpack.c.l.b16 %v458
      %v1247 = vunpack.c.l.b16 %v459
      %v1248 = vunpack.c.l.b16 %v460
      %v1249 = vunpack.c.l.b16 %v461
      %v1250 = vunpack.c.l.b16 %v462
      %v1251 = vunpack.c.l.b16 %v463
      %v1252 = vunpack.c.l.b16 %v464
      %v1253 = vunpack.c.l.b16 %v465
      %v1254 = vunpack.c.l.b16 %v466
      %v1255 = vunpack.c.l.b16 %v467
      %v1256 = vunpack.c.l.b16 %v468
      %v1257 = vunpack.c.l.b16 %v469
      %v1258 = vunpack.c.l.b16 %v470
      %v1259 = vunpack.c.l.b16 %v471
      %v1260 = vunpack.c.l.b16 %v472
      %v1261 = vunpack.c.l.b16 %v473
      %v1262 = vunpack.c.l.b16 %v474
      %v1263 = vunpack.c.l.b16 %v475
      %v1264 = vunpack.c.l.b16 %v476
      %v1265 = vunpack.c.l.b16 %v477
      %v1266 = vunpack.c.l.b16 %v478
      %v1267 = vunpack.c.l.b16 %v479
      %v1268 = vunpack.c.l.b16 %v480
      %v1269 = vunpack.c.l.b16 %v481
      %v1270 = vunpack.c.l.b16 %v482
      %v1271 = vunpack.c.l.b16 %v483
      %v1272 = vunpack.c.l.b16 %v484
      %v1273 = vunpack.c.l.b16 %v485
      %v1274 = vunpack.c.l.b16 %v486
      %v1275 = vunpack.c.l.b16 %v487
      %v1276 = vunpack.c.l.b16 %v488
      %v1277 = vunpack.c.l.b16 %v489
      %v1278 = vunpack.c.l.b16 %v490
      %v1279 = vunpack.c.l.b16 %v491
      %v1280 = vunpack.c.l.b16 %v492
      %v1281 = vunpack.c.l.b16 %v493
      %v1282 = vunpack.c.l.b16 %v494
      %v1283 = vunpack.c.l.b16 %v495
      %v1284 = vunpack.c.l.b16 %v496
      %v1285 = vunpack.c.l.b16 %v497
      %v1286 = vunpack.c.l.b16 %v498
      %v1287 = vunpack.c.l.b16 %v499
      %v1288 = vunpack.c.l.b16 %v500
      %v1289 = vunpack.c.l.b16 %v501
      %v1290 = vunpack.c.l.b16 %v502
      %v1291 = vunpack.c.l.b16 %v503
      %v1292 = vunpack.c.l.b16 %v504
      %v1293 = vunpack.c.l.b16 %v505
      %v1294 = vunpack.c.l.b16 %v506
      %v1295 = vunpack.c.l.b16 %v507
      %v1296 = vunpack.c.l.b16 %v508
      %v1297 = vunpack.c.l.b16 %v509
      %v1298 = vunpack.c.l.b16 %v510
      %v1299 = vunpack.c.l.b16 %v511
      %v1300 = vunpack.c.l.b16 %v512
      %v1301 = vunpack.c.l.b16 %v513
      %v1302 = vunpack.c.l.b16 %v514
      %v1303 = vunpack.c.l.b16 %v515
      %v1304 = vunpack.c.l.b16 %v516
      %v1305 = vunpack.c.l.b16 %v517
      %v1306 = vunpack.c.l.b16 %v518
      %v1307 = vunpack.c.l.b16 %v519
      %v1308 = vunpack.c.l.b16 %v520
      %v1309 = vunpack.c.l.b16 %v521
      %v1310 = vunpack.c.l.b16 %v522
      %v1311 = vunpack.c.l.b16 %v523
      %v1312 = vunpack.c.l.b16 %v524
      %v1313 = vunpack.c.l.b16 %v525
      %v1314 = vunpack.c.l.b16 %v526
      %v1315 = vunpack.c.l.b16 %v527
      %v1316 = vunpack.c.l.b16 %v528
      %v1317 = vunpack.c.l.b16 %v529
      %v1318 = vunpack.c.l.b16 %v530
      %v1319 = vunpack.c.l.b16 %v531
      %v1320 = vunpack.c.l.b16 %v532
      %v1321 = vunpack.c.l.b16 %v533
      %v1322 = vunpack.c.l.b16 %v534
      %v1323 = vunpack.c.l.b16 %v535
      %v1324 = vunpack.c.l.b16 %v536
      %v1325 = vunpack.c.l.b16 %v537
      %v1326 = vunpack.c.l.b16 %v538
      %v1327 = vunpack.c.l.b16 %v539
      %v1328 = vunpack.c.l.b16 %v540
      %v1329 = vunpack.c.l.b16 %v541
      %v1330 = vunpack.c.l.b16 %v542
      %v1331 = vunpack.c.l.b16 %v543
      %v1332 = vunpack.c.l.b16 %v544
      %v1333 = vunpack.c.l.b16 %v545
      %v1334 = vunpack.c.l.b16 %v546
      %v1335 = vunpack.c.l.b16 %v547
      %v1336 = vunpack.c.l.b16 %v548
      %v1337 = vunpack.c.l.b16 %v549
      %v1338 = vunpack.c.l.b16 %v550
      %v1339 = vunpack.c.l.b16 %v551
      %v1340 = vunpack.c.l.b16 %v552
      %v1341 = vunpack.c.l.b16 %v553
      %v1342 = vunpack.c.l.b16 %v554
      %v1343 = vunpack.c.l.b16 %v555
      %v1344 = vunpack.c.l.b16 %v556
      %v1345 = vunpack.c.l.b16 %v557
      %v1346 = vunpack.c.l.b16 %v558
      %v1347 = vunpack.c.l.b16 %v559
      %v1348 = vunpack.c.l.b16 %v560
      %v1349 = vunpack.c.l.b16 %v561
      %v1350 = vunpack.c.l.b16 %v562
      %v1351 = vunpack.c.l.b16 %v563
      %v1352 = vunpack.c.l.b16 %v564
      %v1353 = vunpack.c.l.b16 %v565
      %v1354 = vunpack.c.l.b16 %v566
      %v1355 = vunpack.c.l.b16 %v567
      %v1356 = vunpack.c.l.b16 %v568
      %v1357 = vunpack.c.l.b16 %v569
      %v1358 = vunpack.c.l.b16 %v570
      %v1359 = vunpack.c.l.b16 %v571
      %v1360 = vunpack.c.l.b16 %v572
      %v1361 = vunpack.c.l.b16 %v573
      %v1362 = vunpack.c.l.b16 %v574
      %v1363 = vunpack.c.l.b16 %v575
      %v1364 = vunpack.c.l.b16 %v576
      %v1365 = vunpack.c.l.b16 %v577
      %v1366 = vunpack.c.l.b16 %v578
      %v1367 = vunpack.c.l.b16 %v579
      %v1368 = vunpack.c.l.b16 %v580
      %v1369 = vunpack.c.l.b16 %v581
      %v1370 = vunpack.c.l.b16 %v582
      %v1371 = vunpack.c.l.b16 %v583
      %v1372 = vunpack.c.l.b16 %v584
      %v1373 = vunpack.c.l.b16 %v585
      %v1374 = vunpack.c.l.b16 %v586
      %v1375 = vunpack.c.l.b16 %v587
      %v1376 = vunpack.c.l.b16 %v588
      %v1377 = vunpack.c.l.b16 %v589
      %v1378 = vunpack.c.l.b16 %v590
      %v1379 = vunpack.c.l.b16 %v591
      %v1380 = vunpack.c.l.b16 %v592
      %v1381 = vunpack.c.l.b16 %v593
      %v1382 = vunpack.c.l.b16 %v594
      %v1383 = vunpack.c.l.b16 %v595
      %v1384 = vunpack.c.l.b16 %v596
      %v1385 = vunpack.c.l.b16 %v597
      %v1386 = vunpack.c.l.b16 %v598
      %v1387 = vunpack.c.l.b16 %v599
      %v1388 = vunpack.c.l.b16 %v600
      %v1389 = vunpack.c.l.b16 %v601
      %v1390 = vunpack.c.l.b16 %v602
      %v1391 = vunpack.c.l.b16 %v603
      %v1392 = vunpack.c.l.b16 %v604
      %v1393 = vunpack.c.l.b16 %v605
      %v1394 = vunpack.c.l.b16 %v606
      %v1395 = vunpack.c.l.b16 %v607
      %v1396 = vunpack.c.l.b16 %v608
      %v1397 = vunpack.c.l.b16 %v609
      %v1398 = vunpack.c.l.b16 %v610
      %v1399 = vunpack.c.l.b16 %v611
      %v1400 = vunpack.c.l.b16 %v612
      %v1401 = vunpack.c.l.b16 %v613
      %v1402 = vunpack.c.l.b16 %v614
      %v1403 = vunpack.c.l.b16 %v615
      %v1404 = vunpack.c.l.b16 %v616
      %v1405 = vunpack.c.l.b16 %v617
      %v1406 = vunpack.c.l.b16 %v618
      %v1407 = vunpack.c.l.b16 %v619
      %v1408 = vunpack.c.l.b16 %v620
      %v1409 = vpack.c.b16 %v1018, %v1017
      %v1410 = vpack.c.b16 %v1020, %v1019
      %v1411 = vpack.c.b16 %v1022, %v1021
      %v1412 = vpack.c.b16 %v1024, %v1023
      %v1413 = vpack.c.b16 %v1026, %v1025
      %v1414 = vpack.c.b16 %v1028, %v1027
      %v1415 = vpack.c.b16 %v1030, %v1029
      %v1416 = vpack.c.b16 %v1032, %v1031
      %v1417 = vpack.c.b16 %v1034, %v1033
      %v1418 = vpack.c.b16 %v1036, %v1035
      %v1419 = vpack.c.b16 %v1038, %v1037
      %v1420 = vpack.c.b16 %v1040, %v1039
      %v1421 = vpack.c.b16 %v1042, %v1041
      %v1422 = vpack.c.b16 %v1044, %v1043
      %v1423 = vpack.c.b16 %v1046, %v1045
      %v1424 = vpack.c.b16 %v1048, %v1047
      %v1425 = vpack.c.b16 %v1050, %v1049
      %v1426 = vpack.c.b16 %v1052, %v1051
      %v1427 = vpack.c.b16 %v1054, %v1053
      %v1428 = vpack.c.b16 %v1056, %v1055
      %v1429 = vpack.c.b16 %v1058, %v1057
      %v1430 = vpack.c.b16 %v1060, %v1059
      %v1431 = vpack.c.b16 %v1062, %v1061
      %v1432 = vpack.c.b16 %v1064, %v1063
      %v1433 = vpack.c.b16 %v1066, %v1065
      %v1434 = vpack.c.b16 %v1068, %v1067
      %v1435 = vpack.c.b16 %v1070, %v1069
      %v1436 = vpack.c.b16 %v1072, %v1071
      %v1437 = vpack.c.b16 %v1074, %v1073
      %v1438 = vpack.c.b16 %v1076, %v1075
      %v1439 = vpack.c.b16 %v1078, %v1077
      %v1440 = vpack.c.b16 %v1080, %v1079
      %v1441 = vpack.c.b16 %v1082, %v1081
      %v1442 = vpack.c.b16 %v1084, %v1083
      %v1443 = vpack.c.b16 %v1086, %v1085
      %v1444 = vpack.c.b16 %v1088, %v1087
      %v1445 = vpack.c.b16 %v1090, %v1089
      %v1446 = vpack.c.b16 %v1092, %v1091
      %v1447 = vpack.c.b16 %v1094, %v1093
      %v1448 = vpack.c.b16 %v1096, %v1095
      %v1449 = vpack.c.b16 %v1098, %v1097
      %v1450 = vpack.c.b16 %v1100, %v1099
      %v1451 = vpack.c.b16 %v1102, %v1101
      %v1452 = vpack.c.b16 %v1104, %v1103
      %v1453 = vpack.c.b16 %v1106, %v1105
      %v1454 = vpack.c.b16 %v1108, %v1107
      %v1455 = vpack.c.b16 %v1110, %v1109
      %v1456 = vpack.c.b16 %v1112, %v1111
      %v1457 = vpack.c.b16 %v1114, %v1113
      %v1458 = vpack.c.b16 %v1116, %v1115
      %v1459 = vpack.c.b16 %v1118, %v1117
      %v1460 = vpack.c.b16 %v1120, %v1119
      %v1461 = vpack.c.b16 %v1122, %v1121
      %v1462 = vpack.c.b16 %v1124, %v1123
      %v1463 = vpack.c.b16 %v1126, %v1125
      %v1464 = vpack.c.b16 %v1128, %v1127
      %v1465 = vpack.c.b16 %v1130, %v1129
      %v1466 = vpack.c.b16 %v1132, %v1131
      %v1467 = vpack.c.b16 %v1134, %v1133
      %v1468 = vpack.c.b16 %v1136, %v1135
      %v1469 = vpack.c.b16 %v1138, %v1137
      %v1470 = vpack.c.b16 %v1140, %v1139
      %v1471 = vpack.c.b16 %v1142, %v1141
      %v1472 = vpack.c.b16 %v1144, %v1143
      %v1473 = vpack.c.b16 %v1146, %v1145
      %v1474 = vpack.c.b16 %v1148, %v1147
      %v1475 = vpack.c.b16 %v1150, %v1149
      %v1476 = vpack.c.b16 %v1152, %v1151
      %v1477 = vpack.c.b16 %v1154, %v1153
      %v1478 = vpack.c.b16 %v1156, %v1155
      %v1479 = vpack.c.b16 %v1158, %v1157
      %v1480 = vpack.c.b16 %v1160, %v1159
      %v1481 = vpack.c.b16 %v1162, %v1161
      %v1482 = vpack.c.b16 %v1164, %v1163
      %v1483 = vpack.c.b16 %v1166, %v1165
      %v1484 = vpack.c.b16 %v1168, %v1167
      %v1485 = vpack.c.b16 %v1170, %v1169
      %v1486 = vpack.c.b16 %v1172, %v1171
      %v1487 = vpack.c.b16 %v1174, %v1173
      %v1488 = vpack.c.b16 %v1176, %v1175
      %v1489 = vpack.c.b16 %v1178, %v1177
      %v1490 = vpack.c.b16 %v1180, %v1179
      %v1491 = vpack.c.b16 %v1182, %v1181
      %v1492 = vpack.c.b16 %v1184, %v1183
      %v1493 = vpack.c.b16 %v1186, %v1185
      %v1494 = vpack.c.b16 %v1188, %v1187
      %v1495 = vpack.c.b16 %v1190, %v1189
      %v1496 = vpack.c.b16 %v1192, %v1191
      %v1497 = vpack.c.b16 %v1194, %v1193
      %v1498 = vpack.c.b16 %v1196, %v1195
      %v1499 = vpack.c.b16 %v1198, %v1197
      %v1500 = vpack.c.b16 %v1200, %v1199
      %v1501 = vpack.c.b16 %v1202, %v1201
      %v1502 = vpack.c.b16 %v1204, %v1203
      %v1503 = vpack.c.b16 %v1206, %v1205
      %v1504 = vpack.c.b16 %v1208, %v1207
      %v1505 = vpack.c.b16 %v1210, %v1209
      %v1506 = vpack.c.b16 %v1212, %v1211
      %v1507 = vpack.c.b16 %v1214, %v1213
      %v1508 = vpack.c.b16 %v1216, %v1215
      %v1509 = vpack.c.b16 %v1218, %v1217
      %v1510 = vpack.c.b16 %v1220, %v1219
      %v1511 = vpack.c.b16 %v1222, %v1221
      %v1512 = vpack.c.b16 %v1224, %v1223
      %v1513 = vpack.c.b16 %v1226, %v1225
      %v1514 = vpack.c.b16 %v1228, %v1227
      %v1515 = vpack.c.b16 %v1230, %v1229
      %v1516 = vpack.c.b16 %v1232, %v1231
      %v1517 = vpack.c.b16 %v1234, %v1233
      %v1518 = vpack.c.b16 %v1236, %v1235
      %v1519 = vpack.c.b16 %v1238, %v1237
      %v1520 = vpack.c.b16 %v1240, %v1239
      %v1521 = vpack.c.b16 %v1242, %v1241
      %v1522 = vpack.c.b16 %v1244, %v1243
      %v1523 = vpack.c.b16 %v1246, %v1245
      %v1524 = vpack.c.b16 %v1248, %v1247
      %v1525 = vpack.c.b16 %v1250, %v1249
      %v1526 = vpack.c.b16 %v1252, %v1251
      %v1527 = vpack.c.b16 %v1254, %v1253
      %v1528 = vpack.c.b16 %v1256, %v1255
      %v1529 = vpack.c.b16 %v1258, %v1257
      %v1530 = vpack.c.b16 %v1260, %v1259
      %v1531 = vpack.c.b16 %v1262, %v1261
      %v1532 = vpack.c.b16 %v1264, %v1263
      %v1533 = vpack.c.b16 %v1266, %v1265
      %v1534 = vpack.c.b16 %v1268, %v1267
      %v1535 = vpack.c.b16 %v1270, %v1269
      %v1536 = vpack.c.b16 %v1272, %v1271
      %v1537 = vpack.c.b16 %v1274, %v1273
      %v1538 = vpack.c.b16 %v1276, %v1275
      %v1539 = vpack.c.b16 %v1278, %v1277
      %v1540 = vpack.c.b16 %v1280, %v1279
      %v1541 = vpack.c.b16 %v1282, %v1281
      %v1542 = vpack.c.b16 %v1284, %v1283
      %v1543 = vpack.c.b16 %v1286, %v1285
      %v1544 = vpack.c.b16 %v1288, %v1287
      %v1545 = vpack.c.b16 %v1290, %v1289
      %v1546 = vpack.c.b16 %v1292, %v1291
      %v1547 = vpack.c.b16 %v1294, %v1293
      %v1548 = vpack.c.b16 %v1296, %v1295
      %v1549 = vpack.c.b16 %v1298, %v1297
      %v1550 = vpack.c.b16 %v1300, %v1299
      %v1551 = vpack.c.b16 %v1302, %v1301
      %v1552 = vpack.c.b16 %v1304, %v1303
      %v1553 = vpack.c.b16 %v1306, %v1305
      %v1554 = vpack.c.b16 %v1308, %v1307
      %v1555 = vpack.c.b16 %v1310, %v1309
      %v1556 = vpack.c.b16 %v1312, %v1311
      %v1557 = vpack.c.b16 %v1314, %v1313
      %v1558 = vpack.c.b16 %v1316, %v1315
      %v1559 = vpack.c.b16 %v1318, %v1317
      %v1560 = vpack.c.b16 %v1320, %v1319
      %v1561 = vpack.c.b16 %v1322, %v1321
      %v1562 = vpack.c.b16 %v1324, %v1323
      %v1563 = vpack.c.b16 %v1326, %v1325
      %v1564 = vpack.c.b16 %v1328, %v1327
      %v1565 = vpack.c.b16 %v1330, %v1329
      %v1566 = vpack.c.b16 %v1332, %v1331
      %v1567 = vpack.c.b16 %v1334, %v1333
      %v1568 = vpack.c.b16 %v1336, %v1335
      %v1569 = vpack.c.b16 %v1338, %v1337
      %v1570 = vpack.c.b16 %v1340, %v1339
      %v1571 = vpack.c.b16 %v1342, %v1341
      %v1572 = vpack.c.b16 %v1344, %v1343
      %v1573 = vpack.c.b16 %v1346, %v1345
      %v1574 = vpack.c.b16 %v1348, %v1347
      %v1575 = vpack.c.b16 %v1350, %v1349
      %v1576 = vpack.c.b16 %v1352, %v1351
      %v1577 = vpack.c.b16 %v1354, %v1353
      %v1578 = vpack.c.b16 %v1356, %v1355
      %v1579 = vpack.c.b16 %v1358, %v1357
      %v1580 = vpack.c.b16 %v1360, %v1359
      %v1581 = vpack.c.b16 %v1362, %v1361
      %v1582 = vpack.c.b16 %v1364, %v1363
      %v1583 = vpack.c.b16 %v1366, %v1365
      %v1584 = vpack.c.b16 %v1368, %v1367
      %v1585 = vpack.c.b16 %v1370, %v1369
      %v1586 = vpack.c.b16 %v1372, %v1371
      %v1587 = vpack.c.b16 %v1374, %v1373
      %v1588 = vpack.c.b16 %v1376, %v1375
      %v1589 = vpack.c.b16 %v1378, %v1377
      %v1590 = vpack.c.b16 %v1380, %v1379
      %v1591 = vpack.c.b16 %v1382, %v1381
      %v1592 = vpack.c.b16 %v1384, %v1383
      %v1593 = vpack.c.b16 %v1386, %v1385
      %v1594 = vpack.c.b16 %v1388, %v1387
      %v1595 = vpack.c.b16 %v1390, %v1389
      %v1596 = vpack.c.b16 %v1392, %v1391
      %v1597 = vpack.c.b16 %v1394, %v1393
      %v1598 = vpack.c.b16 %v1396, %v1395
      %v1599 = vpack.c.b16 %v1398, %v1397
      %v1600 = vpack.c.b16 %v1400, %v1399
      %v1601 = vpack.c.b16 %v1402, %v1401
      %v1602 = vpack.c.b16 %v1404, %v1403
      %v1603 = vpack.c.b16 %v1406, %v1405
      %v1604 = vpack.c.b16 %v1408, %v1407
      %v1609 = vunpack.c.l.b16 %v621
      %v1610 = vunpack.c.l.b16 %v622
      %v1611 = vunpack.c.l.b16 %v623
      %v1612 = vunpack.c.l.b16 %v624
      %v1613 = vpack.c.b16 %v1610, %v1609
      %v1614 = vpack.c.b16 %v1612, %v1611
      %vm1617 = vcmask 261120
      %v1619 = vsel %vm1617, %v1409, 0
      %v1622 = vsel %vm1617, %v1410, 0
      %v1625 = vsel %vm1617, %v1411, 0
      %v1628 = vsel %vm1617, %v1412, 0
      %v1631 = vsel %vm1617, %v1413, 0
      %v1634 = vsel %vm1617, %v1414, 0
      %v1637 = vsel %vm1617, %v1415, 0
      %v1640 = vsel %vm1617, %v1416, 0
      %v1643 = vsel %vm1617, %v1417, 0
      %v1646 = vsel %vm1617, %v1418, 0
      %v1649 = vsel %vm1617, %v1419, 0
      %v1652 = vsel %vm1617, %v1420, 0
      %v1655 = vsel %vm1617, %v1421, 0
      %v1658 = vsel %vm1617, %v1422, 0
      %v1661 = vsel %vm1617, %v1423, 0
      %v1664 = vsel %vm1617, %v1424, 0
      %v1667 = vsel %vm1617, %v1425, 0
      %v1670 = vsel %vm1617, %v1426, 0
      %v1673 = vsel %vm1617, %v1427, 0
      %v1676 = vsel %vm1617, %v1428, 0
      %v1679 = vsel %vm1617, %v1429, 0
      %v1682 = vsel %vm1617, %v1430, 0
      %v1685 = vsel %vm1617, %v1431, 0
      %v1688 = vsel %vm1617, %v1432, 0
      %v1691 = vsel %vm1617, %v1433, 0
      %v1694 = vsel %vm1617, %v1434, 0
      %v1697 = vsel %vm1617, %v1435, 0
      %v1700 = vsel %vm1617, %v1436, 0
      %v1703 = vsel %vm1617, %v1437, 0
      %v1706 = vsel %vm1617, %v1438, 0
      %v1709 = vsel %vm1617, %v1439, 0
      %v1712 = vsel %vm1617, %v1440, 0
      %v1715 = vsel %vm1617, %v1441, 0
      %v1718 = vsel %vm1617, %v1442, 0
      %v1721 = vsel %vm1617, %v1443, 0
      %v1724 = vsel %vm1617, %v1444, 0
      %v1727 = vsel %vm1617, %v1445, 0
      %v1730 = vsel %vm1617, %v1446, 0
      %v1733 = vsel %vm1617, %v1447, 0
      %v1736 = vsel %vm1617, %v1448, 0
      %v1739 = vsel %vm1617, %v1449, 0
      %v1742 = vsel %vm1617, %v1450, 0
      %v1745 = vsel %vm1617, %v1451, 0
      %v1748 = vsel %vm1617, %v1452, 0
      %v1751 = vsel %vm1617, %v1453, 0
      %v1754 = vsel %vm1617, %v1454, 0
      %v1757 = vsel %vm1617, %v1455, 0
      %v1760 = vsel %vm1617, %v1456, 0
      %v1763 = vsel %vm1617, %v1457, 0
      %v1766 = vsel %vm1617, %v1458, 0
      %v1769 = vsel %vm1617, %v1459, 0
      %v1772 = vsel %vm1617, %v1460, 0
      %v1775 = vsel %vm1617, %v1461, 0
      %v1778 = vsel %vm1617, %v1462, 0
      %v1781 = vsel %vm1617, %v1463, 0
      %v1784 = vsel %vm1617, %v1464, 0
      %v1787 = vsel %vm1617, %v1465, 0
      %v1790 = vsel %vm1617, %v1466, 0
      %v1793 = vsel %vm1617, %v1467, 0
      %v1796 = vsel %vm1617, %v1468, 0
      %v1799 = vsel %vm1617, %v1469, 0
      %v1802 = vsel %vm1617, %v1470, 0
      %v1805 = vsel %vm1617, %v1471, 0
      %v1808 = vsel %vm1617, %v1472, 0
      %v1811 = vsel %vm1617, %v1473, 0
      %v1814 = vsel %vm1617, %v1474, 0
      %v1817 = vsel %vm1617, %v1475, 0
      %v1820 = vsel %vm1617, %v1476, 0
      %v1823 = vsel %vm1617, %v1477, 0
      %v1826 = vsel %vm1617, %v1478, 0
      %v1829 = vsel %vm1617, %v1479, 0
      %v1832 = vsel %vm1617, %v1480, 0
      %v1835 = vsel %vm1617, %v1481, 0
      %v1838 = vsel %vm1617, %v1482, 0
      %v1841 = vsel %vm1617, %v1483, 0
      %v1844 = vsel %vm1617, %v1484, 0
      %v1847 = vsel %vm1617, %v1485, 0
      %v1850 = vsel %vm1617, %v1486, 0
      %v1853 = vsel %vm1617, %v1487, 0
      %v1856 = vsel %vm1617, %v1488, 0
      %v1859 = vsel %vm1617, %v1489, 0
      %v1862 = vsel %vm1617, %v1490, 0
      %v1865 = vsel %vm1617, %v1491, 0
      %v1868 = vsel %vm1617, %v1492, 0
      %v1871 = vsel %vm1617, %v1493, 0
      %v1874 = vsel %vm1617, %v1494, 0
      %v1877 = vsel %vm1617, %v1495, 0
      %v1880 = vsel %vm1617, %v1496, 0
      %v1883 = vsel %vm1617, %v1497, 0
      %v1886 = vsel %vm1617, %v1498, 0
      %v1889 = vsel %vm1617, %v1499, 0
      %v1892 = vsel %vm1617, %v1500, 0
      %v1895 = vsel %vm1617, %v1501, 0
      %v1898 = vsel %vm1617, %v1502, 0
      %v1901 = vsel %vm1617, %v1503, 0
      %v1904 = vsel %vm1617, %v1504, 0
      %v1907 = vsel %vm1617, %v1505, 0
      %v1910 = vsel %vm1617, %v1506, 0
      %v1913 = vsel %vm1617, %v1507, 0
      %v1916 = vsel %vm1617, %v1508, 0
      %v1919 = vsel %vm1617, %v1509, 0
      %v1922 = vsel %vm1617, %v1510, 0
      %v1925 = vsel %vm1617, %v1511, 0
      %v1928 = vsel %vm1617, %v1512, 0
      %v1931 = vsel %vm1617, %v1513, 0
      %v1934 = vsel %vm1617, %v1514, 0
      %v1937 = vsel %vm1617, %v1515, 0
      %v1940 = vsel %vm1617, %v1516, 0
      %v1943 = vsel %vm1617, %v1517, 0
      %v1946 = vsel %vm1617, %v1518, 0
      %v1949 = vsel %vm1617, %v1519, 0
      %v1952 = vsel %vm1617, %v1520, 0
      %v1955 = vsel %vm1617, %v1521, 0
      %v1958 = vsel %vm1617, %v1522, 0
      %v1961 = vsel %vm1617, %v1523, 0
      %v1964 = vsel %vm1617, %v1524, 0
      %v1967 = vsel %vm1617, %v1525, 0
      %v1970 = vsel %vm1617, %v1526, 0
      %v1973 = vsel %vm1617, %v1527, 0
      %v1976 = vsel %vm1617, %v1528, 0
      %v1979 = vsel %vm1617, %v1529, 0
      %v1982 = vsel %vm1617, %v1530, 0
      %v1985 = vsel %vm1617, %v1531, 0
      %v1988 = vsel %vm1617, %v1532, 0
      %v1991 = vsel %vm1617, %v1533, 0
      %v1994 = vsel %vm1617, %v1534, 0
      %v1997 = vsel %vm1617, %v1535, 0
      %v2000 = vsel %vm1617, %v1536, 0
      %v2003 = vsel %vm1617, %v1537, 0
      %v2006 = vsel %vm1617, %v1538, 0
      %v2009 = vsel %vm1617, %v1539, 0
      %v2012 = vsel %vm1617, %v1540, 0
      %v2015 = vsel %vm1617, %v1541, 0
      %v2018 = vsel %vm1617, %v1542, 0
      %v2021 = vsel %vm1617, %v1543, 0
      %v2024 = vsel %vm1617, %v1544, 0
      %v2027 = vsel %vm1617, %v1545, 0
      %v2030 = vsel %vm1617, %v1546, 0
      %v2033 = vsel %vm1617, %v1547, 0
      %v2036 = vsel %vm1617, %v1548, 0
      %v2039 = vsel %vm1617, %v1549, 0
      %v2042 = vsel %vm1617, %v1550, 0
      %v2045 = vsel %vm1617, %v1551, 0
      %v2048 = vsel %vm1617, %v1552, 0
      %v2051 = vsel %vm1617, %v1553, 0
      %v2054 = vsel %vm1617, %v1554, 0
      %v2057 = vsel %vm1617, %v1555, 0
      %v2060 = vsel %vm1617, %v1556, 0
      %v2063 = vsel %vm1617, %v1557, 0
      %v2066 = vsel %vm1617, %v1558, 0
      %v2069 = vsel %vm1617, %v1559, 0
      %v2072 = vsel %vm1617, %v1560, 0
      %v2075 = vsel %vm1617, %v1561, 0
      %v2078 = vsel %vm1617, %v1562, 0
      %v2081 = vsel %vm1617, %v1563, 0
      %v2084 = vsel %vm1617, %v1564, 0
      %v2087 = vsel %vm1617, %v1565, 0
      %v2090 = vsel %vm1617, %v1566, 0
      %v2093 = vsel %vm1617, %v1567, 0
      %v2096 = vsel %vm1617, %v1568, 0
      %v2099 = vsel %vm1617, %v1569, 0
      %v2102 = vsel %vm1617, %v1570, 0
      %v2105 = vsel %vm1617, %v1571, 0
      %v2108 = vsel %vm1617, %v1572, 0
      %v2111 = vsel %vm1617, %v1573, 0
      %v2114 = vsel %vm1617, %v1574, 0
      %v2117 = vsel %vm1617, %v1575, 0
      %v2120 = vsel %vm1617, %v1576, 0
      %v2123 = vsel %vm1617, %v1577, 0
      %v2126 = vsel %vm1617, %v1578, 0
      %v2129 = vsel %vm1617, %v1579, 0
      %v2132 = vsel %vm1617, %v1580, 0
      %v2135 = vsel %vm1617, %v1581, 0
      %v2138 = vsel %vm1617, %v1582, 0
      %v2141 = vsel %vm1617, %v1583, 0
      %v2144 = vsel %vm1617, %v1584, 0
      %v2147 = vsel %vm1617, %v1585, 0
      %v2150 = vsel %vm1617, %v1586, 0
      %v2153 = vsel %vm1617, %v1587, 0
      %v2156 = vsel %vm1617, %v1588, 0
      %v2159 = vsel %vm1617, %v1589, 0
      %v2162 = vsel %vm1617, %v1590, 0
      %v2165 = vsel %vm1617, %v1591, 0
      %v2168 = vsel %vm1617, %v1592, 0
      %v2171 = vsel %vm1617, %v1593, 0
      %v2174 = vsel %vm1617, %v1594, 0
      %v2177 = vsel %vm1617, %v1595, 0
      %v2180 = vsel %vm1617, %v1596, 0
      %v2183 = vsel %vm1617, %v1597, 0
      %v2186 = vsel %vm1617, %v1598, 0
      %v2189 = vsel %vm1617, %v1599, 0
      %v2192 = vsel %vm1617, %v1600, 0
      %v2195 = vsel %vm1617, %v1601, 0
      %v2198 = vsel %vm1617, %v1602, 0
      %v2201 = vsel %vm1617, %v1603, 0
      %v2204 = vsel %vm1617, %v1604, 0
      %2206 = vmatprep.subr.bf16.mxu0 0
      %2207 = vmatpush1.bf16.msra.mxu0 0
      %2208 = vmatprep.subr.bf16.mxu0 0
      %2209 = vmatpush1.bf16.msra.mxu0 0
      %2210 = vmatprep.subr.bf16.mxu0 0
      %2211 = vmatpush1.bf16.msra.mxu0 0
      %2212 = vmatprep.subr.bf16.mxu0 0
      %2213 = vmatpush1.bf16.msra.mxu0 0
      %2214 = vmatprep.subr.bf16.mxu0 0
      %2215 = vmatpush1.bf16.msra.mxu0 0
      %2216 = vmatprep.subr.bf16.mxu0 0
      %2217 = vmatpush1.bf16.msra.mxu0 0
      %2218 = vmatprep.subr.bf16.mxu0 0
      %2219 = vmatpush1.bf16.msra.mxu0 %v1614
      %2220 = vmatprep.subr.bf16.mxu0 0
      %2221 = vmatpush1.bf16.msra.mxu0 %v1613
      %2222 = vmatprep.subr.bf16.mxu0 0
      %2223 = vmatpush2.bf16.msra.mxu0 0
      %2224 = vmatprep.subr.bf16.mxu0 0
      %2225 = vmatpush2.bf16.msra.mxu0 0
      %2226 = vmatprep.subr.bf16.mxu0 0
      %2227 = vmatpush2.bf16.msra.mxu0 0
      %2228 = vmatprep.subr.bf16.mxu0 0
      %2229 = vmatpush2.bf16.msra.mxu0 0
      %2230 = vmatprep.subr.bf16.mxu0 0
      %2231 = vmatpush2.bf16.msra.mxu0 0
      %2232 = vmatprep.subr.bf16.mxu0 0
      %2233 = vmatpush2.bf16.msra.mxu0 0
      %2234 = vmatprep.subr.bf16.mxu0 0
      %2235 = vmatpush2.bf16.msra.mxu0 0
      %2236 = vmatprep.subr.bf16.mxu0 0
      %2237 = vmatpush2.bf16.msra.mxu0 0
      %2238 = vmatprep.mubr.bf16.mxu0 0
      %2239 = vmatmul.mubr.bf16.gmra.mxu0 %v1619
      %v2240 = vpop.f32.mrf.mxu0
      %v2241 = vadd.f32 0.0, %v2240
      %v2242 = vpop.f32.mrf.mxu0
      %v2243 = vpop.f32.mrf.mxu0
      %v2244 = vadd.f32 0.0, %v2243
      %v2245 = vpop.f32.mrf.mxu0
      %2246 = vmatprep.mubr.bf16.mxu0 0
      %2247 = vmatmul.mubr.bf16.gmra.mxu0 %v1622
      %v2248 = vpop.f32.mrf.mxu0
      %v2249 = vadd.f32 0.0, %v2248
      %v2250 = vpop.f32.mrf.mxu0
      %v2251 = vpop.f32.mrf.mxu0
      %v2252 = vadd.f32 0.0, %v2251
      %v2253 = vpop.f32.mrf.mxu0
      %2254 = vmatprep.mubr.bf16.mxu0 0
      %2255 = vmatmul.mubr.bf16.gmra.mxu0 %v1625
      %v2256 = vpop.f32.mrf.mxu0
      %v2257 = vadd.f32 0.0, %v2256
      %v2258 = vpop.f32.mrf.mxu0
      %v2259 = vpop.f32.mrf.mxu0
      %v2260 = vadd.f32 0.0, %v2259
      %v2261 = vpop.f32.mrf.mxu0
      %2262 = vmatprep.mubr.bf16.mxu0 0
      %2263 = vmatmul.mubr.bf16.gmra.mxu0 %v1628
      %v2264 = vpop.f32.mrf.mxu0
      %v2265 = vadd.f32 0.0, %v2264
      %v2266 = vpop.f32.mrf.mxu0
      %v2267 = vpop.f32.mrf.mxu0
      %v2268 = vadd.f32 0.0, %v2267
      %v2269 = vpop.f32.mrf.mxu0
      %2270 = vmatprep.mubr.bf16.mxu0 0
      %2271 = vmatmul.mubr.bf16.gmra.mxu0 %v1631
      %v2272 = vpop.f32.mrf.mxu0
      %v2273 = vadd.f32 0.0, %v2272
      %v2274 = vpop.f32.mrf.mxu0
      %v2275 = vpop.f32.mrf.mxu0
      %v2276 = vadd.f32 0.0, %v2275
      %v2277 = vpop.f32.mrf.mxu0
      %2278 = vmatprep.mubr.bf16.mxu0 0
      %2279 = vmatmul.mubr.bf16.gmra.mxu0 %v1634
      %v2280 = vpop.f32.mrf.mxu0
      %v2281 = vadd.f32 0.0, %v2280
      %v2282 = vpop.f32.mrf.mxu0
      %v2283 = vpop.f32.mrf.mxu0
      %v2284 = vadd.f32 0.0, %v2283
      %v2285 = vpop.f32.mrf.mxu0
      %2286 = vmatprep.mubr.bf16.mxu0 0
      %2287 = vmatmul.mubr.bf16.gmra.mxu0 %v1637
      %v2288 = vpop.f32.mrf.mxu0
      %v2289 = vadd.f32 0.0, %v2288
      %v2290 = vpop.f32.mrf.mxu0
      %v2291 = vpop.f32.mrf.mxu0
      %v2292 = vadd.f32 0.0, %v2291
      %v2293 = vpop.f32.mrf.mxu0
      %2294 = vmatprep.mubr.bf16.mxu0 0
      %2295 = vmatmul.mubr.bf16.gmra.mxu0 %v1640
      %v2296 = vpop.f32.mrf.mxu0
      %v2297 = vadd.f32 0.0, %v2296
      %v2298 = vpop.f32.mrf.mxu0
      %v2299 = vpop.f32.mrf.mxu0
      %v2300 = vadd.f32 0.0, %v2299
      %v2301 = vpop.f32.mrf.mxu0
      %2302 = vmatprep.mubr.bf16.mxu0 0
      %2303 = vmatmul.mubr.bf16.gmra.mxu0 %v1643
      %v2304 = vpop.f32.mrf.mxu0
      %v2305 = vadd.f32 0.0, %v2304
      %v2306 = vpop.f32.mrf.mxu0
      %v2307 = vpop.f32.mrf.mxu0
      %v2308 = vadd.f32 0.0, %v2307
      %v2309 = vpop.f32.mrf.mxu0
      %2310 = vmatprep.mubr.bf16.mxu0 0
      %2311 = vmatmul.mubr.bf16.gmra.mxu0 %v1646
      %v2312 = vpop.f32.mrf.mxu0
      %v2313 = vadd.f32 0.0, %v2312
      %v2314 = vpop.f32.mrf.mxu0
      %v2315 = vpop.f32.mrf.mxu0
      %v2316 = vadd.f32 0.0, %v2315
      %v2317 = vpop.f32.mrf.mxu0
      %2318 = vmatprep.mubr.bf16.mxu0 0
      %2319 = vmatmul.mubr.bf16.gmra.mxu0 %v1649
      %v2320 = vpop.f32.mrf.mxu0
      %v2321 = vadd.f32 0.0, %v2320
      %v2322 = vpop.f32.mrf.mxu0
      %v2323 = vpop.f32.mrf.mxu0
      %v2324 = vadd.f32 0.0, %v2323
      %v2325 = vpop.f32.mrf.mxu0
      %2326 = vmatprep.mubr.bf16.mxu0 0
      %2327 = vmatmul.mubr.bf16.gmra.mxu0 %v1652
      %v2328 = vpop.f32.mrf.mxu0
      %v2329 = vadd.f32 0.0, %v2328
      %v2330 = vpop.f32.mrf.mxu0
      %v2331 = vpop.f32.mrf.mxu0
      %v2332 = vadd.f32 0.0, %v2331
      %v2333 = vpop.f32.mrf.mxu0
      %2334 = vmatprep.mubr.bf16.mxu0 0
      %2335 = vmatmul.mubr.bf16.gmra.mxu0 %v1655
      %v2336 = vpop.f32.mrf.mxu0
      %v2337 = vadd.f32 0.0, %v2336
      %v2338 = vpop.f32.mrf.mxu0
      %v2339 = vpop.f32.mrf.mxu0
      %v2340 = vadd.f32 0.0, %v2339
      %v2341 = vpop.f32.mrf.mxu0
      %2342 = vmatprep.mubr.bf16.mxu0 0
      %2343 = vmatmul.mubr.bf16.gmra.mxu0 %v1658
      %v2344 = vpop.f32.mrf.mxu0
      %v2345 = vadd.f32 0.0, %v2344
      %v2346 = vpop.f32.mrf.mxu0
      %v2347 = vpop.f32.mrf.mxu0
      %v2348 = vadd.f32 0.0, %v2347
      %v2349 = vpop.f32.mrf.mxu0
      %2350 = vmatprep.mubr.bf16.mxu0 0
      %2351 = vmatmul.mubr.bf16.gmra.mxu0 %v1661
      %v2352 = vpop.f32.mrf.mxu0
      %v2353 = vadd.f32 0.0, %v2352
      %v2354 = vpop.f32.mrf.mxu0
      %v2355 = vpop.f32.mrf.mxu0
      %v2356 = vadd.f32 0.0, %v2355
      %v2357 = vpop.f32.mrf.mxu0
      %2358 = vmatprep.mubr.bf16.mxu0 0
      %2359 = vmatmul.mubr.bf16.gmra.mxu0 %v1664
      %v2360 = vpop.f32.mrf.mxu0
      %v2361 = vadd.f32 0.0, %v2360
      %v2362 = vpop.f32.mrf.mxu0
      %v2363 = vpop.f32.mrf.mxu0
      %v2364 = vadd.f32 0.0, %v2363
      %v2365 = vpop.f32.mrf.mxu0
      %2366 = vmatprep.mubr.bf16.mxu0 0
      %2367 = vmatmul.mubr.bf16.gmra.mxu0 %v1667
      %v2368 = vpop.f32.mrf.mxu0
      %v2369 = vadd.f32 0.0, %v2368
      %v2370 = vpop.f32.mrf.mxu0
      %v2371 = vpop.f32.mrf.mxu0
      %v2372 = vadd.f32 0.0, %v2371
      %v2373 = vpop.f32.mrf.mxu0
      %2374 = vmatprep.mubr.bf16.mxu0 0
      %2375 = vmatmul.mubr.bf16.gmra.mxu0 %v1670
      %v2376 = vpop.f32.mrf.mxu0
      %v2377 = vadd.f32 0.0, %v2376
      %v2378 = vpop.f32.mrf.mxu0
      %v2379 = vpop.f32.mrf.mxu0
      %v2380 = vadd.f32 0.0, %v2379
      %v2381 = vpop.f32.mrf.mxu0
      %2382 = vmatprep.mubr.bf16.mxu0 0
      %2383 = vmatmul.mubr.bf16.gmra.mxu0 %v1673
      %v2384 = vpop.f32.mrf.mxu0
      %v2385 = vadd.f32 0.0, %v2384
      %v2386 = vpop.f32.mrf.mxu0
      %v2387 = vpop.f32.mrf.mxu0
      %v2388 = vadd.f32 0.0, %v2387
      %v2389 = vpop.f32.mrf.mxu0
      %2390 = vmatprep.mubr.bf16.mxu0 0
      %2391 = vmatmul.mubr.bf16.gmra.mxu0 %v1676
      %v2392 = vpop.f32.mrf.mxu0
      %v2393 = vadd.f32 0.0, %v2392
      %v2394 = vpop.f32.mrf.mxu0
      %v2395 = vpop.f32.mrf.mxu0
      %v2396 = vadd.f32 0.0, %v2395
      %v2397 = vpop.f32.mrf.mxu0
      %2398 = vmatprep.mubr.bf16.mxu0 0
      %2399 = vmatmul.mubr.bf16.gmra.mxu0 %v1679
      %v2400 = vpop.f32.mrf.mxu0
      %v2401 = vadd.f32 0.0, %v2400
      %v2402 = vpop.f32.mrf.mxu0
      %v2403 = vpop.f32.mrf.mxu0
      %v2404 = vadd.f32 0.0, %v2403
      %v2405 = vpop.f32.mrf.mxu0
      %2406 = vmatprep.mubr.bf16.mxu0 0
      %2407 = vmatmul.mubr.bf16.gmra.mxu0 %v1682
      %v2408 = vpop.f32.mrf.mxu0
      %v2409 = vadd.f32 0.0, %v2408
      %v2410 = vpop.f32.mrf.mxu0
      %v2411 = vpop.f32.mrf.mxu0
      %v2412 = vadd.f32 0.0, %v2411
      %v2413 = vpop.f32.mrf.mxu0
      %2414 = vmatprep.mubr.bf16.mxu0 0
      %2415 = vmatmul.mubr.bf16.gmra.mxu0 %v1685
      %v2416 = vpop.f32.mrf.mxu0
      %v2417 = vadd.f32 0.0, %v2416
      %v2418 = vpop.f32.mrf.mxu0
      %v2419 = vpop.f32.mrf.mxu0
      %v2420 = vadd.f32 0.0, %v2419
      %v2421 = vpop.f32.mrf.mxu0
      %2422 = vmatprep.mubr.bf16.mxu0 0
      %2423 = vmatmul.mubr.bf16.gmra.mxu0 %v1688
      %v2424 = vpop.f32.mrf.mxu0
      %v2425 = vadd.f32 0.0, %v2424
      %v2426 = vpop.f32.mrf.mxu0
      %v2427 = vpop.f32.mrf.mxu0
      %v2428 = vadd.f32 0.0, %v2427
      %v2429 = vpop.f32.mrf.mxu0
      %2430 = vmatprep.mubr.bf16.mxu0 0
      %2431 = vmatmul.mubr.bf16.gmra.mxu0 %v1691
      %v2432 = vpop.f32.mrf.mxu0
      %v2433 = vadd.f32 0.0, %v2432
      %v2434 = vpop.f32.mrf.mxu0
      %v2435 = vpop.f32.mrf.mxu0
      %v2436 = vadd.f32 0.0, %v2435
      %v2437 = vpop.f32.mrf.mxu0
      %2438 = vmatprep.mubr.bf16.mxu0 0
      %2439 = vmatmul.mubr.bf16.gmra.mxu0 %v1694
      %v2440 = vpop.f32.mrf.mxu0
      %v2441 = vadd.f32 0.0, %v2440
      %v2442 = vpop.f32.mrf.mxu0
      %v2443 = vpop.f32.mrf.mxu0
      %v2444 = vadd.f32 0.0, %v2443
      %v2445 = vpop.f32.mrf.mxu0
      %2446 = vmatprep.mubr.bf16.mxu0 0
      %2447 = vmatmul.mubr.bf16.gmra.mxu0 %v1697
      %v2448 = vpop.f32.mrf.mxu0
      %v2449 = vadd.f32 0.0, %v2448
      %v2450 = vpop.f32.mrf.mxu0
      %v2451 = vpop.f32.mrf.mxu0
      %v2452 = vadd.f32 0.0, %v2451
      %v2453 = vpop.f32.mrf.mxu0
      %2454 = vmatprep.mubr.bf16.mxu0 0
      %2455 = vmatmul.mubr.bf16.gmra.mxu0 %v1700
      %v2456 = vpop.f32.mrf.mxu0
      %v2457 = vadd.f32 0.0, %v2456
      %v2458 = vpop.f32.mrf.mxu0
      %v2459 = vpop.f32.mrf.mxu0
      %v2460 = vadd.f32 0.0, %v2459
      %v2461 = vpop.f32.mrf.mxu0
      %2462 = vmatprep.mubr.bf16.mxu0 0
      %2463 = vmatmul.mubr.bf16.gmra.mxu0 %v1703
      %v2464 = vpop.f32.mrf.mxu0
      %v2465 = vadd.f32 0.0, %v2464
      %v2466 = vpop.f32.mrf.mxu0
      %v2467 = vpop.f32.mrf.mxu0
      %v2468 = vadd.f32 0.0, %v2467
      %v2469 = vpop.f32.mrf.mxu0
      %2470 = vmatprep.mubr.bf16.mxu0 0
      %2471 = vmatmul.mubr.bf16.gmra.mxu0 %v1706
      %v2472 = vpop.f32.mrf.mxu0
      %v2473 = vadd.f32 0.0, %v2472
      %v2474 = vpop.f32.mrf.mxu0
      %v2475 = vpop.f32.mrf.mxu0
      %v2476 = vadd.f32 0.0, %v2475
      %v2477 = vpop.f32.mrf.mxu0
      %2478 = vmatprep.mubr.bf16.mxu0 0
      %2479 = vmatmul.mubr.bf16.gmra.mxu0 %v1709
      %v2480 = vpop.f32.mrf.mxu0
      %v2481 = vadd.f32 0.0, %v2480
      %v2482 = vpop.f32.mrf.mxu0
      %v2483 = vpop.f32.mrf.mxu0
      %v2484 = vadd.f32 0.0, %v2483
      %v2485 = vpop.f32.mrf.mxu0
      %2486 = vmatprep.mubr.bf16.mxu0 0
      %2487 = vmatmul.mubr.bf16.gmra.mxu0 %v1712
      %v2488 = vpop.f32.mrf.mxu0
      %v2489 = vadd.f32 0.0, %v2488
      %v2490 = vpop.f32.mrf.mxu0
      %v2491 = vpop.f32.mrf.mxu0
      %v2492 = vadd.f32 0.0, %v2491
      %v2493 = vpop.f32.mrf.mxu0
      %2494 = vmatprep.mubr.bf16.mxu0 0
      %2495 = vmatmul.mubr.bf16.gmra.mxu0 %v1715
      %v2496 = vpop.f32.mrf.mxu0
      %v2497 = vadd.f32 0.0, %v2496
      %v2498 = vpop.f32.mrf.mxu0
      %v2499 = vpop.f32.mrf.mxu0
      %v2500 = vadd.f32 0.0, %v2499
      %v2501 = vpop.f32.mrf.mxu0
      %2502 = vmatprep.mubr.bf16.mxu0 0
      %2503 = vmatmul.mubr.bf16.gmra.mxu0 %v1718
      %v2504 = vpop.f32.mrf.mxu0
      %v2505 = vadd.f32 0.0, %v2504
      %v2506 = vpop.f32.mrf.mxu0
      %v2507 = vpop.f32.mrf.mxu0
      %v2508 = vadd.f32 0.0, %v2507
      %v2509 = vpop.f32.mrf.mxu0
      %2510 = vmatprep.mubr.bf16.mxu0 0
      %2511 = vmatmul.mubr.bf16.gmra.mxu0 %v1721
      %v2512 = vpop.f32.mrf.mxu0
      %v2513 = vadd.f32 0.0, %v2512
      %v2514 = vpop.f32.mrf.mxu0
      %v2515 = vpop.f32.mrf.mxu0
      %v2516 = vadd.f32 0.0, %v2515
      %v2517 = vpop.f32.mrf.mxu0
      %2518 = vmatprep.mubr.bf16.mxu0 0
      %2519 = vmatmul.mubr.bf16.gmra.mxu0 %v1724
      %v2520 = vpop.f32.mrf.mxu0
      %v2521 = vadd.f32 0.0, %v2520
      %v2522 = vpop.f32.mrf.mxu0
      %v2523 = vpop.f32.mrf.mxu0
      %v2524 = vadd.f32 0.0, %v2523
      %v2525 = vpop.f32.mrf.mxu0
      %2526 = vmatprep.mubr.bf16.mxu0 0
      %2527 = vmatmul.mubr.bf16.gmra.mxu0 %v1727
      %v2528 = vpop.f32.mrf.mxu0
      %v2529 = vadd.f32 0.0, %v2528
      %v2530 = vpop.f32.mrf.mxu0
      %v2531 = vpop.f32.mrf.mxu0
      %v2532 = vadd.f32 0.0, %v2531
      %v2533 = vpop.f32.mrf.mxu0
      %2534 = vmatprep.mubr.bf16.mxu0 0
      %2535 = vmatmul.mubr.bf16.gmra.mxu0 %v1730
      %v2536 = vpop.f32.mrf.mxu0
      %v2537 = vadd.f32 0.0, %v2536
      %v2538 = vpop.f32.mrf.mxu0
      %v2539 = vpop.f32.mrf.mxu0
      %v2540 = vadd.f32 0.0, %v2539
      %v2541 = vpop.f32.mrf.mxu0
      %2542 = vmatprep.mubr.bf16.mxu0 0
      %2543 = vmatmul.mubr.bf16.gmra.mxu0 %v1733
      %v2544 = vpop.f32.mrf.mxu0
      %v2545 = vadd.f32 0.0, %v2544
      %v2546 = vpop.f32.mrf.mxu0
      %v2547 = vpop.f32.mrf.mxu0
      %v2548 = vadd.f32 0.0, %v2547
      %v2549 = vpop.f32.mrf.mxu0
      %2550 = vmatprep.mubr.bf16.mxu0 0
      %2551 = vmatmul.mubr.bf16.gmra.mxu0 %v1736
      %v2552 = vpop.f32.mrf.mxu0
      %v2553 = vadd.f32 0.0, %v2552
      %v2554 = vpop.f32.mrf.mxu0
      %v2555 = vpop.f32.mrf.mxu0
      %v2556 = vadd.f32 0.0, %v2555
      %v2557 = vpop.f32.mrf.mxu0
      %2558 = vmatprep.mubr.bf16.mxu0 0
      %2559 = vmatmul.mubr.bf16.gmra.mxu0 %v1739
      %v2560 = vpop.f32.mrf.mxu0
      %v2561 = vadd.f32 0.0, %v2560
      %v2562 = vpop.f32.mrf.mxu0
      %v2563 = vpop.f32.mrf.mxu0
      %v2564 = vadd.f32 0.0, %v2563
      %v2565 = vpop.f32.mrf.mxu0
      %2566 = vmatprep.mubr.bf16.mxu0 0
      %2567 = vmatmul.mubr.bf16.gmra.mxu0 %v1742
      %v2568 = vpop.f32.mrf.mxu0
      %v2569 = vadd.f32 0.0, %v2568
      %v2570 = vpop.f32.mrf.mxu0
      %v2571 = vpop.f32.mrf.mxu0
      %v2572 = vadd.f32 0.0, %v2571
      %v2573 = vpop.f32.mrf.mxu0
      %2574 = vmatprep.mubr.bf16.mxu0 0
      %2575 = vmatmul.mubr.bf16.gmra.mxu0 %v1745
      %v2576 = vpop.f32.mrf.mxu0
      %v2577 = vadd.f32 0.0, %v2576
      %v2578 = vpop.f32.mrf.mxu0
      %v2579 = vpop.f32.mrf.mxu0
      %v2580 = vadd.f32 0.0, %v2579
      %v2581 = vpop.f32.mrf.mxu0
      %2582 = vmatprep.mubr.bf16.mxu0 0
      %2583 = vmatmul.mubr.bf16.gmra.mxu0 %v1748
      %v2584 = vpop.f32.mrf.mxu0
      %v2585 = vadd.f32 0.0, %v2584
      %v2586 = vpop.f32.mrf.mxu0
      %v2587 = vpop.f32.mrf.mxu0
      %v2588 = vadd.f32 0.0, %v2587
      %v2589 = vpop.f32.mrf.mxu0
      %2590 = vmatprep.mubr.bf16.mxu0 0
      %2591 = vmatmul.mubr.bf16.gmra.mxu0 %v1751
      %v2592 = vpop.f32.mrf.mxu0
      %v2593 = vadd.f32 0.0, %v2592
      %v2594 = vpop.f32.mrf.mxu0
      %v2595 = vpop.f32.mrf.mxu0
      %v2596 = vadd.f32 0.0, %v2595
      %v2597 = vpop.f32.mrf.mxu0
      %2598 = vmatprep.mubr.bf16.mxu0 0
      %2599 = vmatmul.mubr.bf16.gmra.mxu0 %v1754
      %v2600 = vpop.f32.mrf.mxu0
      %v2601 = vadd.f32 0.0, %v2600
      %v2602 = vpop.f32.mrf.mxu0
      %v2603 = vpop.f32.mrf.mxu0
      %v2604 = vadd.f32 0.0, %v2603
      %v2605 = vpop.f32.mrf.mxu0
      %2606 = vmatprep.mubr.bf16.mxu0 0
      %2607 = vmatmul.mubr.bf16.gmra.mxu0 %v1757
      %v2608 = vpop.f32.mrf.mxu0
      %v2609 = vadd.f32 0.0, %v2608
      %v2610 = vpop.f32.mrf.mxu0
      %v2611 = vpop.f32.mrf.mxu0
      %v2612 = vadd.f32 0.0, %v2611
      %v2613 = vpop.f32.mrf.mxu0
      %2614 = vmatprep.mubr.bf16.mxu0 0
      %2615 = vmatmul.mubr.bf16.gmra.mxu0 %v1760
      %v2616 = vpop.f32.mrf.mxu0
      %v2617 = vadd.f32 0.0, %v2616
      %v2618 = vpop.f32.mrf.mxu0
      %v2619 = vpop.f32.mrf.mxu0
      %v2620 = vadd.f32 0.0, %v2619
      %v2621 = vpop.f32.mrf.mxu0
      %2622 = vmatprep.mubr.bf16.mxu0 0
      %2623 = vmatmul.mubr.bf16.gmra.mxu0 %v1763
      %v2624 = vpop.f32.mrf.mxu0
      %v2625 = vadd.f32 0.0, %v2624
      %v2626 = vpop.f32.mrf.mxu0
      %v2627 = vpop.f32.mrf.mxu0
      %v2628 = vadd.f32 0.0, %v2627
      %v2629 = vpop.f32.mrf.mxu0
      %2630 = vmatprep.mubr.bf16.mxu0 0
      %2631 = vmatmul.mubr.bf16.gmra.mxu0 %v1766
      %v2632 = vpop.f32.mrf.mxu0
      %v2633 = vadd.f32 0.0, %v2632
      %v2634 = vpop.f32.mrf.mxu0
      %v2635 = vpop.f32.mrf.mxu0
      %v2636 = vadd.f32 0.0, %v2635
      %v2637 = vpop.f32.mrf.mxu0
      %2638 = vmatprep.mubr.bf16.mxu0 0
      %2639 = vmatmul.mubr.bf16.gmra.mxu0 %v1769
      %v2640 = vpop.f32.mrf.mxu0
      %v2641 = vadd.f32 0.0, %v2640
      %v2642 = vpop.f32.mrf.mxu0
      %v2643 = vpop.f32.mrf.mxu0
      %v2644 = vadd.f32 0.0, %v2643
      %v2645 = vpop.f32.mrf.mxu0
      %2646 = vmatprep.mubr.bf16.mxu0 0
      %2647 = vmatmul.mubr.bf16.gmra.mxu0 %v1772
      %v2648 = vpop.f32.mrf.mxu0
      %v2649 = vadd.f32 0.0, %v2648
      %v2650 = vpop.f32.mrf.mxu0
      %v2651 = vpop.f32.mrf.mxu0
      %v2652 = vadd.f32 0.0, %v2651
      %v2653 = vpop.f32.mrf.mxu0
      %2654 = vmatprep.mubr.bf16.mxu0 0
      %2655 = vmatmul.mubr.bf16.gmra.mxu0 %v1775
      %v2656 = vpop.f32.mrf.mxu0
      %v2657 = vadd.f32 0.0, %v2656
      %v2658 = vpop.f32.mrf.mxu0
      %v2659 = vpop.f32.mrf.mxu0
      %v2660 = vadd.f32 0.0, %v2659
      %v2661 = vpop.f32.mrf.mxu0
      %2662 = vmatprep.mubr.bf16.mxu0 0
      %2663 = vmatmul.mubr.bf16.gmra.mxu0 %v1778
      %v2664 = vpop.f32.mrf.mxu0
      %v2665 = vadd.f32 0.0, %v2664
      %v2666 = vpop.f32.mrf.mxu0
      %v2667 = vpop.f32.mrf.mxu0
      %v2668 = vadd.f32 0.0, %v2667
      %v2669 = vpop.f32.mrf.mxu0
      %2670 = vmatprep.mubr.bf16.mxu0 0
      %2671 = vmatmul.mubr.bf16.gmra.mxu0 %v1781
      %v2672 = vpop.f32.mrf.mxu0
      %v2673 = vadd.f32 0.0, %v2672
      %v2674 = vpop.f32.mrf.mxu0
      %v2675 = vpop.f32.mrf.mxu0
      %v2676 = vadd.f32 0.0, %v2675
      %v2677 = vpop.f32.mrf.mxu0
      %2678 = vmatprep.mubr.bf16.mxu0 0
      %2679 = vmatmul.mubr.bf16.gmra.mxu0 %v1784
      %v2680 = vpop.f32.mrf.mxu0
      %v2681 = vadd.f32 0.0, %v2680
      %v2682 = vpop.f32.mrf.mxu0
      %v2683 = vpop.f32.mrf.mxu0
      %v2684 = vadd.f32 0.0, %v2683
      %v2685 = vpop.f32.mrf.mxu0
      %2686 = vmatprep.mubr.bf16.mxu0 0
      %2687 = vmatmul.mubr.bf16.gmra.mxu0 %v1787
      %v2688 = vpop.f32.mrf.mxu0
      %v2689 = vadd.f32 0.0, %v2688
      %v2690 = vpop.f32.mrf.mxu0
      %v2691 = vpop.f32.mrf.mxu0
      %v2692 = vadd.f32 0.0, %v2691
      %v2693 = vpop.f32.mrf.mxu0
      %2694 = vmatprep.mubr.bf16.mxu0 0
      %2695 = vmatmul.mubr.bf16.gmra.mxu0 %v1790
      %v2696 = vpop.f32.mrf.mxu0
      %v2697 = vadd.f32 0.0, %v2696
      %v2698 = vpop.f32.mrf.mxu0
      %v2699 = vpop.f32.mrf.mxu0
      %v2700 = vadd.f32 0.0, %v2699
      %v2701 = vpop.f32.mrf.mxu0
      %2702 = vmatprep.mubr.bf16.mxu0 0
      %2703 = vmatmul.mubr.bf16.gmra.mxu0 %v1793
      %v2704 = vpop.f32.mrf.mxu0
      %v2705 = vadd.f32 0.0, %v2704
      %v2706 = vpop.f32.mrf.mxu0
      %v2707 = vpop.f32.mrf.mxu0
      %v2708 = vadd.f32 0.0, %v2707
      %v2709 = vpop.f32.mrf.mxu0
      %2710 = vmatprep.mubr.bf16.mxu0 0
      %2711 = vmatmul.mubr.bf16.gmra.mxu0 %v1796
      %v2712 = vpop.f32.mrf.mxu0
      %v2713 = vadd.f32 0.0, %v2712
      %v2714 = vpop.f32.mrf.mxu0
      %v2715 = vpop.f32.mrf.mxu0
      %v2716 = vadd.f32 0.0, %v2715
      %v2717 = vpop.f32.mrf.mxu0
      %2718 = vmatprep.mubr.bf16.mxu0 0
      %2719 = vmatmul.mubr.bf16.gmra.mxu0 %v1799
      %v2720 = vpop.f32.mrf.mxu0
      %v2721 = vadd.f32 0.0, %v2720
      %v2722 = vpop.f32.mrf.mxu0
      %v2723 = vpop.f32.mrf.mxu0
      %v2724 = vadd.f32 0.0, %v2723
      %v2725 = vpop.f32.mrf.mxu0
      %2726 = vmatprep.mubr.bf16.mxu0 0
      %2727 = vmatmul.mubr.bf16.gmra.mxu0 %v1802
      %v2728 = vpop.f32.mrf.mxu0
      %v2729 = vadd.f32 0.0, %v2728
      %v2730 = vpop.f32.mrf.mxu0
      %v2731 = vpop.f32.mrf.mxu0
      %v2732 = vadd.f32 0.0, %v2731
      %v2733 = vpop.f32.mrf.mxu0
      %2734 = vmatprep.mubr.bf16.mxu0 0
      %2735 = vmatmul.mubr.bf16.gmra.mxu0 %v1805
      %v2736 = vpop.f32.mrf.mxu0
      %v2737 = vadd.f32 0.0, %v2736
      %v2738 = vpop.f32.mrf.mxu0
      %v2739 = vpop.f32.mrf.mxu0
      %v2740 = vadd.f32 0.0, %v2739
      %v2741 = vpop.f32.mrf.mxu0
      %2742 = vmatprep.mubr.bf16.mxu0 0
      %2743 = vmatmul.mubr.bf16.gmra.mxu0 %v1808
      %v2744 = vpop.f32.mrf.mxu0
      %v2745 = vadd.f32 0.0, %v2744
      %v2746 = vpop.f32.mrf.mxu0
      %v2747 = vpop.f32.mrf.mxu0
      %v2748 = vadd.f32 0.0, %v2747
      %v2749 = vpop.f32.mrf.mxu0
      %2750 = vmatprep.mubr.bf16.mxu0 0
      %2751 = vmatmul.mubr.bf16.gmra.mxu0 %v1811
      %v2752 = vpop.f32.mrf.mxu0
      %v2753 = vadd.f32 0.0, %v2752
      %v2754 = vpop.f32.mrf.mxu0
      %v2755 = vpop.f32.mrf.mxu0
      %v2756 = vadd.f32 0.0, %v2755
      %v2757 = vpop.f32.mrf.mxu0
      %2758 = vmatprep.mubr.bf16.mxu0 0
      %2759 = vmatmul.mubr.bf16.gmra.mxu0 %v1814
      %v2760 = vpop.f32.mrf.mxu0
      %v2761 = vadd.f32 0.0, %v2760
      %v2762 = vpop.f32.mrf.mxu0
      %v2763 = vpop.f32.mrf.mxu0
      %v2764 = vadd.f32 0.0, %v2763
      %v2765 = vpop.f32.mrf.mxu0
      %2766 = vmatprep.mubr.bf16.mxu0 0
      %2767 = vmatmul.mubr.bf16.gmra.mxu0 %v1817
      %v2768 = vpop.f32.mrf.mxu0
      %v2769 = vadd.f32 0.0, %v2768
      %v2770 = vpop.f32.mrf.mxu0
      %v2771 = vpop.f32.mrf.mxu0
      %v2772 = vadd.f32 0.0, %v2771
      %v2773 = vpop.f32.mrf.mxu0
      %2774 = vmatprep.mubr.bf16.mxu0 0
      %2775 = vmatmul.mubr.bf16.gmra.mxu0 %v1820
      %v2776 = vpop.f32.mrf.mxu0
      %v2777 = vadd.f32 0.0, %v2776
      %v2778 = vpop.f32.mrf.mxu0
      %v2779 = vpop.f32.mrf.mxu0
      %v2780 = vadd.f32 0.0, %v2779
      %v2781 = vpop.f32.mrf.mxu0
      %2782 = vmatprep.mubr.bf16.mxu0 0
      %2783 = vmatmul.mubr.bf16.gmra.mxu0 %v1823
      %v2784 = vpop.f32.mrf.mxu0
      %v2785 = vadd.f32 0.0, %v2784
      %v2786 = vpop.f32.mrf.mxu0
      %v2787 = vpop.f32.mrf.mxu0
      %v2788 = vadd.f32 0.0, %v2787
      %v2789 = vpop.f32.mrf.mxu0
      %2790 = vmatprep.mubr.bf16.mxu0 0
      %2791 = vmatmul.mubr.bf16.gmra.mxu0 %v1826
      %v2792 = vpop.f32.mrf.mxu0
      %v2793 = vadd.f32 0.0, %v2792
      %v2794 = vpop.f32.mrf.mxu0
      %v2795 = vpop.f32.mrf.mxu0
      %v2796 = vadd.f32 0.0, %v2795
      %v2797 = vpop.f32.mrf.mxu0
      %2798 = vmatprep.mubr.bf16.mxu0 0
      %2799 = vmatmul.mubr.bf16.gmra.mxu0 %v1829
      %v2800 = vpop.f32.mrf.mxu0
      %v2801 = vadd.f32 0.0, %v2800
      %v2802 = vpop.f32.mrf.mxu0
      %v2803 = vpop.f32.mrf.mxu0
      %v2804 = vadd.f32 0.0, %v2803
      %v2805 = vpop.f32.mrf.mxu0
      %2806 = vmatprep.mubr.bf16.mxu0 0
      %2807 = vmatmul.mubr.bf16.gmra.mxu0 %v1832
      %v2808 = vpop.f32.mrf.mxu0
      %v2809 = vadd.f32 0.0, %v2808
      %v2810 = vpop.f32.mrf.mxu0
      %v2811 = vpop.f32.mrf.mxu0
      %v2812 = vadd.f32 0.0, %v2811
      %v2813 = vpop.f32.mrf.mxu0
      %2814 = vmatprep.mubr.bf16.mxu0 0
      %2815 = vmatmul.mubr.bf16.gmra.mxu0 %v1835
      %v2816 = vpop.f32.mrf.mxu0
      %v2817 = vadd.f32 0.0, %v2816
      %v2818 = vpop.f32.mrf.mxu0
      %v2819 = vpop.f32.mrf.mxu0
      %v2820 = vadd.f32 0.0, %v2819
      %v2821 = vpop.f32.mrf.mxu0
      %2822 = vmatprep.mubr.bf16.mxu0 0
      %2823 = vmatmul.mubr.bf16.gmra.mxu0 %v1838
      %v2824 = vpop.f32.mrf.mxu0
      %v2825 = vadd.f32 0.0, %v2824
      %v2826 = vpop.f32.mrf.mxu0
      %v2827 = vpop.f32.mrf.mxu0
      %v2828 = vadd.f32 0.0, %v2827
      %v2829 = vpop.f32.mrf.mxu0
      %2830 = vmatprep.mubr.bf16.mxu0 0
      %2831 = vmatmul.mubr.bf16.gmra.mxu0 %v1841
      %v2832 = vpop.f32.mrf.mxu0
      %v2833 = vadd.f32 0.0, %v2832
      %v2834 = vpop.f32.mrf.mxu0
      %v2835 = vpop.f32.mrf.mxu0
      %v2836 = vadd.f32 0.0, %v2835
      %v2837 = vpop.f32.mrf.mxu0
      %2838 = vmatprep.mubr.bf16.mxu0 0
      %2839 = vmatmul.mubr.bf16.gmra.mxu0 %v1844
      %v2840 = vpop.f32.mrf.mxu0
      %v2841 = vadd.f32 0.0, %v2840
      %v2842 = vpop.f32.mrf.mxu0
      %v2843 = vpop.f32.mrf.mxu0
      %v2844 = vadd.f32 0.0, %v2843
      %v2845 = vpop.f32.mrf.mxu0
      %2846 = vmatprep.mubr.bf16.mxu0 0
      %2847 = vmatmul.mubr.bf16.gmra.mxu0 %v1847
      %v2848 = vpop.f32.mrf.mxu0
      %v2849 = vadd.f32 0.0, %v2848
      %v2850 = vpop.f32.mrf.mxu0
      %v2851 = vpop.f32.mrf.mxu0
      %v2852 = vadd.f32 0.0, %v2851
      %v2853 = vpop.f32.mrf.mxu0
      %2854 = vmatprep.mubr.bf16.mxu0 0
      %2855 = vmatmul.mubr.bf16.gmra.mxu0 %v1850
      %v2856 = vpop.f32.mrf.mxu0
      %v2857 = vadd.f32 0.0, %v2856
      %v2858 = vpop.f32.mrf.mxu0
      %v2859 = vpop.f32.mrf.mxu0
      %v2860 = vadd.f32 0.0, %v2859
      %v2861 = vpop.f32.mrf.mxu0
      %2862 = vmatprep.mubr.bf16.mxu0 0
      %2863 = vmatmul.mubr.bf16.gmra.mxu0 %v1853
      %v2864 = vpop.f32.mrf.mxu0
      %v2865 = vadd.f32 0.0, %v2864
      %v2866 = vpop.f32.mrf.mxu0
      %v2867 = vpop.f32.mrf.mxu0
      %v2868 = vadd.f32 0.0, %v2867
      %v2869 = vpop.f32.mrf.mxu0
      %2870 = vmatprep.mubr.bf16.mxu0 0
      %2871 = vmatmul.mubr.bf16.gmra.mxu0 %v1856
      %v2872 = vpop.f32.mrf.mxu0
      %v2873 = vadd.f32 0.0, %v2872
      %v2874 = vpop.f32.mrf.mxu0
      %v2875 = vpop.f32.mrf.mxu0
      %v2876 = vadd.f32 0.0, %v2875
      %v2877 = vpop.f32.mrf.mxu0
      %2878 = vmatprep.mubr.bf16.mxu0 0
      %2879 = vmatmul.mubr.bf16.gmra.mxu0 %v1859
      %v2880 = vpop.f32.mrf.mxu0
      %v2881 = vadd.f32 0.0, %v2880
      %v2882 = vpop.f32.mrf.mxu0
      %v2883 = vpop.f32.mrf.mxu0
      %v2884 = vadd.f32 0.0, %v2883
      %v2885 = vpop.f32.mrf.mxu0
      %2886 = vmatprep.mubr.bf16.mxu0 0
      %2887 = vmatmul.mubr.bf16.gmra.mxu0 %v1862
      %v2888 = vpop.f32.mrf.mxu0
      %v2889 = vadd.f32 0.0, %v2888
      %v2890 = vpop.f32.mrf.mxu0
      %v2891 = vpop.f32.mrf.mxu0
      %v2892 = vadd.f32 0.0, %v2891
      %v2893 = vpop.f32.mrf.mxu0
      %2894 = vmatprep.mubr.bf16.mxu0 0
      %2895 = vmatmul.mubr.bf16.gmra.mxu0 %v1865
      %v2896 = vpop.f32.mrf.mxu0
      %v2897 = vadd.f32 0.0, %v2896
      %v2898 = vpop.f32.mrf.mxu0
      %v2899 = vpop.f32.mrf.mxu0
      %v2900 = vadd.f32 0.0, %v2899
      %v2901 = vpop.f32.mrf.mxu0
      %2902 = vmatprep.mubr.bf16.mxu0 0
      %2903 = vmatmul.mubr.bf16.gmra.mxu0 %v1868
      %v2904 = vpop.f32.mrf.mxu0
      %v2905 = vadd.f32 0.0, %v2904
      %v2906 = vpop.f32.mrf.mxu0
      %v2907 = vpop.f32.mrf.mxu0
      %v2908 = vadd.f32 0.0, %v2907
      %v2909 = vpop.f32.mrf.mxu0
      %2910 = vmatprep.mubr.bf16.mxu0 0
      %2911 = vmatmul.mubr.bf16.gmra.mxu0 %v1871
      %v2912 = vpop.f32.mrf.mxu0
      %v2913 = vadd.f32 0.0, %v2912
      %v2914 = vpop.f32.mrf.mxu0
      %v2915 = vpop.f32.mrf.mxu0
      %v2916 = vadd.f32 0.0, %v2915
      %v2917 = vpop.f32.mrf.mxu0
      %2918 = vmatprep.mubr.bf16.mxu0 0
      %2919 = vmatmul.mubr.bf16.gmra.mxu0 %v1874
      %v2920 = vpop.f32.mrf.mxu0
      %v2921 = vadd.f32 0.0, %v2920
      %v2922 = vpop.f32.mrf.mxu0
      %v2923 = vpop.f32.mrf.mxu0
      %v2924 = vadd.f32 0.0, %v2923
      %v2925 = vpop.f32.mrf.mxu0
      %2926 = vmatprep.mubr.bf16.mxu0 0
      %2927 = vmatmul.mubr.bf16.gmra.mxu0 %v1877
      %v2928 = vpop.f32.mrf.mxu0
      %v2929 = vadd.f32 0.0, %v2928
      %v2930 = vpop.f32.mrf.mxu0
      %v2931 = vpop.f32.mrf.mxu0
      %v2932 = vadd.f32 0.0, %v2931
      %v2933 = vpop.f32.mrf.mxu0
      %2934 = vmatprep.mubr.bf16.mxu0 0
      %2935 = vmatmul.mubr.bf16.gmra.mxu0 %v1880
      %v2936 = vpop.f32.mrf.mxu0
      %v2937 = vadd.f32 0.0, %v2936
      %v2938 = vpop.f32.mrf.mxu0
      %v2939 = vpop.f32.mrf.mxu0
      %v2940 = vadd.f32 0.0, %v2939
      %v2941 = vpop.f32.mrf.mxu0
      %2942 = vmatprep.mubr.bf16.mxu0 0
      %2943 = vmatmul.mubr.bf16.gmra.mxu0 %v1883
      %v2944 = vpop.f32.mrf.mxu0
      %v2945 = vadd.f32 0.0, %v2944
      %v2946 = vpop.f32.mrf.mxu0
      %v2947 = vpop.f32.mrf.mxu0
      %v2948 = vadd.f32 0.0, %v2947
      %v2949 = vpop.f32.mrf.mxu0
      %2950 = vmatprep.mubr.bf16.mxu0 0
      %2951 = vmatmul.mubr.bf16.gmra.mxu0 %v1886
      %v2952 = vpop.f32.mrf.mxu0
      %v2953 = vadd.f32 0.0, %v2952
      %v2954 = vpop.f32.mrf.mxu0
      %v2955 = vpop.f32.mrf.mxu0
      %v2956 = vadd.f32 0.0, %v2955
      %v2957 = vpop.f32.mrf.mxu0
      %2958 = vmatprep.mubr.bf16.mxu0 0
      %2959 = vmatmul.mubr.bf16.gmra.mxu0 %v1889
      %v2960 = vpop.f32.mrf.mxu0
      %v2961 = vadd.f32 0.0, %v2960
      %v2962 = vpop.f32.mrf.mxu0
      %v2963 = vpop.f32.mrf.mxu0
      %v2964 = vadd.f32 0.0, %v2963
      %v2965 = vpop.f32.mrf.mxu0
      %2966 = vmatprep.mubr.bf16.mxu0 0
      %2967 = vmatmul.mubr.bf16.gmra.mxu0 %v1892
      %v2968 = vpop.f32.mrf.mxu0
      %v2969 = vadd.f32 0.0, %v2968
      %v2970 = vpop.f32.mrf.mxu0
      %v2971 = vpop.f32.mrf.mxu0
      %v2972 = vadd.f32 0.0, %v2971
      %v2973 = vpop.f32.mrf.mxu0
      %2974 = vmatprep.mubr.bf16.mxu0 0
      %2975 = vmatmul.mubr.bf16.gmra.mxu0 %v1895
      %v2976 = vpop.f32.mrf.mxu0
      %v2977 = vadd.f32 0.0, %v2976
      %v2978 = vpop.f32.mrf.mxu0
      %v2979 = vpop.f32.mrf.mxu0
      %v2980 = vadd.f32 0.0, %v2979
      %v2981 = vpop.f32.mrf.mxu0
      %2982 = vmatprep.mubr.bf16.mxu0 0
      %2983 = vmatmul.mubr.bf16.gmra.mxu0 %v1898
      %v2984 = vpop.f32.mrf.mxu0
      %v2985 = vadd.f32 0.0, %v2984
      %v2986 = vpop.f32.mrf.mxu0
      %v2987 = vpop.f32.mrf.mxu0
      %v2988 = vadd.f32 0.0, %v2987
      %v2989 = vpop.f32.mrf.mxu0
      %2990 = vmatprep.mubr.bf16.mxu0 0
      %2991 = vmatmul.mubr.bf16.gmra.mxu0 %v1901
      %v2992 = vpop.f32.mrf.mxu0
      %v2993 = vadd.f32 0.0, %v2992
      %v2994 = vpop.f32.mrf.mxu0
      %v2995 = vpop.f32.mrf.mxu0
      %v2996 = vadd.f32 0.0, %v2995
      %v2997 = vpop.f32.mrf.mxu0
      %2998 = vmatprep.mubr.bf16.mxu0 0
      %2999 = vmatmul.mubr.bf16.gmra.mxu0 %v1904
      %v3000 = vpop.f32.mrf.mxu0
      %v3001 = vadd.f32 0.0, %v3000
      %v3002 = vpop.f32.mrf.mxu0
      %v3003 = vpop.f32.mrf.mxu0
      %v3004 = vadd.f32 0.0, %v3003
      %v3005 = vpop.f32.mrf.mxu0
      %3006 = vmatprep.mubr.bf16.mxu0 0
      %3007 = vmatmul.mubr.bf16.gmra.mxu0 %v1907
      %v3008 = vpop.f32.mrf.mxu0
      %v3009 = vadd.f32 0.0, %v3008
      %v3010 = vpop.f32.mrf.mxu0
      %v3011 = vpop.f32.mrf.mxu0
      %v3012 = vadd.f32 0.0, %v3011
      %v3013 = vpop.f32.mrf.mxu0
      %3014 = vmatprep.mubr.bf16.mxu0 0
      %3015 = vmatmul.mubr.bf16.gmra.mxu0 %v1910
      %v3016 = vpop.f32.mrf.mxu0
      %v3017 = vadd.f32 0.0, %v3016
      %v3018 = vpop.f32.mrf.mxu0
      %v3019 = vpop.f32.mrf.mxu0
      %v3020 = vadd.f32 0.0, %v3019
      %v3021 = vpop.f32.mrf.mxu0
      %3022 = vmatprep.mubr.bf16.mxu0 0
      %3023 = vmatmul.mubr.bf16.gmra.mxu0 %v1913
      %v3024 = vpop.f32.mrf.mxu0
      %v3025 = vadd.f32 0.0, %v3024
      %v3026 = vpop.f32.mrf.mxu0
      %v3027 = vpop.f32.mrf.mxu0
      %v3028 = vadd.f32 0.0, %v3027
      %v3029 = vpop.f32.mrf.mxu0
      %3030 = vmatprep.mubr.bf16.mxu0 0
      %3031 = vmatmul.mubr.bf16.gmra.mxu0 %v1916
      %v3032 = vpop.f32.mrf.mxu0
      %v3033 = vadd.f32 0.0, %v3032
      %v3034 = vpop.f32.mrf.mxu0
      %v3035 = vpop.f32.mrf.mxu0
      %v3036 = vadd.f32 0.0, %v3035
      %v3037 = vpop.f32.mrf.mxu0
      %3038 = vmatprep.mubr.bf16.mxu0 0
      %3039 = vmatmul.mubr.bf16.gmra.mxu0 %v1919
      %v3040 = vpop.f32.mrf.mxu0
      %v3041 = vadd.f32 0.0, %v3040
      %v3042 = vpop.f32.mrf.mxu0
      %v3043 = vpop.f32.mrf.mxu0
      %v3044 = vadd.f32 0.0, %v3043
      %v3045 = vpop.f32.mrf.mxu0
      %3046 = vmatprep.mubr.bf16.mxu0 0
      %3047 = vmatmul.mubr.bf16.gmra.mxu0 %v1922
      %v3048 = vpop.f32.mrf.mxu0
      %v3049 = vadd.f32 0.0, %v3048
      %v3050 = vpop.f32.mrf.mxu0
      %v3051 = vpop.f32.mrf.mxu0
      %v3052 = vadd.f32 0.0, %v3051
      %v3053 = vpop.f32.mrf.mxu0
      %3054 = vmatprep.mubr.bf16.mxu0 0
      %3055 = vmatmul.mubr.bf16.gmra.mxu0 %v1925
      %v3056 = vpop.f32.mrf.mxu0
      %v3057 = vadd.f32 0.0, %v3056
      %v3058 = vpop.f32.mrf.mxu0
      %v3059 = vpop.f32.mrf.mxu0
      %v3060 = vadd.f32 0.0, %v3059
      %v3061 = vpop.f32.mrf.mxu0
      %3062 = vmatprep.mubr.bf16.mxu0 0
      %3063 = vmatmul.mubr.bf16.gmra.mxu0 %v1928
      %v3064 = vpop.f32.mrf.mxu0
      %v3065 = vadd.f32 0.0, %v3064
      %v3066 = vpop.f32.mrf.mxu0
      %v3067 = vpop.f32.mrf.mxu0
      %v3068 = vadd.f32 0.0, %v3067
      %v3069 = vpop.f32.mrf.mxu0
      %3070 = vmatprep.mubr.bf16.mxu0 0
      %3071 = vmatmul.mubr.bf16.gmra.mxu0 %v1931
      %v3072 = vpop.f32.mrf.mxu0
      %v3073 = vadd.f32 0.0, %v3072
      %v3074 = vpop.f32.mrf.mxu0
      %v3075 = vpop.f32.mrf.mxu0
      %v3076 = vadd.f32 0.0, %v3075
      %v3077 = vpop.f32.mrf.mxu0
      %3078 = vmatprep.mubr.bf16.mxu0 0
      %3079 = vmatmul.mubr.bf16.gmra.mxu0 %v1934
      %v3080 = vpop.f32.mrf.mxu0
      %v3081 = vadd.f32 0.0, %v3080
      %v3082 = vpop.f32.mrf.mxu0
      %v3083 = vpop.f32.mrf.mxu0
      %v3084 = vadd.f32 0.0, %v3083
      %v3085 = vpop.f32.mrf.mxu0
      %3086 = vmatprep.mubr.bf16.mxu0 0
      %3087 = vmatmul.mubr.bf16.gmra.mxu0 %v1937
      %v3088 = vpop.f32.mrf.mxu0
      %v3089 = vadd.f32 0.0, %v3088
      %v3090 = vpop.f32.mrf.mxu0
      %v3091 = vpop.f32.mrf.mxu0
      %v3092 = vadd.f32 0.0, %v3091
      %v3093 = vpop.f32.mrf.mxu0
      %3094 = vmatprep.mubr.bf16.mxu0 0
      %3095 = vmatmul.mubr.bf16.gmra.mxu0 %v1940
      %v3096 = vpop.f32.mrf.mxu0
      %v3097 = vadd.f32 0.0, %v3096
      %v3098 = vpop.f32.mrf.mxu0
      %v3099 = vpop.f32.mrf.mxu0
      %v3100 = vadd.f32 0.0, %v3099
      %v3101 = vpop.f32.mrf.mxu0
      %3102 = vmatprep.mubr.bf16.mxu0 0
      %3103 = vmatmul.mubr.bf16.gmra.mxu0 %v1943
      %v3104 = vpop.f32.mrf.mxu0
      %v3105 = vadd.f32 0.0, %v3104
      %v3106 = vpop.f32.mrf.mxu0
      %v3107 = vpop.f32.mrf.mxu0
      %v3108 = vadd.f32 0.0, %v3107
      %v3109 = vpop.f32.mrf.mxu0
      %3110 = vmatprep.mubr.bf16.mxu0 0
      %3111 = vmatmul.mubr.bf16.gmra.mxu0 %v1946
      %v3112 = vpop.f32.mrf.mxu0
      %v3113 = vadd.f32 0.0, %v3112
      %v3114 = vpop.f32.mrf.mxu0
      %v3115 = vpop.f32.mrf.mxu0
      %v3116 = vadd.f32 0.0, %v3115
      %v3117 = vpop.f32.mrf.mxu0
      %3118 = vmatprep.mubr.bf16.mxu0 0
      %3119 = vmatmul.mubr.bf16.gmra.mxu0 %v1949
      %v3120 = vpop.f32.mrf.mxu0
      %v3121 = vadd.f32 0.0, %v3120
      %v3122 = vpop.f32.mrf.mxu0
      %v3123 = vpop.f32.mrf.mxu0
      %v3124 = vadd.f32 0.0, %v3123
      %v3125 = vpop.f32.mrf.mxu0
      %3126 = vmatprep.mubr.bf16.mxu0 0
      %3127 = vmatmul.mubr.bf16.gmra.mxu0 %v1952
      %v3128 = vpop.f32.mrf.mxu0
      %v3129 = vadd.f32 0.0, %v3128
      %v3130 = vpop.f32.mrf.mxu0
      %v3131 = vpop.f32.mrf.mxu0
      %v3132 = vadd.f32 0.0, %v3131
      %v3133 = vpop.f32.mrf.mxu0
      %3134 = vmatprep.mubr.bf16.mxu0 0
      %3135 = vmatmul.mubr.bf16.gmra.mxu0 %v1955
      %v3136 = vpop.f32.mrf.mxu0
      %v3137 = vadd.f32 0.0, %v3136
      %v3138 = vpop.f32.mrf.mxu0
      %v3139 = vpop.f32.mrf.mxu0
      %v3140 = vadd.f32 0.0, %v3139
      %v3141 = vpop.f32.mrf.mxu0
      %3142 = vmatprep.mubr.bf16.mxu0 0
      %3143 = vmatmul.mubr.bf16.gmra.mxu0 %v1958
      %v3144 = vpop.f32.mrf.mxu0
      %v3145 = vadd.f32 0.0, %v3144
      %v3146 = vpop.f32.mrf.mxu0
      %v3147 = vpop.f32.mrf.mxu0
      %v3148 = vadd.f32 0.0, %v3147
      %v3149 = vpop.f32.mrf.mxu0
      %3150 = vmatprep.mubr.bf16.mxu0 0
      %3151 = vmatmul.mubr.bf16.gmra.mxu0 %v1961
      %v3152 = vpop.f32.mrf.mxu0
      %v3153 = vadd.f32 0.0, %v3152
      %v3154 = vpop.f32.mrf.mxu0
      %v3155 = vpop.f32.mrf.mxu0
      %v3156 = vadd.f32 0.0, %v3155
      %v3157 = vpop.f32.mrf.mxu0
      %3158 = vmatprep.mubr.bf16.mxu0 0
      %3159 = vmatmul.mubr.bf16.gmra.mxu0 %v1964
      %v3160 = vpop.f32.mrf.mxu0
      %v3161 = vadd.f32 0.0, %v3160
      %v3162 = vpop.f32.mrf.mxu0
      %v3163 = vpop.f32.mrf.mxu0
      %v3164 = vadd.f32 0.0, %v3163
      %v3165 = vpop.f32.mrf.mxu0
      %3166 = vmatprep.mubr.bf16.mxu0 0
      %3167 = vmatmul.mubr.bf16.gmra.mxu0 %v1967
      %v3168 = vpop.f32.mrf.mxu0
      %v3169 = vadd.f32 0.0, %v3168
      %v3170 = vpop.f32.mrf.mxu0
      %v3171 = vpop.f32.mrf.mxu0
      %v3172 = vadd.f32 0.0, %v3171
      %v3173 = vpop.f32.mrf.mxu0
      %3174 = vmatprep.mubr.bf16.mxu0 0
      %3175 = vmatmul.mubr.bf16.gmra.mxu0 %v1970
      %v3176 = vpop.f32.mrf.mxu0
      %v3177 = vadd.f32 0.0, %v3176
      %v3178 = vpop.f32.mrf.mxu0
      %v3179 = vpop.f32.mrf.mxu0
      %v3180 = vadd.f32 0.0, %v3179
      %v3181 = vpop.f32.mrf.mxu0
      %3182 = vmatprep.mubr.bf16.mxu0 0
      %3183 = vmatmul.mubr.bf16.gmra.mxu0 %v1973
      %v3184 = vpop.f32.mrf.mxu0
      %v3185 = vadd.f32 0.0, %v3184
      %v3186 = vpop.f32.mrf.mxu0
      %v3187 = vpop.f32.mrf.mxu0
      %v3188 = vadd.f32 0.0, %v3187
      %v3189 = vpop.f32.mrf.mxu0
      %3190 = vmatprep.mubr.bf16.mxu0 0
      %3191 = vmatmul.mubr.bf16.gmra.mxu0 %v1976
      %v3192 = vpop.f32.mrf.mxu0
      %v3193 = vadd.f32 0.0, %v3192
      %v3194 = vpop.f32.mrf.mxu0
      %v3195 = vpop.f32.mrf.mxu0
      %v3196 = vadd.f32 0.0, %v3195
      %v3197 = vpop.f32.mrf.mxu0
      %3198 = vmatprep.mubr.bf16.mxu0 0
      %3199 = vmatmul.mubr.bf16.gmra.mxu0 %v1979
      %v3200 = vpop.f32.mrf.mxu0
      %v3201 = vadd.f32 0.0, %v3200
      %v3202 = vpop.f32.mrf.mxu0
      %v3203 = vpop.f32.mrf.mxu0
      %v3204 = vadd.f32 0.0, %v3203
      %v3205 = vpop.f32.mrf.mxu0
      %3206 = vmatprep.mubr.bf16.mxu0 0
      %3207 = vmatmul.mubr.bf16.gmra.mxu0 %v1982
      %v3208 = vpop.f32.mrf.mxu0
      %v3209 = vadd.f32 0.0, %v3208
      %v3210 = vpop.f32.mrf.mxu0
      %v3211 = vpop.f32.mrf.mxu0
      %v3212 = vadd.f32 0.0, %v3211
      %v3213 = vpop.f32.mrf.mxu0
      %3214 = vmatprep.mubr.bf16.mxu0 0
      %3215 = vmatmul.mubr.bf16.gmra.mxu0 %v1985
      %v3216 = vpop.f32.mrf.mxu0
      %v3217 = vadd.f32 0.0, %v3216
      %v3218 = vpop.f32.mrf.mxu0
      %v3219 = vpop.f32.mrf.mxu0
      %v3220 = vadd.f32 0.0, %v3219
      %v3221 = vpop.f32.mrf.mxu0
      %3222 = vmatprep.mubr.bf16.mxu0 0
      %3223 = vmatmul.mubr.bf16.gmra.mxu0 %v1988
      %v3224 = vpop.f32.mrf.mxu0
      %v3225 = vadd.f32 0.0, %v3224
      %v3226 = vpop.f32.mrf.mxu0
      %v3227 = vpop.f32.mrf.mxu0
      %v3228 = vadd.f32 0.0, %v3227
      %v3229 = vpop.f32.mrf.mxu0
      %3230 = vmatprep.mubr.bf16.mxu0 0
      %3231 = vmatmul.mubr.bf16.gmra.mxu0 %v1991
      %v3232 = vpop.f32.mrf.mxu0
      %v3233 = vadd.f32 0.0, %v3232
      %v3234 = vpop.f32.mrf.mxu0
      %v3235 = vpop.f32.mrf.mxu0
      %v3236 = vadd.f32 0.0, %v3235
      %v3237 = vpop.f32.mrf.mxu0
      %3238 = vmatprep.mubr.bf16.mxu0 0
      %3239 = vmatmul.mubr.bf16.gmra.mxu0 %v1994
      %v3240 = vpop.f32.mrf.mxu0
      %v3241 = vadd.f32 0.0, %v3240
      %v3242 = vpop.f32.mrf.mxu0
      %v3243 = vpop.f32.mrf.mxu0
      %v3244 = vadd.f32 0.0, %v3243
      %v3245 = vpop.f32.mrf.mxu0
      %3246 = vmatprep.mubr.bf16.mxu0 0
      %3247 = vmatmul.mubr.bf16.gmra.mxu0 %v1997
      %v3248 = vpop.f32.mrf.mxu0
      %v3249 = vadd.f32 0.0, %v3248
      %v3250 = vpop.f32.mrf.mxu0
      %v3251 = vpop.f32.mrf.mxu0
      %v3252 = vadd.f32 0.0, %v3251
      %v3253 = vpop.f32.mrf.mxu0
      %3254 = vmatprep.mubr.bf16.mxu0 0
      %3255 = vmatmul.mubr.bf16.gmra.mxu0 %v2000
      %v3256 = vpop.f32.mrf.mxu0
      %v3257 = vadd.f32 0.0, %v3256
      %v3258 = vpop.f32.mrf.mxu0
      %v3259 = vpop.f32.mrf.mxu0
      %v3260 = vadd.f32 0.0, %v3259
      %v3261 = vpop.f32.mrf.mxu0
      %3262 = vmatprep.mubr.bf16.mxu0 0
      %3263 = vmatmul.mubr.bf16.gmra.mxu0 %v2003
      %v3264 = vpop.f32.mrf.mxu0
      %v3265 = vadd.f32 0.0, %v3264
      %v3266 = vpop.f32.mrf.mxu0
      %v3267 = vpop.f32.mrf.mxu0
      %v3268 = vadd.f32 0.0, %v3267
      %v3269 = vpop.f32.mrf.mxu0
      %3270 = vmatprep.mubr.bf16.mxu0 0
      %3271 = vmatmul.mubr.bf16.gmra.mxu0 %v2006
      %v3272 = vpop.f32.mrf.mxu0
      %v3273 = vadd.f32 0.0, %v3272
      %v3274 = vpop.f32.mrf.mxu0
      %v3275 = vpop.f32.mrf.mxu0
      %v3276 = vadd.f32 0.0, %v3275
      %v3277 = vpop.f32.mrf.mxu0
      %3278 = vmatprep.mubr.bf16.mxu0 0
      %3279 = vmatmul.mubr.bf16.gmra.mxu0 %v2009
      %v3280 = vpop.f32.mrf.mxu0
      %v3281 = vadd.f32 0.0, %v3280
      %v3282 = vpop.f32.mrf.mxu0
      %v3283 = vpop.f32.mrf.mxu0
      %v3284 = vadd.f32 0.0, %v3283
      %v3285 = vpop.f32.mrf.mxu0
      %3286 = vmatprep.mubr.bf16.mxu0 0
      %3287 = vmatmul.mubr.bf16.gmra.mxu0 %v2012
      %v3288 = vpop.f32.mrf.mxu0
      %v3289 = vadd.f32 0.0, %v3288
      %v3290 = vpop.f32.mrf.mxu0
      %v3291 = vpop.f32.mrf.mxu0
      %v3292 = vadd.f32 0.0, %v3291
      %v3293 = vpop.f32.mrf.mxu0
      %3294 = vmatprep.mubr.bf16.mxu0 0
      %3295 = vmatmul.mubr.bf16.gmra.mxu0 %v2015
      %v3296 = vpop.f32.mrf.mxu0
      %v3297 = vadd.f32 0.0, %v3296
      %v3298 = vpop.f32.mrf.mxu0
      %v3299 = vpop.f32.mrf.mxu0
      %v3300 = vadd.f32 0.0, %v3299
      %v3301 = vpop.f32.mrf.mxu0
      %3302 = vmatprep.mubr.bf16.mxu0 0
      %3303 = vmatmul.mubr.bf16.gmra.mxu0 %v2018
      %v3304 = vpop.f32.mrf.mxu0
      %v3305 = vadd.f32 0.0, %v3304
      %v3306 = vpop.f32.mrf.mxu0
      %v3307 = vpop.f32.mrf.mxu0
      %v3308 = vadd.f32 0.0, %v3307
      %v3309 = vpop.f32.mrf.mxu0
      %3310 = vmatprep.mubr.bf16.mxu0 0
      %3311 = vmatmul.mubr.bf16.gmra.mxu0 %v2021
      %v3312 = vpop.f32.mrf.mxu0
      %v3313 = vadd.f32 0.0, %v3312
      %v3314 = vpop.f32.mrf.mxu0
      %v3315 = vpop.f32.mrf.mxu0
      %v3316 = vadd.f32 0.0, %v3315
      %v3317 = vpop.f32.mrf.mxu0
      %3318 = vmatprep.mubr.bf16.mxu0 0
      %3319 = vmatmul.mubr.bf16.gmra.mxu0 %v2024
      %v3320 = vpop.f32.mrf.mxu0
      %v3321 = vadd.f32 0.0, %v3320
      %v3322 = vpop.f32.mrf.mxu0
      %v3323 = vpop.f32.mrf.mxu0
      %v3324 = vadd.f32 0.0, %v3323
      %v3325 = vpop.f32.mrf.mxu0
      %3326 = vmatprep.mubr.bf16.mxu0 0
      %3327 = vmatmul.mubr.bf16.gmra.mxu0 %v2027
      %v3328 = vpop.f32.mrf.mxu0
      %v3329 = vadd.f32 0.0, %v3328
      %v3330 = vpop.f32.mrf.mxu0
      %v3331 = vpop.f32.mrf.mxu0
      %v3332 = vadd.f32 0.0, %v3331
      %v3333 = vpop.f32.mrf.mxu0
      %3334 = vmatprep.mubr.bf16.mxu0 0
      %3335 = vmatmul.mubr.bf16.gmra.mxu0 %v2030
      %v3336 = vpop.f32.mrf.mxu0
      %v3337 = vadd.f32 0.0, %v3336
      %v3338 = vpop.f32.mrf.mxu0
      %v3339 = vpop.f32.mrf.mxu0
      %v3340 = vadd.f32 0.0, %v3339
      %v3341 = vpop.f32.mrf.mxu0
      %3342 = vmatprep.mubr.bf16.mxu0 0
      %3343 = vmatmul.mubr.bf16.gmra.mxu0 %v2033
      %v3344 = vpop.f32.mrf.mxu0
      %v3345 = vadd.f32 0.0, %v3344
      %v3346 = vpop.f32.mrf.mxu0
      %v3347 = vpop.f32.mrf.mxu0
      %v3348 = vadd.f32 0.0, %v3347
      %v3349 = vpop.f32.mrf.mxu0
      %3350 = vmatprep.mubr.bf16.mxu0 0
      %3351 = vmatmul.mubr.bf16.gmra.mxu0 %v2036
      %v3352 = vpop.f32.mrf.mxu0
      %v3353 = vadd.f32 0.0, %v3352
      %v3354 = vpop.f32.mrf.mxu0
      %v3355 = vpop.f32.mrf.mxu0
      %v3356 = vadd.f32 0.0, %v3355
      %v3357 = vpop.f32.mrf.mxu0
      %3358 = vmatprep.mubr.bf16.mxu0 0
      %3359 = vmatmul.mubr.bf16.gmra.mxu0 %v2039
      %v3360 = vpop.f32.mrf.mxu0
      %v3361 = vadd.f32 0.0, %v3360
      %v3362 = vpop.f32.mrf.mxu0
      %v3363 = vpop.f32.mrf.mxu0
      %v3364 = vadd.f32 0.0, %v3363
      %v3365 = vpop.f32.mrf.mxu0
      %3366 = vmatprep.mubr.bf16.mxu0 0
      %3367 = vmatmul.mubr.bf16.gmra.mxu0 %v2042
      %v3368 = vpop.f32.mrf.mxu0
      %v3369 = vadd.f32 0.0, %v3368
      %v3370 = vpop.f32.mrf.mxu0
      %v3371 = vpop.f32.mrf.mxu0
      %v3372 = vadd.f32 0.0, %v3371
      %v3373 = vpop.f32.mrf.mxu0
      %3374 = vmatprep.mubr.bf16.mxu0 0
      %3375 = vmatmul.mubr.bf16.gmra.mxu0 %v2045
      %v3376 = vpop.f32.mrf.mxu0
      %v3377 = vadd.f32 0.0, %v3376
      %v3378 = vpop.f32.mrf.mxu0
      %v3379 = vpop.f32.mrf.mxu0
      %v3380 = vadd.f32 0.0, %v3379
      %v3381 = vpop.f32.mrf.mxu0
      %3382 = vmatprep.mubr.bf16.mxu0 0
      %3383 = vmatmul.mubr.bf16.gmra.mxu0 %v2048
      %v3384 = vpop.f32.mrf.mxu0
      %v3385 = vadd.f32 0.0, %v3384
      %v3386 = vpop.f32.mrf.mxu0
      %v3387 = vpop.f32.mrf.mxu0
      %v3388 = vadd.f32 0.0, %v3387
      %v3389 = vpop.f32.mrf.mxu0
      %3390 = vmatprep.mubr.bf16.mxu0 0
      %3391 = vmatmul.mubr.bf16.gmra.mxu0 %v2051
      %v3392 = vpop.f32.mrf.mxu0
      %v3393 = vadd.f32 0.0, %v3392
      %v3394 = vpop.f32.mrf.mxu0
      %v3395 = vpop.f32.mrf.mxu0
      %v3396 = vadd.f32 0.0, %v3395
      %v3397 = vpop.f32.mrf.mxu0
      %3398 = vmatprep.mubr.bf16.mxu0 0
      %3399 = vmatmul.mubr.bf16.gmra.mxu0 %v2054
      %v3400 = vpop.f32.mrf.mxu0
      %v3401 = vadd.f32 0.0, %v3400
      %v3402 = vpop.f32.mrf.mxu0
      %v3403 = vpop.f32.mrf.mxu0
      %v3404 = vadd.f32 0.0, %v3403
      %v3405 = vpop.f32.mrf.mxu0
      %3406 = vmatprep.mubr.bf16.mxu0 0
      %3407 = vmatmul.mubr.bf16.gmra.mxu0 %v2057
      %v3408 = vpop.f32.mrf.mxu0
      %v3409 = vadd.f32 0.0, %v3408
      %v3410 = vpop.f32.mrf.mxu0
      %v3411 = vpop.f32.mrf.mxu0
      %v3412 = vadd.f32 0.0, %v3411
      %v3413 = vpop.f32.mrf.mxu0
      %3414 = vmatprep.mubr.bf16.mxu0 0
      %3415 = vmatmul.mubr.bf16.gmra.mxu0 %v2060
      %v3416 = vpop.f32.mrf.mxu0
      %v3417 = vadd.f32 0.0, %v3416
      %v3418 = vpop.f32.mrf.mxu0
      %v3419 = vpop.f32.mrf.mxu0
      %v3420 = vadd.f32 0.0, %v3419
      %v3421 = vpop.f32.mrf.mxu0
      %3422 = vmatprep.mubr.bf16.mxu0 0
      %3423 = vmatmul.mubr.bf16.gmra.mxu0 %v2063
      %v3424 = vpop.f32.mrf.mxu0
      %v3425 = vadd.f32 0.0, %v3424
      %v3426 = vpop.f32.mrf.mxu0
      %v3427 = vpop.f32.mrf.mxu0
      %v3428 = vadd.f32 0.0, %v3427
      %v3429 = vpop.f32.mrf.mxu0
      %3430 = vmatprep.mubr.bf16.mxu0 0
      %3431 = vmatmul.mubr.bf16.gmra.mxu0 %v2066
      %v3432 = vpop.f32.mrf.mxu0
      %v3433 = vadd.f32 0.0, %v3432
      %v3434 = vpop.f32.mrf.mxu0
      %v3435 = vpop.f32.mrf.mxu0
      %v3436 = vadd.f32 0.0, %v3435
      %v3437 = vpop.f32.mrf.mxu0
      %3438 = vmatprep.mubr.bf16.mxu0 0
      %3439 = vmatmul.mubr.bf16.gmra.mxu0 %v2069
      %v3440 = vpop.f32.mrf.mxu0
      %v3441 = vadd.f32 0.0, %v3440
      %v3442 = vpop.f32.mrf.mxu0
      %v3443 = vpop.f32.mrf.mxu0
      %v3444 = vadd.f32 0.0, %v3443
      %v3445 = vpop.f32.mrf.mxu0
      %3446 = vmatprep.mubr.bf16.mxu0 0
      %3447 = vmatmul.mubr.bf16.gmra.mxu0 %v2072
      %v3448 = vpop.f32.mrf.mxu0
      %v3449 = vadd.f32 0.0, %v3448
      %v3450 = vpop.f32.mrf.mxu0
      %v3451 = vpop.f32.mrf.mxu0
      %v3452 = vadd.f32 0.0, %v3451
      %v3453 = vpop.f32.mrf.mxu0
      %3454 = vmatprep.mubr.bf16.mxu0 0
      %3455 = vmatmul.mubr.bf16.gmra.mxu0 %v2075
      %v3456 = vpop.f32.mrf.mxu0
      %v3457 = vadd.f32 0.0, %v3456
      %v3458 = vpop.f32.mrf.mxu0
      %v3459 = vpop.f32.mrf.mxu0
      %v3460 = vadd.f32 0.0, %v3459
      %v3461 = vpop.f32.mrf.mxu0
      %3462 = vmatprep.mubr.bf16.mxu0 0
      %3463 = vmatmul.mubr.bf16.gmra.mxu0 %v2078
      %v3464 = vpop.f32.mrf.mxu0
      %v3465 = vadd.f32 0.0, %v3464
      %v3466 = vpop.f32.mrf.mxu0
      %v3467 = vpop.f32.mrf.mxu0
      %v3468 = vadd.f32 0.0, %v3467
      %v3469 = vpop.f32.mrf.mxu0
      %3470 = vmatprep.mubr.bf16.mxu0 0
      %3471 = vmatmul.mubr.bf16.gmra.mxu0 %v2081
      %v3472 = vpop.f32.mrf.mxu0
      %v3473 = vadd.f32 0.0, %v3472
      %v3474 = vpop.f32.mrf.mxu0
      %v3475 = vpop.f32.mrf.mxu0
      %v3476 = vadd.f32 0.0, %v3475
      %v3477 = vpop.f32.mrf.mxu0
      %3478 = vmatprep.mubr.bf16.mxu0 0
      %3479 = vmatmul.mubr.bf16.gmra.mxu0 %v2084
      %v3480 = vpop.f32.mrf.mxu0
      %v3481 = vadd.f32 0.0, %v3480
      %v3482 = vpop.f32.mrf.mxu0
      %v3483 = vpop.f32.mrf.mxu0
      %v3484 = vadd.f32 0.0, %v3483
      %v3485 = vpop.f32.mrf.mxu0
      %3486 = vmatprep.mubr.bf16.mxu0 0
      %3487 = vmatmul.mubr.bf16.gmra.mxu0 %v2087
      %v3488 = vpop.f32.mrf.mxu0
      %v3489 = vadd.f32 0.0, %v3488
      %v3490 = vpop.f32.mrf.mxu0
      %v3491 = vpop.f32.mrf.mxu0
      %v3492 = vadd.f32 0.0, %v3491
      %v3493 = vpop.f32.mrf.mxu0
      %3494 = vmatprep.mubr.bf16.mxu0 0
      %3495 = vmatmul.mubr.bf16.gmra.mxu0 %v2090
      %v3496 = vpop.f32.mrf.mxu0
      %v3497 = vadd.f32 0.0, %v3496
      %v3498 = vpop.f32.mrf.mxu0
      %v3499 = vpop.f32.mrf.mxu0
      %v3500 = vadd.f32 0.0, %v3499
      %v3501 = vpop.f32.mrf.mxu0
      %3502 = vmatprep.mubr.bf16.mxu0 0
      %3503 = vmatmul.mubr.bf16.gmra.mxu0 %v2093
      %v3504 = vpop.f32.mrf.mxu0
      %v3505 = vadd.f32 0.0, %v3504
      %v3506 = vpop.f32.mrf.mxu0
      %v3507 = vpop.f32.mrf.mxu0
      %v3508 = vadd.f32 0.0, %v3507
      %v3509 = vpop.f32.mrf.mxu0
      %3510 = vmatprep.mubr.bf16.mxu0 0
      %3511 = vmatmul.mubr.bf16.gmra.mxu0 %v2096
      %v3512 = vpop.f32.mrf.mxu0
      %v3513 = vadd.f32 0.0, %v3512
      %v3514 = vpop.f32.mrf.mxu0
      %v3515 = vpop.f32.mrf.mxu0
      %v3516 = vadd.f32 0.0, %v3515
      %v3517 = vpop.f32.mrf.mxu0
      %3518 = vmatprep.mubr.bf16.mxu0 0
      %3519 = vmatmul.mubr.bf16.gmra.mxu0 %v2099
      %v3520 = vpop.f32.mrf.mxu0
      %v3521 = vadd.f32 0.0, %v3520
      %v3522 = vpop.f32.mrf.mxu0
      %v3523 = vpop.f32.mrf.mxu0
      %v3524 = vadd.f32 0.0, %v3523
      %v3525 = vpop.f32.mrf.mxu0
      %3526 = vmatprep.mubr.bf16.mxu0 0
      %3527 = vmatmul.mubr.bf16.gmra.mxu0 %v2102
      %v3528 = vpop.f32.mrf.mxu0
      %v3529 = vadd.f32 0.0, %v3528
      %v3530 = vpop.f32.mrf.mxu0
      %v3531 = vpop.f32.mrf.mxu0
      %v3532 = vadd.f32 0.0, %v3531
      %v3533 = vpop.f32.mrf.mxu0
      %3534 = vmatprep.mubr.bf16.mxu0 0
      %3535 = vmatmul.mubr.bf16.gmra.mxu0 %v2105
      %v3536 = vpop.f32.mrf.mxu0
      %v3537 = vadd.f32 0.0, %v3536
      %v3538 = vpop.f32.mrf.mxu0
      %v3539 = vpop.f32.mrf.mxu0
      %v3540 = vadd.f32 0.0, %v3539
      %v3541 = vpop.f32.mrf.mxu0
      %3542 = vmatprep.mubr.bf16.mxu0 0
      %3543 = vmatmul.mubr.bf16.gmra.mxu0 %v2108
      %v3544 = vpop.f32.mrf.mxu0
      %v3545 = vadd.f32 0.0, %v3544
      %v3546 = vpop.f32.mrf.mxu0
      %v3547 = vpop.f32.mrf.mxu0
      %v3548 = vadd.f32 0.0, %v3547
      %v3549 = vpop.f32.mrf.mxu0
      %3550 = vmatprep.mubr.bf16.mxu0 0
      %3551 = vmatmul.mubr.bf16.gmra.mxu0 %v2111
      %v3552 = vpop.f32.mrf.mxu0
      %v3553 = vadd.f32 0.0, %v3552
      %v3554 = vpop.f32.mrf.mxu0
      %v3555 = vpop.f32.mrf.mxu0
      %v3556 = vadd.f32 0.0, %v3555
      %v3557 = vpop.f32.mrf.mxu0
      %3558 = vmatprep.mubr.bf16.mxu0 0
      %3559 = vmatmul.mubr.bf16.gmra.mxu0 %v2114
      %v3560 = vpop.f32.mrf.mxu0
      %v3561 = vadd.f32 0.0, %v3560
      %v3562 = vpop.f32.mrf.mxu0
      %v3563 = vpop.f32.mrf.mxu0
      %v3564 = vadd.f32 0.0, %v3563
      %v3565 = vpop.f32.mrf.mxu0
      %3566 = vmatprep.mubr.bf16.mxu0 0
      %3567 = vmatmul.mubr.bf16.gmra.mxu0 %v2117
      %v3568 = vpop.f32.mrf.mxu0
      %v3569 = vadd.f32 0.0, %v3568
      %v3570 = vpop.f32.mrf.mxu0
      %v3571 = vpop.f32.mrf.mxu0
      %v3572 = vadd.f32 0.0, %v3571
      %v3573 = vpop.f32.mrf.mxu0
      %3574 = vmatprep.mubr.bf16.mxu0 0
      %3575 = vmatmul.mubr.bf16.gmra.mxu0 %v2120
      %v3576 = vpop.f32.mrf.mxu0
      %v3577 = vadd.f32 0.0, %v3576
      %v3578 = vpop.f32.mrf.mxu0
      %v3579 = vpop.f32.mrf.mxu0
      %v3580 = vadd.f32 0.0, %v3579
      %v3581 = vpop.f32.mrf.mxu0
      %3582 = vmatprep.mubr.bf16.mxu0 0
      %3583 = vmatmul.mubr.bf16.gmra.mxu0 %v2123
      %v3584 = vpop.f32.mrf.mxu0
      %v3585 = vadd.f32 0.0, %v3584
      %v3586 = vpop.f32.mrf.mxu0
      %v3587 = vpop.f32.mrf.mxu0
      %v3588 = vadd.f32 0.0, %v3587
      %v3589 = vpop.f32.mrf.mxu0
      %3590 = vmatprep.mubr.bf16.mxu0 0
      %3591 = vmatmul.mubr.bf16.gmra.mxu0 %v2126
      %v3592 = vpop.f32.mrf.mxu0
      %v3593 = vadd.f32 0.0, %v3592
      %v3594 = vpop.f32.mrf.mxu0
      %v3595 = vpop.f32.mrf.mxu0
      %v3596 = vadd.f32 0.0, %v3595
      %v3597 = vpop.f32.mrf.mxu0
      %3598 = vmatprep.mubr.bf16.mxu0 0
      %3599 = vmatmul.mubr.bf16.gmra.mxu0 %v2129
      %v3600 = vpop.f32.mrf.mxu0
      %v3601 = vadd.f32 0.0, %v3600
      %v3602 = vpop.f32.mrf.mxu0
      %v3603 = vpop.f32.mrf.mxu0
      %v3604 = vadd.f32 0.0, %v3603
      %v3605 = vpop.f32.mrf.mxu0
      %3606 = vmatprep.mubr.bf16.mxu0 0
      %3607 = vmatmul.mubr.bf16.gmra.mxu0 %v2132
      %v3608 = vpop.f32.mrf.mxu0
      %v3609 = vadd.f32 0.0, %v3608
      %v3610 = vpop.f32.mrf.mxu0
      %v3611 = vpop.f32.mrf.mxu0
      %v3612 = vadd.f32 0.0, %v3611
      %v3613 = vpop.f32.mrf.mxu0
      %3614 = vmatprep.mubr.bf16.mxu0 0
      %3615 = vmatmul.mubr.bf16.gmra.mxu0 %v2135
      %v3616 = vpop.f32.mrf.mxu0
      %v3617 = vadd.f32 0.0, %v3616
      %v3618 = vpop.f32.mrf.mxu0
      %v3619 = vpop.f32.mrf.mxu0
      %v3620 = vadd.f32 0.0, %v3619
      %v3621 = vpop.f32.mrf.mxu0
      %3622 = vmatprep.mubr.bf16.mxu0 0
      %3623 = vmatmul.mubr.bf16.gmra.mxu0 %v2138
      %v3624 = vpop.f32.mrf.mxu0
      %v3625 = vadd.f32 0.0, %v3624
      %v3626 = vpop.f32.mrf.mxu0
      %v3627 = vpop.f32.mrf.mxu0
      %v3628 = vadd.f32 0.0, %v3627
      %v3629 = vpop.f32.mrf.mxu0
      %3630 = vmatprep.mubr.bf16.mxu0 0
      %3631 = vmatmul.mubr.bf16.gmra.mxu0 %v2141
      %v3632 = vpop.f32.mrf.mxu0
      %v3633 = vadd.f32 0.0, %v3632
      %v3634 = vpop.f32.mrf.mxu0
      %v3635 = vpop.f32.mrf.mxu0
      %v3636 = vadd.f32 0.0, %v3635
      %v3637 = vpop.f32.mrf.mxu0
      %3638 = vmatprep.mubr.bf16.mxu0 0
      %3639 = vmatmul.mubr.bf16.gmra.mxu0 %v2144
      %v3640 = vpop.f32.mrf.mxu0
      %v3641 = vadd.f32 0.0, %v3640
      %v3642 = vpop.f32.mrf.mxu0
      %v3643 = vpop.f32.mrf.mxu0
      %v3644 = vadd.f32 0.0, %v3643
      %v3645 = vpop.f32.mrf.mxu0
      %3646 = vmatprep.mubr.bf16.mxu0 0
      %3647 = vmatmul.mubr.bf16.gmra.mxu0 %v2147
      %v3648 = vpop.f32.mrf.mxu0
      %v3649 = vadd.f32 0.0, %v3648
      %v3650 = vpop.f32.mrf.mxu0
      %v3651 = vpop.f32.mrf.mxu0
      %v3652 = vadd.f32 0.0, %v3651
      %v3653 = vpop.f32.mrf.mxu0
      %3654 = vmatprep.mubr.bf16.mxu0 0
      %3655 = vmatmul.mubr.bf16.gmra.mxu0 %v2150
      %v3656 = vpop.f32.mrf.mxu0
      %v3657 = vadd.f32 0.0, %v3656
      %v3658 = vpop.f32.mrf.mxu0
      %v3659 = vpop.f32.mrf.mxu0
      %v3660 = vadd.f32 0.0, %v3659
      %v3661 = vpop.f32.mrf.mxu0
      %3662 = vmatprep.mubr.bf16.mxu0 0
      %3663 = vmatmul.mubr.bf16.gmra.mxu0 %v2153
      %v3664 = vpop.f32.mrf.mxu0
      %v3665 = vadd.f32 0.0, %v3664
      %v3666 = vpop.f32.mrf.mxu0
      %v3667 = vpop.f32.mrf.mxu0
      %v3668 = vadd.f32 0.0, %v3667
      %v3669 = vpop.f32.mrf.mxu0
      %3670 = vmatprep.mubr.bf16.mxu0 0
      %3671 = vmatmul.mubr.bf16.gmra.mxu0 %v2156
      %v3672 = vpop.f32.mrf.mxu0
      %v3673 = vadd.f32 0.0, %v3672
      %v3674 = vpop.f32.mrf.mxu0
      %v3675 = vpop.f32.mrf.mxu0
      %v3676 = vadd.f32 0.0, %v3675
      %v3677 = vpop.f32.mrf.mxu0
      %3678 = vmatprep.mubr.bf16.mxu0 0
      %3679 = vmatmul.mubr.bf16.gmra.mxu0 %v2159
      %v3680 = vpop.f32.mrf.mxu0
      %v3681 = vadd.f32 0.0, %v3680
      %v3682 = vpop.f32.mrf.mxu0
      %v3683 = vpop.f32.mrf.mxu0
      %v3684 = vadd.f32 0.0, %v3683
      %v3685 = vpop.f32.mrf.mxu0
      %3686 = vmatprep.mubr.bf16.mxu0 0
      %3687 = vmatmul.mubr.bf16.gmra.mxu0 %v2162
      %v3688 = vpop.f32.mrf.mxu0
      %v3689 = vadd.f32 0.0, %v3688
      %v3690 = vpop.f32.mrf.mxu0
      %v3691 = vpop.f32.mrf.mxu0
      %v3692 = vadd.f32 0.0, %v3691
      %v3693 = vpop.f32.mrf.mxu0
      %3694 = vmatprep.mubr.bf16.mxu0 0
      %3695 = vmatmul.mubr.bf16.gmra.mxu0 %v2165
      %v3696 = vpop.f32.mrf.mxu0
      %v3697 = vadd.f32 0.0, %v3696
      %v3698 = vpop.f32.mrf.mxu0
      %v3699 = vpop.f32.mrf.mxu0
      %v3700 = vadd.f32 0.0, %v3699
      %v3701 = vpop.f32.mrf.mxu0
      %3702 = vmatprep.mubr.bf16.mxu0 0
      %3703 = vmatmul.mubr.bf16.gmra.mxu0 %v2168
      %v3704 = vpop.f32.mrf.mxu0
      %v3705 = vadd.f32 0.0, %v3704
      %v3706 = vpop.f32.mrf.mxu0
      %v3707 = vpop.f32.mrf.mxu0
      %v3708 = vadd.f32 0.0, %v3707
      %v3709 = vpop.f32.mrf.mxu0
      %3710 = vmatprep.mubr.bf16.mxu0 0
      %3711 = vmatmul.mubr.bf16.gmra.mxu0 %v2171
      %v3712 = vpop.f32.mrf.mxu0
      %v3713 = vadd.f32 0.0, %v3712
      %v3714 = vpop.f32.mrf.mxu0
      %v3715 = vpop.f32.mrf.mxu0
      %v3716 = vadd.f32 0.0, %v3715
      %v3717 = vpop.f32.mrf.mxu0
      %3718 = vmatprep.mubr.bf16.mxu0 0
      %3719 = vmatmul.mubr.bf16.gmra.mxu0 %v2174
      %v3720 = vpop.f32.mrf.mxu0
      %v3721 = vadd.f32 0.0, %v3720
      %v3722 = vpop.f32.mrf.mxu0
      %v3723 = vpop.f32.mrf.mxu0
      %v3724 = vadd.f32 0.0, %v3723
      %v3725 = vpop.f32.mrf.mxu0
      %3726 = vmatprep.mubr.bf16.mxu0 0
      %3727 = vmatmul.mubr.bf16.gmra.mxu0 %v2177
      %v3728 = vpop.f32.mrf.mxu0
      %v3729 = vadd.f32 0.0, %v3728
      %v3730 = vpop.f32.mrf.mxu0
      %v3731 = vpop.f32.mrf.mxu0
      %v3732 = vadd.f32 0.0, %v3731
      %v3733 = vpop.f32.mrf.mxu0
      %3734 = vmatprep.mubr.bf16.mxu0 0
      %3735 = vmatmul.mubr.bf16.gmra.mxu0 %v2180
      %v3736 = vpop.f32.mrf.mxu0
      %v3737 = vadd.f32 0.0, %v3736
      %v3738 = vpop.f32.mrf.mxu0
      %v3739 = vpop.f32.mrf.mxu0
      %v3740 = vadd.f32 0.0, %v3739
      %v3741 = vpop.f32.mrf.mxu0
      %3742 = vmatprep.mubr.bf16.mxu0 0
      %3743 = vmatmul.mubr.bf16.gmra.mxu0 %v2183
      %v3744 = vpop.f32.mrf.mxu0
      %v3745 = vadd.f32 0.0, %v3744
      %v3746 = vpop.f32.mrf.mxu0
      %v3747 = vpop.f32.mrf.mxu0
      %v3748 = vadd.f32 0.0, %v3747
      %v3749 = vpop.f32.mrf.mxu0
      %3750 = vmatprep.mubr.bf16.mxu0 0
      %3751 = vmatmul.mubr.bf16.gmra.mxu0 %v2186
      %v3752 = vpop.f32.mrf.mxu0
      %v3753 = vadd.f32 0.0, %v3752
      %v3754 = vpop.f32.mrf.mxu0
      %v3755 = vpop.f32.mrf.mxu0
      %v3756 = vadd.f32 0.0, %v3755
      %v3757 = vpop.f32.mrf.mxu0
      %3758 = vmatprep.mubr.bf16.mxu0 0
      %3759 = vmatmul.mubr.bf16.gmra.mxu0 %v2189
      %v3760 = vpop.f32.mrf.mxu0
      %v3761 = vadd.f32 0.0, %v3760
      %v3762 = vpop.f32.mrf.mxu0
      %v3763 = vpop.f32.mrf.mxu0
      %v3764 = vadd.f32 0.0, %v3763
      %v3765 = vpop.f32.mrf.mxu0
      %3766 = vmatprep.mubr.bf16.mxu0 0
      %3767 = vmatmul.mubr.bf16.gmra.mxu0 %v2192
      %v3768 = vpop.f32.mrf.mxu0
      %v3769 = vadd.f32 0.0, %v3768
      %v3770 = vpop.f32.mrf.mxu0
      %v3771 = vpop.f32.mrf.mxu0
      %v3772 = vadd.f32 0.0, %v3771
      %v3773 = vpop.f32.mrf.mxu0
      %3774 = vmatprep.mubr.bf16.mxu0 0
      %3775 = vmatmul.mubr.bf16.gmra.mxu0 %v2195
      %v3776 = vpop.f32.mrf.mxu0
      %v3777 = vadd.f32 0.0, %v3776
      %v3778 = vpop.f32.mrf.mxu0
      %v3779 = vpop.f32.mrf.mxu0
      %v3780 = vadd.f32 0.0, %v3779
      %v3781 = vpop.f32.mrf.mxu0
      %3782 = vmatprep.mubr.bf16.mxu0 0
      %3783 = vmatmul.mubr.bf16.gmra.mxu0 %v2198
      %v3784 = vpop.f32.mrf.mxu0
      %v3785 = vadd.f32 0.0, %v3784
      %v3786 = vpop.f32.mrf.mxu0
      %v3787 = vpop.f32.mrf.mxu0
      %v3788 = vadd.f32 0.0, %v3787
      %v3789 = vpop.f32.mrf.mxu0
      %3790 = vmatprep.mubr.bf16.mxu0 0
      %3791 = vmatmul.mubr.bf16.gmra.mxu0 %v2201
      %v3792 = vpop.f32.mrf.mxu0
      %v3793 = vadd.f32 0.0, %v3792
      %v3794 = vpop.f32.mrf.mxu0
      %v3795 = vpop.f32.mrf.mxu0
      %v3796 = vadd.f32 0.0, %v3795
      %v3797 = vpop.f32.mrf.mxu0
      %3798 = vmatprep.mubr.bf16.mxu0 0
      %3799 = vmatmul.mubr.bf16.gmra.mxu0 %v2204
      %v3800 = vpop.f32.mrf.mxu0
      %v3801 = vadd.f32 0.0, %v3800
      %v3802 = vpop.f32.mrf.mxu0
      %v3803 = vpop.f32.mrf.mxu0
      %v3804 = vadd.f32 0.0, %v3803
      %v3805 = vpop.f32.mrf.mxu0
      %3806 = vdwg.mxu0
      %v3807 = vld [vmem:[%s2] sm:$0x1]
      %v3809 = vlaneseq
      %v3810 = vshrl.u32 %v3809, 7
      %v3811 = vsub.s32 0, %v3810
      %v3812 = vrot.slane %v3807, %v3811
      %v3814 = vmul.f32 %v2241, %v3812
      %v3815 = vmul.f32 %v2244, %v3812
      %v3816 = vmul.f32 %v2249, %v3812
      %v3817 = vmul.f32 %v2252, %v3812
      %v3818 = vmul.f32 %v2257, %v3812
      %v3819 = vmul.f32 %v2260, %v3812
      %v3820 = vmul.f32 %v2265, %v3812
      %v3821 = vmul.f32 %v2268, %v3812
      %v3822 = vmul.f32 %v2273, %v3812
      %v3823 = vmul.f32 %v2276, %v3812
      %v3824 = vmul.f32 %v2281, %v3812
      %v3825 = vmul.f32 %v2284, %v3812
      %v3826 = vmul.f32 %v2289, %v3812
      %v3827 = vmul.f32 %v2292, %v3812
      %v3828 = vmul.f32 %v2297, %v3812
      %v3829 = vmul.f32 %v2300, %v3812
      %v3830 = vmul.f32 %v2305, %v3812
      %v3831 = vmul.f32 %v2308, %v3812
      %v3832 = vmul.f32 %v2313, %v3812
      %v3833 = vmul.f32 %v2316, %v3812
      %v3834 = vmul.f32 %v2321, %v3812
      %v3835 = vmul.f32 %v2324, %v3812
      %v3836 = vmul.f32 %v2329, %v3812
      %v3837 = vmul.f32 %v2332, %v3812
      %v3838 = vmul.f32 %v2337, %v3812
      %v3839 = vmul.f32 %v2340, %v3812
      %v3840 = vmul.f32 %v2345, %v3812
      %v3841 = vmul.f32 %v2348, %v3812
      %v3842 = vmul.f32 %v2353, %v3812
      %v3843 = vmul.f32 %v2356, %v3812
      %v3844 = vmul.f32 %v2361, %v3812
      %v3845 = vmul.f32 %v2364, %v3812
      %v3846 = vmul.f32 %v2369, %v3812
      %v3847 = vmul.f32 %v2372, %v3812
      %v3848 = vmul.f32 %v2377, %v3812
      %v3849 = vmul.f32 %v2380, %v3812
      %v3850 = vmul.f32 %v2385, %v3812
      %v3851 = vmul.f32 %v2388, %v3812
      %v3852 = vmul.f32 %v2393, %v3812
      %v3853 = vmul.f32 %v2396, %v3812
      %v3854 = vmul.f32 %v2401, %v3812
      %v3855 = vmul.f32 %v2404, %v3812
      %v3856 = vmul.f32 %v2409, %v3812
      %v3857 = vmul.f32 %v2412, %v3812
      %v3858 = vmul.f32 %v2417, %v3812
      %v3859 = vmul.f32 %v2420, %v3812
      %v3860 = vmul.f32 %v2425, %v3812
      %v3861 = vmul.f32 %v2428, %v3812
      %v3862 = vmul.f32 %v2433, %v3812
      %v3863 = vmul.f32 %v2436, %v3812
      %v3864 = vmul.f32 %v2441, %v3812
      %v3865 = vmul.f32 %v2444, %v3812
      %v3866 = vmul.f32 %v2449, %v3812
      %v3867 = vmul.f32 %v2452, %v3812
      %v3868 = vmul.f32 %v2457, %v3812
      %v3869 = vmul.f32 %v2460, %v3812
      %v3870 = vmul.f32 %v2465, %v3812
      %v3871 = vmul.f32 %v2468, %v3812
      %v3872 = vmul.f32 %v2473, %v3812
      %v3873 = vmul.f32 %v2476, %v3812
      %v3874 = vmul.f32 %v2481, %v3812
      %v3875 = vmul.f32 %v2484, %v3812
      %v3876 = vmul.f32 %v2489, %v3812
      %v3877 = vmul.f32 %v2492, %v3812
      %v3878 = vmul.f32 %v2497, %v3812
      %v3879 = vmul.f32 %v2500, %v3812
      %v3880 = vmul.f32 %v2505, %v3812
      %v3881 = vmul.f32 %v2508, %v3812
      %v3882 = vmul.f32 %v2513, %v3812
      %v3883 = vmul.f32 %v2516, %v3812
      %v3884 = vmul.f32 %v2521, %v3812
      %v3885 = vmul.f32 %v2524, %v3812
      %v3886 = vmul.f32 %v2529, %v3812
      %v3887 = vmul.f32 %v2532, %v3812
      %v3888 = vmul.f32 %v2537, %v3812
      %v3889 = vmul.f32 %v2540, %v3812
      %v3890 = vmul.f32 %v2545, %v3812
      %v3891 = vmul.f32 %v2548, %v3812
      %v3892 = vmul.f32 %v2553, %v3812
      %v3893 = vmul.f32 %v2556, %v3812
      %v3894 = vmul.f32 %v2561, %v3812
      %v3895 = vmul.f32 %v2564, %v3812
      %v3896 = vmul.f32 %v2569, %v3812
      %v3897 = vmul.f32 %v2572, %v3812
      %v3898 = vmul.f32 %v2577, %v3812
      %v3899 = vmul.f32 %v2580, %v3812
      %v3900 = vmul.f32 %v2585, %v3812
      %v3901 = vmul.f32 %v2588, %v3812
      %v3902 = vmul.f32 %v2593, %v3812
      %v3903 = vmul.f32 %v2596, %v3812
      %v3904 = vmul.f32 %v2601, %v3812
      %v3905 = vmul.f32 %v2604, %v3812
      %v3906 = vmul.f32 %v2609, %v3812
      %v3907 = vmul.f32 %v2612, %v3812
      %v3908 = vmul.f32 %v2617, %v3812
      %v3909 = vmul.f32 %v2620, %v3812
      %v3910 = vmul.f32 %v2625, %v3812
      %v3911 = vmul.f32 %v2628, %v3812
      %v3912 = vmul.f32 %v2633, %v3812
      %v3913 = vmul.f32 %v2636, %v3812
      %v3914 = vmul.f32 %v2641, %v3812
      %v3915 = vmul.f32 %v2644, %v3812
      %v3916 = vmul.f32 %v2649, %v3812
      %v3917 = vmul.f32 %v2652, %v3812
      %v3918 = vmul.f32 %v2657, %v3812
      %v3919 = vmul.f32 %v2660, %v3812
      %v3920 = vmul.f32 %v2665, %v3812
      %v3921 = vmul.f32 %v2668, %v3812
      %v3922 = vmul.f32 %v2673, %v3812
      %v3923 = vmul.f32 %v2676, %v3812
      %v3924 = vmul.f32 %v2681, %v3812
      %v3925 = vmul.f32 %v2684, %v3812
      %v3926 = vmul.f32 %v2689, %v3812
      %v3927 = vmul.f32 %v2692, %v3812
      %v3928 = vmul.f32 %v2697, %v3812
      %v3929 = vmul.f32 %v2700, %v3812
      %v3930 = vmul.f32 %v2705, %v3812
      %v3931 = vmul.f32 %v2708, %v3812
      %v3932 = vmul.f32 %v2713, %v3812
      %v3933 = vmul.f32 %v2716, %v3812
      %v3934 = vmul.f32 %v2721, %v3812
      %v3935 = vmul.f32 %v2724, %v3812
      %v3936 = vmul.f32 %v2729, %v3812
      %v3937 = vmul.f32 %v2732, %v3812
      %v3938 = vmul.f32 %v2737, %v3812
      %v3939 = vmul.f32 %v2740, %v3812
      %v3940 = vmul.f32 %v2745, %v3812
      %v3941 = vmul.f32 %v2748, %v3812
      %v3942 = vmul.f32 %v2753, %v3812
      %v3943 = vmul.f32 %v2756, %v3812
      %v3944 = vmul.f32 %v2761, %v3812
      %v3945 = vmul.f32 %v2764, %v3812
      %v3946 = vmul.f32 %v2769, %v3812
      %v3947 = vmul.f32 %v2772, %v3812
      %v3948 = vmul.f32 %v2777, %v3812
      %v3949 = vmul.f32 %v2780, %v3812
      %v3950 = vmul.f32 %v2785, %v3812
      %v3951 = vmul.f32 %v2788, %v3812
      %v3952 = vmul.f32 %v2793, %v3812
      %v3953 = vmul.f32 %v2796, %v3812
      %v3954 = vmul.f32 %v2801, %v3812
      %v3955 = vmul.f32 %v2804, %v3812
      %v3956 = vmul.f32 %v2809, %v3812
      %v3957 = vmul.f32 %v2812, %v3812
      %v3958 = vmul.f32 %v2817, %v3812
      %v3959 = vmul.f32 %v2820, %v3812
      %v3960 = vmul.f32 %v2825, %v3812
      %v3961 = vmul.f32 %v2828, %v3812
      %v3962 = vmul.f32 %v2833, %v3812
      %v3963 = vmul.f32 %v2836, %v3812
      %v3964 = vmul.f32 %v2841, %v3812
      %v3965 = vmul.f32 %v2844, %v3812
      %v3966 = vmul.f32 %v2849, %v3812
      %v3967 = vmul.f32 %v2852, %v3812
      %v3968 = vmul.f32 %v2857, %v3812
      %v3969 = vmul.f32 %v2860, %v3812
      %v3970 = vmul.f32 %v2865, %v3812
      %v3971 = vmul.f32 %v2868, %v3812
      %v3972 = vmul.f32 %v2873, %v3812
      %v3973 = vmul.f32 %v2876, %v3812
      %v3974 = vmul.f32 %v2881, %v3812
      %v3975 = vmul.f32 %v2884, %v3812
      %v3976 = vmul.f32 %v2889, %v3812
      %v3977 = vmul.f32 %v2892, %v3812
      %v3978 = vmul.f32 %v2897, %v3812
      %v3979 = vmul.f32 %v2900, %v3812
      %v3980 = vmul.f32 %v2905, %v3812
      %v3981 = vmul.f32 %v2908, %v3812
      %v3982 = vmul.f32 %v2913, %v3812
      %v3983 = vmul.f32 %v2916, %v3812
      %v3984 = vmul.f32 %v2921, %v3812
      %v3985 = vmul.f32 %v2924, %v3812
      %v3986 = vmul.f32 %v2929, %v3812
      %v3987 = vmul.f32 %v2932, %v3812
      %v3988 = vmul.f32 %v2937, %v3812
      %v3989 = vmul.f32 %v2940, %v3812
      %v3990 = vmul.f32 %v2945, %v3812
      %v3991 = vmul.f32 %v2948, %v3812
      %v3992 = vmul.f32 %v2953, %v3812
      %v3993 = vmul.f32 %v2956, %v3812
      %v3994 = vmul.f32 %v2961, %v3812
      %v3995 = vmul.f32 %v2964, %v3812
      %v3996 = vmul.f32 %v2969, %v3812
      %v3997 = vmul.f32 %v2972, %v3812
      %v3998 = vmul.f32 %v2977, %v3812
      %v3999 = vmul.f32 %v2980, %v3812
      %v4000 = vmul.f32 %v2985, %v3812
      %v4001 = vmul.f32 %v2988, %v3812
      %v4002 = vmul.f32 %v2993, %v3812
      %v4003 = vmul.f32 %v2996, %v3812
      %v4004 = vmul.f32 %v3001, %v3812
      %v4005 = vmul.f32 %v3004, %v3812
      %v4006 = vmul.f32 %v3009, %v3812
      %v4007 = vmul.f32 %v3012, %v3812
      %v4008 = vmul.f32 %v3017, %v3812
      %v4009 = vmul.f32 %v3020, %v3812
      %v4010 = vmul.f32 %v3025, %v3812
      %v4011 = vmul.f32 %v3028, %v3812
      %v4012 = vmul.f32 %v3033, %v3812
      %v4013 = vmul.f32 %v3036, %v3812
      %v4014 = vmul.f32 %v3041, %v3812
      %v4015 = vmul.f32 %v3044, %v3812
      %v4016 = vmul.f32 %v3049, %v3812
      %v4017 = vmul.f32 %v3052, %v3812
      %v4018 = vmul.f32 %v3057, %v3812
      %v4019 = vmul.f32 %v3060, %v3812
      %v4020 = vmul.f32 %v3065, %v3812
      %v4021 = vmul.f32 %v3068, %v3812
      %v4022 = vmul.f32 %v3073, %v3812
      %v4023 = vmul.f32 %v3076, %v3812
      %v4024 = vmul.f32 %v3081, %v3812
      %v4025 = vmul.f32 %v3084, %v3812
      %v4026 = vmul.f32 %v3089, %v3812
      %v4027 = vmul.f32 %v3092, %v3812
      %v4028 = vmul.f32 %v3097, %v3812
      %v4029 = vmul.f32 %v3100, %v3812
      %v4030 = vmul.f32 %v3105, %v3812
      %v4031 = vmul.f32 %v3108, %v3812
      %v4032 = vmul.f32 %v3113, %v3812
      %v4033 = vmul.f32 %v3116, %v3812
      %v4034 = vmul.f32 %v3121, %v3812
      %v4035 = vmul.f32 %v3124, %v3812
      %v4036 = vmul.f32 %v3129, %v3812
      %v4037 = vmul.f32 %v3132, %v3812
      %v4038 = vmul.f32 %v3137, %v3812
      %v4039 = vmul.f32 %v3140, %v3812
      %v4040 = vmul.f32 %v3145, %v3812
      %v4041 = vmul.f32 %v3148, %v3812
      %v4042 = vmul.f32 %v3153, %v3812
      %v4043 = vmul.f32 %v3156, %v3812
      %v4044 = vmul.f32 %v3161, %v3812
      %v4045 = vmul.f32 %v3164, %v3812
      %v4046 = vmul.f32 %v3169, %v3812
      %v4047 = vmul.f32 %v3172, %v3812
      %v4048 = vmul.f32 %v3177, %v3812
      %v4049 = vmul.f32 %v3180, %v3812
      %v4050 = vmul.f32 %v3185, %v3812
      %v4051 = vmul.f32 %v3188, %v3812
      %v4052 = vmul.f32 %v3193, %v3812
      %v4053 = vmul.f32 %v3196, %v3812
      %v4054 = vmul.f32 %v3201, %v3812
      %v4055 = vmul.f32 %v3204, %v3812
      %v4056 = vmul.f32 %v3209, %v3812
      %v4057 = vmul.f32 %v3212, %v3812
      %v4058 = vmul.f32 %v3217, %v3812
      %v4059 = vmul.f32 %v3220, %v3812
      %v4060 = vmul.f32 %v3225, %v3812
      %v4061 = vmul.f32 %v3228, %v3812
      %v4062 = vmul.f32 %v3233, %v3812
      %v4063 = vmul.f32 %v3236, %v3812
      %v4064 = vmul.f32 %v3241, %v3812
      %v4065 = vmul.f32 %v3244, %v3812
      %v4066 = vmul.f32 %v3249, %v3812
      %v4067 = vmul.f32 %v3252, %v3812
      %v4068 = vmul.f32 %v3257, %v3812
      %v4069 = vmul.f32 %v3260, %v3812
      %v4070 = vmul.f32 %v3265, %v3812
      %v4071 = vmul.f32 %v3268, %v3812
      %v4072 = vmul.f32 %v3273, %v3812
      %v4073 = vmul.f32 %v3276, %v3812
      %v4074 = vmul.f32 %v3281, %v3812
      %v4075 = vmul.f32 %v3284, %v3812
      %v4076 = vmul.f32 %v3289, %v3812
      %v4077 = vmul.f32 %v3292, %v3812
      %v4078 = vmul.f32 %v3297, %v3812
      %v4079 = vmul.f32 %v3300, %v3812
      %v4080 = vmul.f32 %v3305, %v3812
      %v4081 = vmul.f32 %v3308, %v3812
      %v4082 = vmul.f32 %v3313, %v3812
      %v4083 = vmul.f32 %v3316, %v3812
      %v4084 = vmul.f32 %v3321, %v3812
      %v4085 = vmul.f32 %v3324, %v3812
      %v4086 = vmul.f32 %v3329, %v3812
      %v4087 = vmul.f32 %v3332, %v3812
      %v4088 = vmul.f32 %v3337, %v3812
      %v4089 = vmul.f32 %v3340, %v3812
      %v4090 = vmul.f32 %v3345, %v3812
      %v4091 = vmul.f32 %v3348, %v3812
      %v4092 = vmul.f32 %v3353, %v3812
      %v4093 = vmul.f32 %v3356, %v3812
      %v4094 = vmul.f32 %v3361, %v3812
      %v4095 = vmul.f32 %v3364, %v3812
      %v4096 = vmul.f32 %v3369, %v3812
      %v4097 = vmul.f32 %v3372, %v3812
      %v4098 = vmul.f32 %v3377, %v3812
      %v4099 = vmul.f32 %v3380, %v3812
      %v4100 = vmul.f32 %v3385, %v3812
      %v4101 = vmul.f32 %v3388, %v3812
      %v4102 = vmul.f32 %v3393, %v3812
      %v4103 = vmul.f32 %v3396, %v3812
      %v4104 = vmul.f32 %v3401, %v3812
      %v4105 = vmul.f32 %v3404, %v3812
      %v4106 = vmul.f32 %v3409, %v3812
      %v4107 = vmul.f32 %v3412, %v3812
      %v4108 = vmul.f32 %v3417, %v3812
      %v4109 = vmul.f32 %v3420, %v3812
      %v4110 = vmul.f32 %v3425, %v3812
      %v4111 = vmul.f32 %v3428, %v3812
      %v4112 = vmul.f32 %v3433, %v3812
      %v4113 = vmul.f32 %v3436, %v3812
      %v4114 = vmul.f32 %v3441, %v3812
      %v4115 = vmul.f32 %v3444, %v3812
      %v4116 = vmul.f32 %v3449, %v3812
      %v4117 = vmul.f32 %v3452, %v3812
      %v4118 = vmul.f32 %v3457, %v3812
      %v4119 = vmul.f32 %v3460, %v3812
      %v4120 = vmul.f32 %v3465, %v3812
      %v4121 = vmul.f32 %v3468, %v3812
      %v4122 = vmul.f32 %v3473, %v3812
      %v4123 = vmul.f32 %v3476, %v3812
      %v4124 = vmul.f32 %v3481, %v3812
      %v4125 = vmul.f32 %v3484, %v3812
      %v4126 = vmul.f32 %v3489, %v3812
      %v4127 = vmul.f32 %v3492, %v3812
      %v4128 = vmul.f32 %v3497, %v3812
      %v4129 = vmul.f32 %v3500, %v3812
      %v4130 = vmul.f32 %v3505, %v3812
      %v4131 = vmul.f32 %v3508, %v3812
      %v4132 = vmul.f32 %v3513, %v3812
      %v4133 = vmul.f32 %v3516, %v3812
      %v4134 = vmul.f32 %v3521, %v3812
      %v4135 = vmul.f32 %v3524, %v3812
      %v4136 = vmul.f32 %v3529, %v3812
      %v4137 = vmul.f32 %v3532, %v3812
      %v4138 = vmul.f32 %v3537, %v3812
      %v4139 = vmul.f32 %v3540, %v3812
      %v4140 = vmul.f32 %v3545, %v3812
      %v4141 = vmul.f32 %v3548, %v3812
      %v4142 = vmul.f32 %v3553, %v3812
      %v4143 = vmul.f32 %v3556, %v3812
      %v4144 = vmul.f32 %v3561, %v3812
      %v4145 = vmul.f32 %v3564, %v3812
      %v4146 = vmul.f32 %v3569, %v3812
      %v4147 = vmul.f32 %v3572, %v3812
      %v4148 = vmul.f32 %v3577, %v3812
      %v4149 = vmul.f32 %v3580, %v3812
      %v4150 = vmul.f32 %v3585, %v3812
      %v4151 = vmul.f32 %v3588, %v3812
      %v4152 = vmul.f32 %v3593, %v3812
      %v4153 = vmul.f32 %v3596, %v3812
      %v4154 = vmul.f32 %v3601, %v3812
      %v4155 = vmul.f32 %v3604, %v3812
      %v4156 = vmul.f32 %v3609, %v3812
      %v4157 = vmul.f32 %v3612, %v3812
      %v4158 = vmul.f32 %v3617, %v3812
      %v4159 = vmul.f32 %v3620, %v3812
      %v4160 = vmul.f32 %v3625, %v3812
      %v4161 = vmul.f32 %v3628, %v3812
      %v4162 = vmul.f32 %v3633, %v3812
      %v4163 = vmul.f32 %v3636, %v3812
      %v4164 = vmul.f32 %v3641, %v3812
      %v4165 = vmul.f32 %v3644, %v3812
      %v4166 = vmul.f32 %v3649, %v3812
      %v4167 = vmul.f32 %v3652, %v3812
      %v4168 = vmul.f32 %v3657, %v3812
      %v4169 = vmul.f32 %v3660, %v3812
      %v4170 = vmul.f32 %v3665, %v3812
      %v4171 = vmul.f32 %v3668, %v3812
      %v4172 = vmul.f32 %v3673, %v3812
      %v4173 = vmul.f32 %v3676, %v3812
      %v4174 = vmul.f32 %v3681, %v3812
      %v4175 = vmul.f32 %v3684, %v3812
      %v4176 = vmul.f32 %v3689, %v3812
      %v4177 = vmul.f32 %v3692, %v3812
      %v4178 = vmul.f32 %v3697, %v3812
      %v4179 = vmul.f32 %v3700, %v3812
      %v4180 = vmul.f32 %v3705, %v3812
      %v4181 = vmul.f32 %v3708, %v3812
      %v4182 = vmul.f32 %v3713, %v3812
      %v4183 = vmul.f32 %v3716, %v3812
      %v4184 = vmul.f32 %v3721, %v3812
      %v4185 = vmul.f32 %v3724, %v3812
      %v4186 = vmul.f32 %v3729, %v3812
      %v4187 = vmul.f32 %v3732, %v3812
      %v4188 = vmul.f32 %v3737, %v3812
      %v4189 = vmul.f32 %v3740, %v3812
      %v4190 = vmul.f32 %v3745, %v3812
      %v4191 = vmul.f32 %v3748, %v3812
      %v4192 = vmul.f32 %v3753, %v3812
      %v4193 = vmul.f32 %v3756, %v3812
      %v4194 = vmul.f32 %v3761, %v3812
      %v4195 = vmul.f32 %v3764, %v3812
      %v4196 = vmul.f32 %v3769, %v3812
      %v4197 = vmul.f32 %v3772, %v3812
      %v4198 = vmul.f32 %v3777, %v3812
      %v4199 = vmul.f32 %v3780, %v3812
      %v4200 = vmul.f32 %v3785, %v3812
      %v4201 = vmul.f32 %v3788, %v3812
      %v4202 = vmul.f32 %v3793, %v3812
      %v4203 = vmul.f32 %v3796, %v3812
      %v4204 = vmul.f32 %v3801, %v3812
      %v4205 = vmul.f32 %v3804, %v3812
      %v4206 = vld [vmem:[%s3] sm:$0x1]
      %v4208 = vlaneseq
      %v4209 = vshrl.u32 %v4208, 7
      %v4210 = vsub.s32 0, %v4209
      %v4211 = vrot.slane %v4206, %v4210
      %v4213 = vadd.f32 %v3814, %v4211
      %v4214 = vadd.f32 %v3815, %v4211
      %v4215 = vadd.f32 %v3816, %v4211
      %v4216 = vadd.f32 %v3817, %v4211
      %v4217 = vadd.f32 %v3818, %v4211
      %v4218 = vadd.f32 %v3819, %v4211
      %v4219 = vadd.f32 %v3820, %v4211
      %v4220 = vadd.f32 %v3821, %v4211
      %v4221 = vadd.f32 %v3822, %v4211
      %v4222 = vadd.f32 %v3823, %v4211
      %v4223 = vadd.f32 %v3824, %v4211
      %v4224 = vadd.f32 %v3825, %v4211
      %v4225 = vadd.f32 %v3826, %v4211
      %v4226 = vadd.f32 %v3827, %v4211
      %v4227 = vadd.f32 %v3828, %v4211
      %v4228 = vadd.f32 %v3829, %v4211
      %v4229 = vadd.f32 %v3830, %v4211
      %v4230 = vadd.f32 %v3831, %v4211
      %v4231 = vadd.f32 %v3832, %v4211
      %v4232 = vadd.f32 %v3833, %v4211
      %v4233 = vadd.f32 %v3834, %v4211
      %v4234 = vadd.f32 %v3835, %v4211
      %v4235 = vadd.f32 %v3836, %v4211
      %v4236 = vadd.f32 %v3837, %v4211
      %v4237 = vadd.f32 %v3838, %v4211
      %v4238 = vadd.f32 %v3839, %v4211
      %v4239 = vadd.f32 %v3840, %v4211
      %v4240 = vadd.f32 %v3841, %v4211
      %v4241 = vadd.f32 %v3842, %v4211
      %v4242 = vadd.f32 %v3843, %v4211
      %v4243 = vadd.f32 %v3844, %v4211
      %v4244 = vadd.f32 %v3845, %v4211
      %v4245 = vadd.f32 %v3846, %v4211
      %v4246 = vadd.f32 %v3847, %v4211
      %v4247 = vadd.f32 %v3848, %v4211
      %v4248 = vadd.f32 %v3849, %v4211
      %v4249 = vadd.f32 %v3850, %v4211
      %v4250 = vadd.f32 %v3851, %v4211
      %v4251 = vadd.f32 %v3852, %v4211
      %v4252 = vadd.f32 %v3853, %v4211
      %v4253 = vadd.f32 %v3854, %v4211
      %v4254 = vadd.f32 %v3855, %v4211
      %v4255 = vadd.f32 %v3856, %v4211
      %v4256 = vadd.f32 %v3857, %v4211
      %v4257 = vadd.f32 %v3858, %v4211
      %v4258 = vadd.f32 %v3859, %v4211
      %v4259 = vadd.f32 %v3860, %v4211
      %v4260 = vadd.f32 %v3861, %v4211
      %v4261 = vadd.f32 %v3862, %v4211
      %v4262 = vadd.f32 %v3863, %v4211
      %v4263 = vadd.f32 %v3864, %v4211
      %v4264 = vadd.f32 %v3865, %v4211
      %v4265 = vadd.f32 %v3866, %v4211
      %v4266 = vadd.f32 %v3867, %v4211
      %v4267 = vadd.f32 %v3868, %v4211
      %v4268 = vadd.f32 %v3869, %v4211
      %v4269 = vadd.f32 %v3870, %v4211
      %v4270 = vadd.f32 %v3871, %v4211
      %v4271 = vadd.f32 %v3872, %v4211
      %v4272 = vadd.f32 %v3873, %v4211
      %v4273 = vadd.f32 %v3874, %v4211
      %v4274 = vadd.f32 %v3875, %v4211
      %v4275 = vadd.f32 %v3876, %v4211
      %v4276 = vadd.f32 %v3877, %v4211
      %v4277 = vadd.f32 %v3878, %v4211
      %v4278 = vadd.f32 %v3879, %v4211
      %v4279 = vadd.f32 %v3880, %v4211
      %v4280 = vadd.f32 %v3881, %v4211
      %v4281 = vadd.f32 %v3882, %v4211
      %v4282 = vadd.f32 %v3883, %v4211
      %v4283 = vadd.f32 %v3884, %v4211
      %v4284 = vadd.f32 %v3885, %v4211
      %v4285 = vadd.f32 %v3886, %v4211
      %v4286 = vadd.f32 %v3887, %v4211
      %v4287 = vadd.f32 %v3888, %v4211
      %v4288 = vadd.f32 %v3889, %v4211
      %v4289 = vadd.f32 %v3890, %v4211
      %v4290 = vadd.f32 %v3891, %v4211
      %v4291 = vadd.f32 %v3892, %v4211
      %v4292 = vadd.f32 %v3893, %v4211
      %v4293 = vadd.f32 %v3894, %v4211
      %v4294 = vadd.f32 %v3895, %v4211
      %v4295 = vadd.f32 %v3896, %v4211
      %v4296 = vadd.f32 %v3897, %v4211
      %v4297 = vadd.f32 %v3898, %v4211
      %v4298 = vadd.f32 %v3899, %v4211
      %v4299 = vadd.f32 %v3900, %v4211
      %v4300 = vadd.f32 %v3901, %v4211
      %v4301 = vadd.f32 %v3902, %v4211
      %v4302 = vadd.f32 %v3903, %v4211
      %v4303 = vadd.f32 %v3904, %v4211
      %v4304 = vadd.f32 %v3905, %v4211
      %v4305 = vadd.f32 %v3906, %v4211
      %v4306 = vadd.f32 %v3907, %v4211
      %v4307 = vadd.f32 %v3908, %v4211
      %v4308 = vadd.f32 %v3909, %v4211
      %v4309 = vadd.f32 %v3910, %v4211
      %v4310 = vadd.f32 %v3911, %v4211
      %v4311 = vadd.f32 %v3912, %v4211
      %v4312 = vadd.f32 %v3913, %v4211
      %v4313 = vadd.f32 %v3914, %v4211
      %v4314 = vadd.f32 %v3915, %v4211
      %v4315 = vadd.f32 %v3916, %v4211
      %v4316 = vadd.f32 %v3917, %v4211
      %v4317 = vadd.f32 %v3918, %v4211
      %v4318 = vadd.f32 %v3919, %v4211
      %v4319 = vadd.f32 %v3920, %v4211
      %v4320 = vadd.f32 %v3921, %v4211
      %v4321 = vadd.f32 %v3922, %v4211
      %v4322 = vadd.f32 %v3923, %v4211
      %v4323 = vadd.f32 %v3924, %v4211
      %v4324 = vadd.f32 %v3925, %v4211
      %v4325 = vadd.f32 %v3926, %v4211
      %v4326 = vadd.f32 %v3927, %v4211
      %v4327 = vadd.f32 %v3928, %v4211
      %v4328 = vadd.f32 %v3929, %v4211
      %v4329 = vadd.f32 %v3930, %v4211
      %v4330 = vadd.f32 %v3931, %v4211
      %v4331 = vadd.f32 %v3932, %v4211
      %v4332 = vadd.f32 %v3933, %v4211
      %v4333 = vadd.f32 %v3934, %v4211
      %v4334 = vadd.f32 %v3935, %v4211
      %v4335 = vadd.f32 %v3936, %v4211
      %v4336 = vadd.f32 %v3937, %v4211
      %v4337 = vadd.f32 %v3938, %v4211
      %v4338 = vadd.f32 %v3939, %v4211
      %v4339 = vadd.f32 %v3940, %v4211
      %v4340 = vadd.f32 %v3941, %v4211
      %v4341 = vadd.f32 %v3942, %v4211
      %v4342 = vadd.f32 %v3943, %v4211
      %v4343 = vadd.f32 %v3944, %v4211
      %v4344 = vadd.f32 %v3945, %v4211
      %v4345 = vadd.f32 %v3946, %v4211
      %v4346 = vadd.f32 %v3947, %v4211
      %v4347 = vadd.f32 %v3948, %v4211
      %v4348 = vadd.f32 %v3949, %v4211
      %v4349 = vadd.f32 %v3950, %v4211
      %v4350 = vadd.f32 %v3951, %v4211
      %v4351 = vadd.f32 %v3952, %v4211
      %v4352 = vadd.f32 %v3953, %v4211
      %v4353 = vadd.f32 %v3954, %v4211
      %v4354 = vadd.f32 %v3955, %v4211
      %v4355 = vadd.f32 %v3956, %v4211
      %v4356 = vadd.f32 %v3957, %v4211
      %v4357 = vadd.f32 %v3958, %v4211
      %v4358 = vadd.f32 %v3959, %v4211
      %v4359 = vadd.f32 %v3960, %v4211
      %v4360 = vadd.f32 %v3961, %v4211
      %v4361 = vadd.f32 %v3962, %v4211
      %v4362 = vadd.f32 %v3963, %v4211
      %v4363 = vadd.f32 %v3964, %v4211
      %v4364 = vadd.f32 %v3965, %v4211
      %v4365 = vadd.f32 %v3966, %v4211
      %v4366 = vadd.f32 %v3967, %v4211
      %v4367 = vadd.f32 %v3968, %v4211
      %v4368 = vadd.f32 %v3969, %v4211
      %v4369 = vadd.f32 %v3970, %v4211
      %v4370 = vadd.f32 %v3971, %v4211
      %v4371 = vadd.f32 %v3972, %v4211
      %v4372 = vadd.f32 %v3973, %v4211
      %v4373 = vadd.f32 %v3974, %v4211
      %v4374 = vadd.f32 %v3975, %v4211
      %v4375 = vadd.f32 %v3976, %v4211
      %v4376 = vadd.f32 %v3977, %v4211
      %v4377 = vadd.f32 %v3978, %v4211
      %v4378 = vadd.f32 %v3979, %v4211
      %v4379 = vadd.f32 %v3980, %v4211
      %v4380 = vadd.f32 %v3981, %v4211
      %v4381 = vadd.f32 %v3982, %v4211
      %v4382 = vadd.f32 %v3983, %v4211
      %v4383 = vadd.f32 %v3984, %v4211
      %v4384 = vadd.f32 %v3985, %v4211
      %v4385 = vadd.f32 %v3986, %v4211
      %v4386 = vadd.f32 %v3987, %v4211
      %v4387 = vadd.f32 %v3988, %v4211
      %v4388 = vadd.f32 %v3989, %v4211
      %v4389 = vadd.f32 %v3990, %v4211
      %v4390 = vadd.f32 %v3991, %v4211
      %v4391 = vadd.f32 %v3992, %v4211
      %v4392 = vadd.f32 %v3993, %v4211
      %v4393 = vadd.f32 %v3994, %v4211
      %v4394 = vadd.f32 %v3995, %v4211
      %v4395 = vadd.f32 %v3996, %v4211
      %v4396 = vadd.f32 %v3997, %v4211
      %v4397 = vadd.f32 %v3998, %v4211
      %v4398 = vadd.f32 %v3999, %v4211
      %v4399 = vadd.f32 %v4000, %v4211
      %v4400 = vadd.f32 %v4001, %v4211
      %v4401 = vadd.f32 %v4002, %v4211
      %v4402 = vadd.f32 %v4003, %v4211
      %v4403 = vadd.f32 %v4004, %v4211
      %v4404 = vadd.f32 %v4005, %v4211
      %v4405 = vadd.f32 %v4006, %v4211
      %v4406 = vadd.f32 %v4007, %v4211
      %v4407 = vadd.f32 %v4008, %v4211
      %v4408 = vadd.f32 %v4009, %v4211
      %v4409 = vadd.f32 %v4010, %v4211
      %v4410 = vadd.f32 %v4011, %v4211
      %v4411 = vadd.f32 %v4012, %v4211
      %v4412 = vadd.f32 %v4013, %v4211
      %v4413 = vadd.f32 %v4014, %v4211
      %v4414 = vadd.f32 %v4015, %v4211
      %v4415 = vadd.f32 %v4016, %v4211
      %v4416 = vadd.f32 %v4017, %v4211
      %v4417 = vadd.f32 %v4018, %v4211
      %v4418 = vadd.f32 %v4019, %v4211
      %v4419 = vadd.f32 %v4020, %v4211
      %v4420 = vadd.f32 %v4021, %v4211
      %v4421 = vadd.f32 %v4022, %v4211
      %v4422 = vadd.f32 %v4023, %v4211
      %v4423 = vadd.f32 %v4024, %v4211
      %v4424 = vadd.f32 %v4025, %v4211
      %v4425 = vadd.f32 %v4026, %v4211
      %v4426 = vadd.f32 %v4027, %v4211
      %v4427 = vadd.f32 %v4028, %v4211
      %v4428 = vadd.f32 %v4029, %v4211
      %v4429 = vadd.f32 %v4030, %v4211
      %v4430 = vadd.f32 %v4031, %v4211
      %v4431 = vadd.f32 %v4032, %v4211
      %v4432 = vadd.f32 %v4033, %v4211
      %v4433 = vadd.f32 %v4034, %v4211
      %v4434 = vadd.f32 %v4035, %v4211
      %v4435 = vadd.f32 %v4036, %v4211
      %v4436 = vadd.f32 %v4037, %v4211
      %v4437 = vadd.f32 %v4038, %v4211
      %v4438 = vadd.f32 %v4039, %v4211
      %v4439 = vadd.f32 %v4040, %v4211
      %v4440 = vadd.f32 %v4041, %v4211
      %v4441 = vadd.f32 %v4042, %v4211
      %v4442 = vadd.f32 %v4043, %v4211
      %v4443 = vadd.f32 %v4044, %v4211
      %v4444 = vadd.f32 %v4045, %v4211
      %v4445 = vadd.f32 %v4046, %v4211
      %v4446 = vadd.f32 %v4047, %v4211
      %v4447 = vadd.f32 %v4048, %v4211
      %v4448 = vadd.f32 %v4049, %v4211
      %v4449 = vadd.f32 %v4050, %v4211
      %v4450 = vadd.f32 %v4051, %v4211
      %v4451 = vadd.f32 %v4052, %v4211
      %v4452 = vadd.f32 %v4053, %v4211
      %v4453 = vadd.f32 %v4054, %v4211
      %v4454 = vadd.f32 %v4055, %v4211
      %v4455 = vadd.f32 %v4056, %v4211
      %v4456 = vadd.f32 %v4057, %v4211
      %v4457 = vadd.f32 %v4058, %v4211
      %v4458 = vadd.f32 %v4059, %v4211
      %v4459 = vadd.f32 %v4060, %v4211
      %v4460 = vadd.f32 %v4061, %v4211
      %v4461 = vadd.f32 %v4062, %v4211
      %v4462 = vadd.f32 %v4063, %v4211
      %v4463 = vadd.f32 %v4064, %v4211
      %v4464 = vadd.f32 %v4065, %v4211
      %v4465 = vadd.f32 %v4066, %v4211
      %v4466 = vadd.f32 %v4067, %v4211
      %v4467 = vadd.f32 %v4068, %v4211
      %v4468 = vadd.f32 %v4069, %v4211
      %v4469 = vadd.f32 %v4070, %v4211
      %v4470 = vadd.f32 %v4071, %v4211
      %v4471 = vadd.f32 %v4072, %v4211
      %v4472 = vadd.f32 %v4073, %v4211
      %v4473 = vadd.f32 %v4074, %v4211
      %v4474 = vadd.f32 %v4075, %v4211
      %v4475 = vadd.f32 %v4076, %v4211
      %v4476 = vadd.f32 %v4077, %v4211
      %v4477 = vadd.f32 %v4078, %v4211
      %v4478 = vadd.f32 %v4079, %v4211
      %v4479 = vadd.f32 %v4080, %v4211
      %v4480 = vadd.f32 %v4081, %v4211
      %v4481 = vadd.f32 %v4082, %v4211
      %v4482 = vadd.f32 %v4083, %v4211
      %v4483 = vadd.f32 %v4084, %v4211
      %v4484 = vadd.f32 %v4085, %v4211
      %v4485 = vadd.f32 %v4086, %v4211
      %v4486 = vadd.f32 %v4087, %v4211
      %v4487 = vadd.f32 %v4088, %v4211
      %v4488 = vadd.f32 %v4089, %v4211
      %v4489 = vadd.f32 %v4090, %v4211
      %v4490 = vadd.f32 %v4091, %v4211
      %v4491 = vadd.f32 %v4092, %v4211
      %v4492 = vadd.f32 %v4093, %v4211
      %v4493 = vadd.f32 %v4094, %v4211
      %v4494 = vadd.f32 %v4095, %v4211
      %v4495 = vadd.f32 %v4096, %v4211
      %v4496 = vadd.f32 %v4097, %v4211
      %v4497 = vadd.f32 %v4098, %v4211
      %v4498 = vadd.f32 %v4099, %v4211
      %v4499 = vadd.f32 %v4100, %v4211
      %v4500 = vadd.f32 %v4101, %v4211
      %v4501 = vadd.f32 %v4102, %v4211
      %v4502 = vadd.f32 %v4103, %v4211
      %v4503 = vadd.f32 %v4104, %v4211
      %v4504 = vadd.f32 %v4105, %v4211
      %v4505 = vadd.f32 %v4106, %v4211
      %v4506 = vadd.f32 %v4107, %v4211
      %v4507 = vadd.f32 %v4108, %v4211
      %v4508 = vadd.f32 %v4109, %v4211
      %v4509 = vadd.f32 %v4110, %v4211
      %v4510 = vadd.f32 %v4111, %v4211
      %v4511 = vadd.f32 %v4112, %v4211
      %v4512 = vadd.f32 %v4113, %v4211
      %v4513 = vadd.f32 %v4114, %v4211
      %v4514 = vadd.f32 %v4115, %v4211
      %v4515 = vadd.f32 %v4116, %v4211
      %v4516 = vadd.f32 %v4117, %v4211
      %v4517 = vadd.f32 %v4118, %v4211
      %v4518 = vadd.f32 %v4119, %v4211
      %v4519 = vadd.f32 %v4120, %v4211
      %v4520 = vadd.f32 %v4121, %v4211
      %v4521 = vadd.f32 %v4122, %v4211
      %v4522 = vadd.f32 %v4123, %v4211
      %v4523 = vadd.f32 %v4124, %v4211
      %v4524 = vadd.f32 %v4125, %v4211
      %v4525 = vadd.f32 %v4126, %v4211
      %v4526 = vadd.f32 %v4127, %v4211
      %v4527 = vadd.f32 %v4128, %v4211
      %v4528 = vadd.f32 %v4129, %v4211
      %v4529 = vadd.f32 %v4130, %v4211
      %v4530 = vadd.f32 %v4131, %v4211
      %v4531 = vadd.f32 %v4132, %v4211
      %v4532 = vadd.f32 %v4133, %v4211
      %v4533 = vadd.f32 %v4134, %v4211
      %v4534 = vadd.f32 %v4135, %v4211
      %v4535 = vadd.f32 %v4136, %v4211
      %v4536 = vadd.f32 %v4137, %v4211
      %v4537 = vadd.f32 %v4138, %v4211
      %v4538 = vadd.f32 %v4139, %v4211
      %v4539 = vadd.f32 %v4140, %v4211
      %v4540 = vadd.f32 %v4141, %v4211
      %v4541 = vadd.f32 %v4142, %v4211
      %v4542 = vadd.f32 %v4143, %v4211
      %v4543 = vadd.f32 %v4144, %v4211
      %v4544 = vadd.f32 %v4145, %v4211
      %v4545 = vadd.f32 %v4146, %v4211
      %v4546 = vadd.f32 %v4147, %v4211
      %v4547 = vadd.f32 %v4148, %v4211
      %v4548 = vadd.f32 %v4149, %v4211
      %v4549 = vadd.f32 %v4150, %v4211
      %v4550 = vadd.f32 %v4151, %v4211
      %v4551 = vadd.f32 %v4152, %v4211
      %v4552 = vadd.f32 %v4153, %v4211
      %v4553 = vadd.f32 %v4154, %v4211
      %v4554 = vadd.f32 %v4155, %v4211
      %v4555 = vadd.f32 %v4156, %v4211
      %v4556 = vadd.f32 %v4157, %v4211
      %v4557 = vadd.f32 %v4158, %v4211
      %v4558 = vadd.f32 %v4159, %v4211
      %v4559 = vadd.f32 %v4160, %v4211
      %v4560 = vadd.f32 %v4161, %v4211
      %v4561 = vadd.f32 %v4162, %v4211
      %v4562 = vadd.f32 %v4163, %v4211
      %v4563 = vadd.f32 %v4164, %v4211
      %v4564 = vadd.f32 %v4165, %v4211
      %v4565 = vadd.f32 %v4166, %v4211
      %v4566 = vadd.f32 %v4167, %v4211
      %v4567 = vadd.f32 %v4168, %v4211
      %v4568 = vadd.f32 %v4169, %v4211
      %v4569 = vadd.f32 %v4170, %v4211
      %v4570 = vadd.f32 %v4171, %v4211
      %v4571 = vadd.f32 %v4172, %v4211
      %v4572 = vadd.f32 %v4173, %v4211
      %v4573 = vadd.f32 %v4174, %v4211
      %v4574 = vadd.f32 %v4175, %v4211
      %v4575 = vadd.f32 %v4176, %v4211
      %v4576 = vadd.f32 %v4177, %v4211
      %v4577 = vadd.f32 %v4178, %v4211
      %v4578 = vadd.f32 %v4179, %v4211
      %v4579 = vadd.f32 %v4180, %v4211
      %v4580 = vadd.f32 %v4181, %v4211
      %v4581 = vadd.f32 %v4182, %v4211
      %v4582 = vadd.f32 %v4183, %v4211
      %v4583 = vadd.f32 %v4184, %v4211
      %v4584 = vadd.f32 %v4185, %v4211
      %v4585 = vadd.f32 %v4186, %v4211
      %v4586 = vadd.f32 %v4187, %v4211
      %v4587 = vadd.f32 %v4188, %v4211
      %v4588 = vadd.f32 %v4189, %v4211
      %v4589 = vadd.f32 %v4190, %v4211
      %v4590 = vadd.f32 %v4191, %v4211
      %v4591 = vadd.f32 %v4192, %v4211
      %v4592 = vadd.f32 %v4193, %v4211
      %v4593 = vadd.f32 %v4194, %v4211
      %v4594 = vadd.f32 %v4195, %v4211
      %v4595 = vadd.f32 %v4196, %v4211
      %v4596 = vadd.f32 %v4197, %v4211
      %v4597 = vadd.f32 %v4198, %v4211
      %v4598 = vadd.f32 %v4199, %v4211
      %v4599 = vadd.f32 %v4200, %v4211
      %v4600 = vadd.f32 %v4201, %v4211
      %v4601 = vadd.f32 %v4202, %v4211
      %v4602 = vadd.f32 %v4203, %v4211
      %v4603 = vadd.f32 %v4204, %v4211
      %v4604 = vadd.f32 %v4205, %v4211
      %vm4605 = vcmp.ge.f32.partialorder %v4213, 0.0
      %vm4606 = vcmp.ge.f32.partialorder %v4214, 0.0
      %vm4607 = vcmp.ge.f32.partialorder %v4215, 0.0
      %vm4608 = vcmp.ge.f32.partialorder %v4216, 0.0
      %vm4609 = vcmp.ge.f32.partialorder %v4217, 0.0
      %vm4610 = vcmp.ge.f32.partialorder %v4218, 0.0
      %vm4611 = vcmp.ge.f32.partialorder %v4219, 0.0
      %vm4612 = vcmp.ge.f32.partialorder %v4220, 0.0
      %vm4613 = vcmp.ge.f32.partialorder %v4221, 0.0
      %vm4614 = vcmp.ge.f32.partialorder %v4222, 0.0
      %vm4615 = vcmp.ge.f32.partialorder %v4223, 0.0
      %vm4616 = vcmp.ge.f32.partialorder %v4224, 0.0
      %vm4617 = vcmp.ge.f32.partialorder %v4225, 0.0
      %vm4618 = vcmp.ge.f32.partialorder %v4226, 0.0
      %vm4619 = vcmp.ge.f32.partialorder %v4227, 0.0
      %vm4620 = vcmp.ge.f32.partialorder %v4228, 0.0
      %vm4621 = vcmp.ge.f32.partialorder %v4229, 0.0
      %vm4622 = vcmp.ge.f32.partialorder %v4230, 0.0
      %vm4623 = vcmp.ge.f32.partialorder %v4231, 0.0
      %vm4624 = vcmp.ge.f32.partialorder %v4232, 0.0
      %vm4625 = vcmp.ge.f32.partialorder %v4233, 0.0
      %vm4626 = vcmp.ge.f32.partialorder %v4234, 0.0
      %vm4627 = vcmp.ge.f32.partialorder %v4235, 0.0
      %vm4628 = vcmp.ge.f32.partialorder %v4236, 0.0
      %vm4629 = vcmp.ge.f32.partialorder %v4237, 0.0
      %vm4630 = vcmp.ge.f32.partialorder %v4238, 0.0
      %vm4631 = vcmp.ge.f32.partialorder %v4239, 0.0
      %vm4632 = vcmp.ge.f32.partialorder %v4240, 0.0
      %vm4633 = vcmp.ge.f32.partialorder %v4241, 0.0
      %vm4634 = vcmp.ge.f32.partialorder %v4242, 0.0
      %vm4635 = vcmp.ge.f32.partialorder %v4243, 0.0
      %vm4636 = vcmp.ge.f32.partialorder %v4244, 0.0
      %vm4637 = vcmp.ge.f32.partialorder %v4245, 0.0
      %vm4638 = vcmp.ge.f32.partialorder %v4246, 0.0
      %vm4639 = vcmp.ge.f32.partialorder %v4247, 0.0
      %vm4640 = vcmp.ge.f32.partialorder %v4248, 0.0
      %vm4641 = vcmp.ge.f32.partialorder %v4249, 0.0
      %vm4642 = vcmp.ge.f32.partialorder %v4250, 0.0
      %vm4643 = vcmp.ge.f32.partialorder %v4251, 0.0
      %vm4644 = vcmp.ge.f32.partialorder %v4252, 0.0
      %vm4645 = vcmp.ge.f32.partialorder %v4253, 0.0
      %vm4646 = vcmp.ge.f32.partialorder %v4254, 0.0
      %vm4647 = vcmp.ge.f32.partialorder %v4255, 0.0
      %vm4648 = vcmp.ge.f32.partialorder %v4256, 0.0
      %vm4649 = vcmp.ge.f32.partialorder %v4257, 0.0
      %vm4650 = vcmp.ge.f32.partialorder %v4258, 0.0
      %vm4651 = vcmp.ge.f32.partialorder %v4259, 0.0
      %vm4652 = vcmp.ge.f32.partialorder %v4260, 0.0
      %vm4653 = vcmp.ge.f32.partialorder %v4261, 0.0
      %vm4654 = vcmp.ge.f32.partialorder %v4262, 0.0
      %vm4655 = vcmp.ge.f32.partialorder %v4263, 0.0
      %vm4656 = vcmp.ge.f32.partialorder %v4264, 0.0
      %vm4657 = vcmp.ge.f32.partialorder %v4265, 0.0
      %vm4658 = vcmp.ge.f32.partialorder %v4266, 0.0
      %vm4659 = vcmp.ge.f32.partialorder %v4267, 0.0
      %vm4660 = vcmp.ge.f32.partialorder %v4268, 0.0
      %vm4661 = vcmp.ge.f32.partialorder %v4269, 0.0
      %vm4662 = vcmp.ge.f32.partialorder %v4270, 0.0
      %vm4663 = vcmp.ge.f32.partialorder %v4271, 0.0
      %vm4664 = vcmp.ge.f32.partialorder %v4272, 0.0
      %vm4665 = vcmp.ge.f32.partialorder %v4273, 0.0
      %vm4666 = vcmp.ge.f32.partialorder %v4274, 0.0
      %vm4667 = vcmp.ge.f32.partialorder %v4275, 0.0
      %vm4668 = vcmp.ge.f32.partialorder %v4276, 0.0
      %vm4669 = vcmp.ge.f32.partialorder %v4277, 0.0
      %vm4670 = vcmp.ge.f32.partialorder %v4278, 0.0
      %vm4671 = vcmp.ge.f32.partialorder %v4279, 0.0
      %vm4672 = vcmp.ge.f32.partialorder %v4280, 0.0
      %vm4673 = vcmp.ge.f32.partialorder %v4281, 0.0
      %vm4674 = vcmp.ge.f32.partialorder %v4282, 0.0
      %vm4675 = vcmp.ge.f32.partialorder %v4283, 0.0
      %vm4676 = vcmp.ge.f32.partialorder %v4284, 0.0
      %vm4677 = vcmp.ge.f32.partialorder %v4285, 0.0
      %vm4678 = vcmp.ge.f32.partialorder %v4286, 0.0
      %vm4679 = vcmp.ge.f32.partialorder %v4287, 0.0
      %vm4680 = vcmp.ge.f32.partialorder %v4288, 0.0
      %vm4681 = vcmp.ge.f32.partialorder %v4289, 0.0
      %vm4682 = vcmp.ge.f32.partialorder %v4290, 0.0
      %vm4683 = vcmp.ge.f32.partialorder %v4291, 0.0
      %vm4684 = vcmp.ge.f32.partialorder %v4292, 0.0
      %vm4685 = vcmp.ge.f32.partialorder %v4293, 0.0
      %vm4686 = vcmp.ge.f32.partialorder %v4294, 0.0
      %vm4687 = vcmp.ge.f32.partialorder %v4295, 0.0
      %vm4688 = vcmp.ge.f32.partialorder %v4296, 0.0
      %vm4689 = vcmp.ge.f32.partialorder %v4297, 0.0
      %vm4690 = vcmp.ge.f32.partialorder %v4298, 0.0
      %vm4691 = vcmp.ge.f32.partialorder %v4299, 0.0
      %vm4692 = vcmp.ge.f32.partialorder %v4300, 0.0
      %vm4693 = vcmp.ge.f32.partialorder %v4301, 0.0
      %vm4694 = vcmp.ge.f32.partialorder %v4302, 0.0
      %vm4695 = vcmp.ge.f32.partialorder %v4303, 0.0
      %vm4696 = vcmp.ge.f32.partialorder %v4304, 0.0
      %vm4697 = vcmp.ge.f32.partialorder %v4305, 0.0
      %vm4698 = vcmp.ge.f32.partialorder %v4306, 0.0
      %vm4699 = vcmp.ge.f32.partialorder %v4307, 0.0
      %vm4700 = vcmp.ge.f32.partialorder %v4308, 0.0
      %vm4701 = vcmp.ge.f32.partialorder %v4309, 0.0
      %vm4702 = vcmp.ge.f32.partialorder %v4310, 0.0
      %vm4703 = vcmp.ge.f32.partialorder %v4311, 0.0
      %vm4704 = vcmp.ge.f32.partialorder %v4312, 0.0
      %vm4705 = vcmp.ge.f32.partialorder %v4313, 0.0
      %vm4706 = vcmp.ge.f32.partialorder %v4314, 0.0
      %vm4707 = vcmp.ge.f32.partialorder %v4315, 0.0
      %vm4708 = vcmp.ge.f32.partialorder %v4316, 0.0
      %vm4709 = vcmp.ge.f32.partialorder %v4317, 0.0
      %vm4710 = vcmp.ge.f32.partialorder %v4318, 0.0
      %vm4711 = vcmp.ge.f32.partialorder %v4319, 0.0
      %vm4712 = vcmp.ge.f32.partialorder %v4320, 0.0
      %vm4713 = vcmp.ge.f32.partialorder %v4321, 0.0
      %vm4714 = vcmp.ge.f32.partialorder %v4322, 0.0
      %vm4715 = vcmp.ge.f32.partialorder %v4323, 0.0
      %vm4716 = vcmp.ge.f32.partialorder %v4324, 0.0
      %vm4717 = vcmp.ge.f32.partialorder %v4325, 0.0
      %vm4718 = vcmp.ge.f32.partialorder %v4326, 0.0
      %vm4719 = vcmp.ge.f32.partialorder %v4327, 0.0
      %vm4720 = vcmp.ge.f32.partialorder %v4328, 0.0
      %vm4721 = vcmp.ge.f32.partialorder %v4329, 0.0
      %vm4722 = vcmp.ge.f32.partialorder %v4330, 0.0
      %vm4723 = vcmp.ge.f32.partialorder %v4331, 0.0
      %vm4724 = vcmp.ge.f32.partialorder %v4332, 0.0
      %vm4725 = vcmp.ge.f32.partialorder %v4333, 0.0
      %vm4726 = vcmp.ge.f32.partialorder %v4334, 0.0
      %vm4727 = vcmp.ge.f32.partialorder %v4335, 0.0
      %vm4728 = vcmp.ge.f32.partialorder %v4336, 0.0
      %vm4729 = vcmp.ge.f32.partialorder %v4337, 0.0
      %vm4730 = vcmp.ge.f32.partialorder %v4338, 0.0
      %vm4731 = vcmp.ge.f32.partialorder %v4339, 0.0
      %vm4732 = vcmp.ge.f32.partialorder %v4340, 0.0
      %vm4733 = vcmp.ge.f32.partialorder %v4341, 0.0
      %vm4734 = vcmp.ge.f32.partialorder %v4342, 0.0
      %vm4735 = vcmp.ge.f32.partialorder %v4343, 0.0
      %vm4736 = vcmp.ge.f32.partialorder %v4344, 0.0
      %vm4737 = vcmp.ge.f32.partialorder %v4345, 0.0
      %vm4738 = vcmp.ge.f32.partialorder %v4346, 0.0
      %vm4739 = vcmp.ge.f32.partialorder %v4347, 0.0
      %vm4740 = vcmp.ge.f32.partialorder %v4348, 0.0
      %vm4741 = vcmp.ge.f32.partialorder %v4349, 0.0
      %vm4742 = vcmp.ge.f32.partialorder %v4350, 0.0
      %vm4743 = vcmp.ge.f32.partialorder %v4351, 0.0
      %vm4744 = vcmp.ge.f32.partialorder %v4352, 0.0
      %vm4745 = vcmp.ge.f32.partialorder %v4353, 0.0
      %vm4746 = vcmp.ge.f32.partialorder %v4354, 0.0
      %vm4747 = vcmp.ge.f32.partialorder %v4355, 0.0
      %vm4748 = vcmp.ge.f32.partialorder %v4356, 0.0
      %vm4749 = vcmp.ge.f32.partialorder %v4357, 0.0
      %vm4750 = vcmp.ge.f32.partialorder %v4358, 0.0
      %vm4751 = vcmp.ge.f32.partialorder %v4359, 0.0
      %vm4752 = vcmp.ge.f32.partialorder %v4360, 0.0
      %vm4753 = vcmp.ge.f32.partialorder %v4361, 0.0
      %vm4754 = vcmp.ge.f32.partialorder %v4362, 0.0
      %vm4755 = vcmp.ge.f32.partialorder %v4363, 0.0
      %vm4756 = vcmp.ge.f32.partialorder %v4364, 0.0
      %vm4757 = vcmp.ge.f32.partialorder %v4365, 0.0
      %vm4758 = vcmp.ge.f32.partialorder %v4366, 0.0
      %vm4759 = vcmp.ge.f32.partialorder %v4367, 0.0
      %vm4760 = vcmp.ge.f32.partialorder %v4368, 0.0
      %vm4761 = vcmp.ge.f32.partialorder %v4369, 0.0
      %vm4762 = vcmp.ge.f32.partialorder %v4370, 0.0
      %vm4763 = vcmp.ge.f32.partialorder %v4371, 0.0
      %vm4764 = vcmp.ge.f32.partialorder %v4372, 0.0
      %vm4765 = vcmp.ge.f32.partialorder %v4373, 0.0
      %vm4766 = vcmp.ge.f32.partialorder %v4374, 0.0
      %vm4767 = vcmp.ge.f32.partialorder %v4375, 0.0
      %vm4768 = vcmp.ge.f32.partialorder %v4376, 0.0
      %vm4769 = vcmp.ge.f32.partialorder %v4377, 0.0
      %vm4770 = vcmp.ge.f32.partialorder %v4378, 0.0
      %vm4771 = vcmp.ge.f32.partialorder %v4379, 0.0
      %vm4772 = vcmp.ge.f32.partialorder %v4380, 0.0
      %vm4773 = vcmp.ge.f32.partialorder %v4381, 0.0
      %vm4774 = vcmp.ge.f32.partialorder %v4382, 0.0
      %vm4775 = vcmp.ge.f32.partialorder %v4383, 0.0
      %vm4776 = vcmp.ge.f32.partialorder %v4384, 0.0
      %vm4777 = vcmp.ge.f32.partialorder %v4385, 0.0
      %vm4778 = vcmp.ge.f32.partialorder %v4386, 0.0
      %vm4779 = vcmp.ge.f32.partialorder %v4387, 0.0
      %vm4780 = vcmp.ge.f32.partialorder %v4388, 0.0
      %vm4781 = vcmp.ge.f32.partialorder %v4389, 0.0
      %vm4782 = vcmp.ge.f32.partialorder %v4390, 0.0
      %vm4783 = vcmp.ge.f32.partialorder %v4391, 0.0
      %vm4784 = vcmp.ge.f32.partialorder %v4392, 0.0
      %vm4785 = vcmp.ge.f32.partialorder %v4393, 0.0
      %vm4786 = vcmp.ge.f32.partialorder %v4394, 0.0
      %vm4787 = vcmp.ge.f32.partialorder %v4395, 0.0
      %vm4788 = vcmp.ge.f32.partialorder %v4396, 0.0
      %vm4789 = vcmp.ge.f32.partialorder %v4397, 0.0
      %vm4790 = vcmp.ge.f32.partialorder %v4398, 0.0
      %vm4791 = vcmp.ge.f32.partialorder %v4399, 0.0
      %vm4792 = vcmp.ge.f32.partialorder %v4400, 0.0
      %vm4793 = vcmp.ge.f32.partialorder %v4401, 0.0
      %vm4794 = vcmp.ge.f32.partialorder %v4402, 0.0
      %vm4795 = vcmp.ge.f32.partialorder %v4403, 0.0
      %vm4796 = vcmp.ge.f32.partialorder %v4404, 0.0
      %vm4797 = vcmp.ge.f32.partialorder %v4405, 0.0
      %vm4798 = vcmp.ge.f32.partialorder %v4406, 0.0
      %vm4799 = vcmp.ge.f32.partialorder %v4407, 0.0
      %vm4800 = vcmp.ge.f32.partialorder %v4408, 0.0
      %vm4801 = vcmp.ge.f32.partialorder %v4409, 0.0
      %vm4802 = vcmp.ge.f32.partialorder %v4410, 0.0
      %vm4803 = vcmp.ge.f32.partialorder %v4411, 0.0
      %vm4804 = vcmp.ge.f32.partialorder %v4412, 0.0
      %vm4805 = vcmp.ge.f32.partialorder %v4413, 0.0
      %vm4806 = vcmp.ge.f32.partialorder %v4414, 0.0
      %vm4807 = vcmp.ge.f32.partialorder %v4415, 0.0
      %vm4808 = vcmp.ge.f32.partialorder %v4416, 0.0
      %vm4809 = vcmp.ge.f32.partialorder %v4417, 0.0
      %vm4810 = vcmp.ge.f32.partialorder %v4418, 0.0
      %vm4811 = vcmp.ge.f32.partialorder %v4419, 0.0
      %vm4812 = vcmp.ge.f32.partialorder %v4420, 0.0
      %vm4813 = vcmp.ge.f32.partialorder %v4421, 0.0
      %vm4814 = vcmp.ge.f32.partialorder %v4422, 0.0
      %vm4815 = vcmp.ge.f32.partialorder %v4423, 0.0
      %vm4816 = vcmp.ge.f32.partialorder %v4424, 0.0
      %vm4817 = vcmp.ge.f32.partialorder %v4425, 0.0
      %vm4818 = vcmp.ge.f32.partialorder %v4426, 0.0
      %vm4819 = vcmp.ge.f32.partialorder %v4427, 0.0
      %vm4820 = vcmp.ge.f32.partialorder %v4428, 0.0
      %vm4821 = vcmp.ge.f32.partialorder %v4429, 0.0
      %vm4822 = vcmp.ge.f32.partialorder %v4430, 0.0
      %vm4823 = vcmp.ge.f32.partialorder %v4431, 0.0
      %vm4824 = vcmp.ge.f32.partialorder %v4432, 0.0
      %vm4825 = vcmp.ge.f32.partialorder %v4433, 0.0
      %vm4826 = vcmp.ge.f32.partialorder %v4434, 0.0
      %vm4827 = vcmp.ge.f32.partialorder %v4435, 0.0
      %vm4828 = vcmp.ge.f32.partialorder %v4436, 0.0
      %vm4829 = vcmp.ge.f32.partialorder %v4437, 0.0
      %vm4830 = vcmp.ge.f32.partialorder %v4438, 0.0
      %vm4831 = vcmp.ge.f32.partialorder %v4439, 0.0
      %vm4832 = vcmp.ge.f32.partialorder %v4440, 0.0
      %vm4833 = vcmp.ge.f32.partialorder %v4441, 0.0
      %vm4834 = vcmp.ge.f32.partialorder %v4442, 0.0
      %vm4835 = vcmp.ge.f32.partialorder %v4443, 0.0
      %vm4836 = vcmp.ge.f32.partialorder %v4444, 0.0
      %vm4837 = vcmp.ge.f32.partialorder %v4445, 0.0
      %vm4838 = vcmp.ge.f32.partialorder %v4446, 0.0
      %vm4839 = vcmp.ge.f32.partialorder %v4447, 0.0
      %vm4840 = vcmp.ge.f32.partialorder %v4448, 0.0
      %vm4841 = vcmp.ge.f32.partialorder %v4449, 0.0
      %vm4842 = vcmp.ge.f32.partialorder %v4450, 0.0
      %vm4843 = vcmp.ge.f32.partialorder %v4451, 0.0
      %vm4844 = vcmp.ge.f32.partialorder %v4452, 0.0
      %vm4845 = vcmp.ge.f32.partialorder %v4453, 0.0
      %vm4846 = vcmp.ge.f32.partialorder %v4454, 0.0
      %vm4847 = vcmp.ge.f32.partialorder %v4455, 0.0
      %vm4848 = vcmp.ge.f32.partialorder %v4456, 0.0
      %vm4849 = vcmp.ge.f32.partialorder %v4457, 0.0
      %vm4850 = vcmp.ge.f32.partialorder %v4458, 0.0
      %vm4851 = vcmp.ge.f32.partialorder %v4459, 0.0
      %vm4852 = vcmp.ge.f32.partialorder %v4460, 0.0
      %vm4853 = vcmp.ge.f32.partialorder %v4461, 0.0
      %vm4854 = vcmp.ge.f32.partialorder %v4462, 0.0
      %vm4855 = vcmp.ge.f32.partialorder %v4463, 0.0
      %vm4856 = vcmp.ge.f32.partialorder %v4464, 0.0
      %vm4857 = vcmp.ge.f32.partialorder %v4465, 0.0
      %vm4858 = vcmp.ge.f32.partialorder %v4466, 0.0
      %vm4859 = vcmp.ge.f32.partialorder %v4467, 0.0
      %vm4860 = vcmp.ge.f32.partialorder %v4468, 0.0
      %vm4861 = vcmp.ge.f32.partialorder %v4469, 0.0
      %vm4862 = vcmp.ge.f32.partialorder %v4470, 0.0
      %vm4863 = vcmp.ge.f32.partialorder %v4471, 0.0
      %vm4864 = vcmp.ge.f32.partialorder %v4472, 0.0
      %vm4865 = vcmp.ge.f32.partialorder %v4473, 0.0
      %vm4866 = vcmp.ge.f32.partialorder %v4474, 0.0
      %vm4867 = vcmp.ge.f32.partialorder %v4475, 0.0
      %vm4868 = vcmp.ge.f32.partialorder %v4476, 0.0
      %vm4869 = vcmp.ge.f32.partialorder %v4477, 0.0
      %vm4870 = vcmp.ge.f32.partialorder %v4478, 0.0
      %vm4871 = vcmp.ge.f32.partialorder %v4479, 0.0
      %vm4872 = vcmp.ge.f32.partialorder %v4480, 0.0
      %vm4873 = vcmp.ge.f32.partialorder %v4481, 0.0
      %vm4874 = vcmp.ge.f32.partialorder %v4482, 0.0
      %vm4875 = vcmp.ge.f32.partialorder %v4483, 0.0
      %vm4876 = vcmp.ge.f32.partialorder %v4484, 0.0
      %vm4877 = vcmp.ge.f32.partialorder %v4485, 0.0
      %vm4878 = vcmp.ge.f32.partialorder %v4486, 0.0
      %vm4879 = vcmp.ge.f32.partialorder %v4487, 0.0
      %vm4880 = vcmp.ge.f32.partialorder %v4488, 0.0
      %vm4881 = vcmp.ge.f32.partialorder %v4489, 0.0
      %vm4882 = vcmp.ge.f32.partialorder %v4490, 0.0
      %vm4883 = vcmp.ge.f32.partialorder %v4491, 0.0
      %vm4884 = vcmp.ge.f32.partialorder %v4492, 0.0
      %vm4885 = vcmp.ge.f32.partialorder %v4493, 0.0
      %vm4886 = vcmp.ge.f32.partialorder %v4494, 0.0
      %vm4887 = vcmp.ge.f32.partialorder %v4495, 0.0
      %vm4888 = vcmp.ge.f32.partialorder %v4496, 0.0
      %vm4889 = vcmp.ge.f32.partialorder %v4497, 0.0
      %vm4890 = vcmp.ge.f32.partialorder %v4498, 0.0
      %vm4891 = vcmp.ge.f32.partialorder %v4499, 0.0
      %vm4892 = vcmp.ge.f32.partialorder %v4500, 0.0
      %vm4893 = vcmp.ge.f32.partialorder %v4501, 0.0
      %vm4894 = vcmp.ge.f32.partialorder %v4502, 0.0
      %vm4895 = vcmp.ge.f32.partialorder %v4503, 0.0
      %vm4896 = vcmp.ge.f32.partialorder %v4504, 0.0
      %vm4897 = vcmp.ge.f32.partialorder %v4505, 0.0
      %vm4898 = vcmp.ge.f32.partialorder %v4506, 0.0
      %vm4899 = vcmp.ge.f32.partialorder %v4507, 0.0
      %vm4900 = vcmp.ge.f32.partialorder %v4508, 0.0
      %vm4901 = vcmp.ge.f32.partialorder %v4509, 0.0
      %vm4902 = vcmp.ge.f32.partialorder %v4510, 0.0
      %vm4903 = vcmp.ge.f32.partialorder %v4511, 0.0
      %vm4904 = vcmp.ge.f32.partialorder %v4512, 0.0
      %vm4905 = vcmp.ge.f32.partialorder %v4513, 0.0
      %vm4906 = vcmp.ge.f32.partialorder %v4514, 0.0
      %vm4907 = vcmp.ge.f32.partialorder %v4515, 0.0
      %vm4908 = vcmp.ge.f32.partialorder %v4516, 0.0
      %vm4909 = vcmp.ge.f32.partialorder %v4517, 0.0
      %vm4910 = vcmp.ge.f32.partialorder %v4518, 0.0
      %vm4911 = vcmp.ge.f32.partialorder %v4519, 0.0
      %vm4912 = vcmp.ge.f32.partialorder %v4520, 0.0
      %vm4913 = vcmp.ge.f32.partialorder %v4521, 0.0
      %vm4914 = vcmp.ge.f32.partialorder %v4522, 0.0
      %vm4915 = vcmp.ge.f32.partialorder %v4523, 0.0
      %vm4916 = vcmp.ge.f32.partialorder %v4524, 0.0
      %vm4917 = vcmp.ge.f32.partialorder %v4525, 0.0
      %vm4918 = vcmp.ge.f32.partialorder %v4526, 0.0
      %vm4919 = vcmp.ge.f32.partialorder %v4527, 0.0
      %vm4920 = vcmp.ge.f32.partialorder %v4528, 0.0
      %vm4921 = vcmp.ge.f32.partialorder %v4529, 0.0
      %vm4922 = vcmp.ge.f32.partialorder %v4530, 0.0
      %vm4923 = vcmp.ge.f32.partialorder %v4531, 0.0
      %vm4924 = vcmp.ge.f32.partialorder %v4532, 0.0
      %vm4925 = vcmp.ge.f32.partialorder %v4533, 0.0
      %vm4926 = vcmp.ge.f32.partialorder %v4534, 0.0
      %vm4927 = vcmp.ge.f32.partialorder %v4535, 0.0
      %vm4928 = vcmp.ge.f32.partialorder %v4536, 0.0
      %vm4929 = vcmp.ge.f32.partialorder %v4537, 0.0
      %vm4930 = vcmp.ge.f32.partialorder %v4538, 0.0
      %vm4931 = vcmp.ge.f32.partialorder %v4539, 0.0
      %vm4932 = vcmp.ge.f32.partialorder %v4540, 0.0
      %vm4933 = vcmp.ge.f32.partialorder %v4541, 0.0
      %vm4934 = vcmp.ge.f32.partialorder %v4542, 0.0
      %vm4935 = vcmp.ge.f32.partialorder %v4543, 0.0
      %vm4936 = vcmp.ge.f32.partialorder %v4544, 0.0
      %vm4937 = vcmp.ge.f32.partialorder %v4545, 0.0
      %vm4938 = vcmp.ge.f32.partialorder %v4546, 0.0
      %vm4939 = vcmp.ge.f32.partialorder %v4547, 0.0
      %vm4940 = vcmp.ge.f32.partialorder %v4548, 0.0
      %vm4941 = vcmp.ge.f32.partialorder %v4549, 0.0
      %vm4942 = vcmp.ge.f32.partialorder %v4550, 0.0
      %vm4943 = vcmp.ge.f32.partialorder %v4551, 0.0
      %vm4944 = vcmp.ge.f32.partialorder %v4552, 0.0
      %vm4945 = vcmp.ge.f32.partialorder %v4553, 0.0
      %vm4946 = vcmp.ge.f32.partialorder %v4554, 0.0
      %vm4947 = vcmp.ge.f32.partialorder %v4555, 0.0
      %vm4948 = vcmp.ge.f32.partialorder %v4556, 0.0
      %vm4949 = vcmp.ge.f32.partialorder %v4557, 0.0
      %vm4950 = vcmp.ge.f32.partialorder %v4558, 0.0
      %vm4951 = vcmp.ge.f32.partialorder %v4559, 0.0
      %vm4952 = vcmp.ge.f32.partialorder %v4560, 0.0
      %vm4953 = vcmp.ge.f32.partialorder %v4561, 0.0
      %vm4954 = vcmp.ge.f32.partialorder %v4562, 0.0
      %vm4955 = vcmp.ge.f32.partialorder %v4563, 0.0
      %vm4956 = vcmp.ge.f32.partialorder %v4564, 0.0
      %vm4957 = vcmp.ge.f32.partialorder %v4565, 0.0
      %vm4958 = vcmp.ge.f32.partialorder %v4566, 0.0
      %vm4959 = vcmp.ge.f32.partialorder %v4567, 0.0
      %vm4960 = vcmp.ge.f32.partialorder %v4568, 0.0
      %vm4961 = vcmp.ge.f32.partialorder %v4569, 0.0
      %vm4962 = vcmp.ge.f32.partialorder %v4570, 0.0
      %vm4963 = vcmp.ge.f32.partialorder %v4571, 0.0
      %vm4964 = vcmp.ge.f32.partialorder %v4572, 0.0
      %vm4965 = vcmp.ge.f32.partialorder %v4573, 0.0
      %vm4966 = vcmp.ge.f32.partialorder %v4574, 0.0
      %vm4967 = vcmp.ge.f32.partialorder %v4575, 0.0
      %vm4968 = vcmp.ge.f32.partialorder %v4576, 0.0
      %vm4969 = vcmp.ge.f32.partialorder %v4577, 0.0
      %vm4970 = vcmp.ge.f32.partialorder %v4578, 0.0
      %vm4971 = vcmp.ge.f32.partialorder %v4579, 0.0
      %vm4972 = vcmp.ge.f32.partialorder %v4580, 0.0
      %vm4973 = vcmp.ge.f32.partialorder %v4581, 0.0
      %vm4974 = vcmp.ge.f32.partialorder %v4582, 0.0
      %vm4975 = vcmp.ge.f32.partialorder %v4583, 0.0
      %vm4976 = vcmp.ge.f32.partialorder %v4584, 0.0
      %vm4977 = vcmp.ge.f32.partialorder %v4585, 0.0
      %vm4978 = vcmp.ge.f32.partialorder %v4586, 0.0
      %vm4979 = vcmp.ge.f32.partialorder %v4587, 0.0
      %vm4980 = vcmp.ge.f32.partialorder %v4588, 0.0
      %vm4981 = vcmp.ge.f32.partialorder %v4589, 0.0
      %vm4982 = vcmp.ge.f32.partialorder %v4590, 0.0
      %vm4983 = vcmp.ge.f32.partialorder %v4591, 0.0
      %vm4984 = vcmp.ge.f32.partialorder %v4592, 0.0
      %vm4985 = vcmp.ge.f32.partialorder %v4593, 0.0
      %vm4986 = vcmp.ge.f32.partialorder %v4594, 0.0
      %vm4987 = vcmp.ge.f32.partialorder %v4595, 0.0
      %vm4988 = vcmp.ge.f32.partialorder %v4596, 0.0
      %vm4989 = vcmp.ge.f32.partialorder %v4597, 0.0
      %vm4990 = vcmp.ge.f32.partialorder %v4598, 0.0
      %vm4991 = vcmp.ge.f32.partialorder %v4599, 0.0
      %vm4992 = vcmp.ge.f32.partialorder %v4600, 0.0
      %vm4993 = vcmp.ge.f32.partialorder %v4601, 0.0
      %vm4994 = vcmp.ge.f32.partialorder %v4602, 0.0
      %vm4995 = vcmp.ge.f32.partialorder %v4603, 0.0
      %vm4996 = vcmp.ge.f32.partialorder %v4604, 0.0
      %v4997 = vld [vmem:[%s4] sm:$0x1]
      %v4999 = vlaneseq
      %v5000 = vshrl.u32 %v4999, 7
      %v5001 = vsub.s32 0, %v5000
      %v5002 = vrot.slane %v4997, %v5001
      %v5004 = vmul.f32 %v5002, %v4213
      %v5005 = vmul.f32 %v5002, %v4214
      %v5006 = vmul.f32 %v5002, %v4215
      %v5007 = vmul.f32 %v5002, %v4216
      %v5008 = vmul.f32 %v5002, %v4217
      %v5009 = vmul.f32 %v5002, %v4218
      %v5010 = vmul.f32 %v5002, %v4219
      %v5011 = vmul.f32 %v5002, %v4220
      %v5012 = vmul.f32 %v5002, %v4221
      %v5013 = vmul.f32 %v5002, %v4222
      %v5014 = vmul.f32 %v5002, %v4223
      %v5015 = vmul.f32 %v5002, %v4224
      %v5016 = vmul.f32 %v5002, %v4225
      %v5017 = vmul.f32 %v5002, %v4226
      %v5018 = vmul.f32 %v5002, %v4227
      %v5019 = vmul.f32 %v5002, %v4228
      %v5020 = vmul.f32 %v5002, %v4229
      %v5021 = vmul.f32 %v5002, %v4230
      %v5022 = vmul.f32 %v5002, %v4231
      %v5023 = vmul.f32 %v5002, %v4232
      %v5024 = vmul.f32 %v5002, %v4233
      %v5025 = vmul.f32 %v5002, %v4234
      %v5026 = vmul.f32 %v5002, %v4235
      %v5027 = vmul.f32 %v5002, %v4236
      %v5028 = vmul.f32 %v5002, %v4237
      %v5029 = vmul.f32 %v5002, %v4238
      %v5030 = vmul.f32 %v5002, %v4239
      %v5031 = vmul.f32 %v5002, %v4240
      %v5032 = vmul.f32 %v5002, %v4241
      %v5033 = vmul.f32 %v5002, %v4242
      %v5034 = vmul.f32 %v5002, %v4243
      %v5035 = vmul.f32 %v5002, %v4244
      %v5036 = vmul.f32 %v5002, %v4245
      %v5037 = vmul.f32 %v5002, %v4246
      %v5038 = vmul.f32 %v5002, %v4247
      %v5039 = vmul.f32 %v5002, %v4248
      %v5040 = vmul.f32 %v5002, %v4249
      %v5041 = vmul.f32 %v5002, %v4250
      %v5042 = vmul.f32 %v5002, %v4251
      %v5043 = vmul.f32 %v5002, %v4252
      %v5044 = vmul.f32 %v5002, %v4253
      %v5045 = vmul.f32 %v5002, %v4254
      %v5046 = vmul.f32 %v5002, %v4255
      %v5047 = vmul.f32 %v5002, %v4256
      %v5048 = vmul.f32 %v5002, %v4257
      %v5049 = vmul.f32 %v5002, %v4258
      %v5050 = vmul.f32 %v5002, %v4259
      %v5051 = vmul.f32 %v5002, %v4260
      %v5052 = vmul.f32 %v5002, %v4261
      %v5053 = vmul.f32 %v5002, %v4262
      %v5054 = vmul.f32 %v5002, %v4263
      %v5055 = vmul.f32 %v5002, %v4264
      %v5056 = vmul.f32 %v5002, %v4265
      %v5057 = vmul.f32 %v5002, %v4266
      %v5058 = vmul.f32 %v5002, %v4267
      %v5059 = vmul.f32 %v5002, %v4268
      %v5060 = vmul.f32 %v5002, %v4269
      %v5061 = vmul.f32 %v5002, %v4270
      %v5062 = vmul.f32 %v5002, %v4271
      %v5063 = vmul.f32 %v5002, %v4272
      %v5064 = vmul.f32 %v5002, %v4273
      %v5065 = vmul.f32 %v5002, %v4274
      %v5066 = vmul.f32 %v5002, %v4275
      %v5067 = vmul.f32 %v5002, %v4276
      %v5068 = vmul.f32 %v5002, %v4277
      %v5069 = vmul.f32 %v5002, %v4278
      %v5070 = vmul.f32 %v5002, %v4279
      %v5071 = vmul.f32 %v5002, %v4280
      %v5072 = vmul.f32 %v5002, %v4281
      %v5073 = vmul.f32 %v5002, %v4282
      %v5074 = vmul.f32 %v5002, %v4283
      %v5075 = vmul.f32 %v5002, %v4284
      %v5076 = vmul.f32 %v5002, %v4285
      %v5077 = vmul.f32 %v5002, %v4286
      %v5078 = vmul.f32 %v5002, %v4287
      %v5079 = vmul.f32 %v5002, %v4288
      %v5080 = vmul.f32 %v5002, %v4289
      %v5081 = vmul.f32 %v5002, %v4290
      %v5082 = vmul.f32 %v5002, %v4291
      %v5083 = vmul.f32 %v5002, %v4292
      %v5084 = vmul.f32 %v5002, %v4293
      %v5085 = vmul.f32 %v5002, %v4294
      %v5086 = vmul.f32 %v5002, %v4295
      %v5087 = vmul.f32 %v5002, %v4296
      %v5088 = vmul.f32 %v5002, %v4297
      %v5089 = vmul.f32 %v5002, %v4298
      %v5090 = vmul.f32 %v5002, %v4299
      %v5091 = vmul.f32 %v5002, %v4300
      %v5092 = vmul.f32 %v5002, %v4301
      %v5093 = vmul.f32 %v5002, %v4302
      %v5094 = vmul.f32 %v5002, %v4303
      %v5095 = vmul.f32 %v5002, %v4304
      %v5096 = vmul.f32 %v5002, %v4305
      %v5097 = vmul.f32 %v5002, %v4306
      %v5098 = vmul.f32 %v5002, %v4307
      %v5099 = vmul.f32 %v5002, %v4308
      %v5100 = vmul.f32 %v5002, %v4309
      %v5101 = vmul.f32 %v5002, %v4310
      %v5102 = vmul.f32 %v5002, %v4311
      %v5103 = vmul.f32 %v5002, %v4312
      %v5104 = vmul.f32 %v5002, %v4313
      %v5105 = vmul.f32 %v5002, %v4314
      %v5106 = vmul.f32 %v5002, %v4315
      %v5107 = vmul.f32 %v5002, %v4316
      %v5108 = vmul.f32 %v5002, %v4317
      %v5109 = vmul.f32 %v5002, %v4318
      %v5110 = vmul.f32 %v5002, %v4319
      %v5111 = vmul.f32 %v5002, %v4320
      %v5112 = vmul.f32 %v5002, %v4321
      %v5113 = vmul.f32 %v5002, %v4322
      %v5114 = vmul.f32 %v5002, %v4323
      %v5115 = vmul.f32 %v5002, %v4324
      %v5116 = vmul.f32 %v5002, %v4325
      %v5117 = vmul.f32 %v5002, %v4326
      %v5118 = vmul.f32 %v5002, %v4327
      %v5119 = vmul.f32 %v5002, %v4328
      %v5120 = vmul.f32 %v5002, %v4329
      %v5121 = vmul.f32 %v5002, %v4330
      %v5122 = vmul.f32 %v5002, %v4331
      %v5123 = vmul.f32 %v5002, %v4332
      %v5124 = vmul.f32 %v5002, %v4333
      %v5125 = vmul.f32 %v5002, %v4334
      %v5126 = vmul.f32 %v5002, %v4335
      %v5127 = vmul.f32 %v5002, %v4336
      %v5128 = vmul.f32 %v5002, %v4337
      %v5129 = vmul.f32 %v5002, %v4338
      %v5130 = vmul.f32 %v5002, %v4339
      %v5131 = vmul.f32 %v5002, %v4340
      %v5132 = vmul.f32 %v5002, %v4341
      %v5133 = vmul.f32 %v5002, %v4342
      %v5134 = vmul.f32 %v5002, %v4343
      %v5135 = vmul.f32 %v5002, %v4344
      %v5136 = vmul.f32 %v5002, %v4345
      %v5137 = vmul.f32 %v5002, %v4346
      %v5138 = vmul.f32 %v5002, %v4347
      %v5139 = vmul.f32 %v5002, %v4348
      %v5140 = vmul.f32 %v5002, %v4349
      %v5141 = vmul.f32 %v5002, %v4350
      %v5142 = vmul.f32 %v5002, %v4351
      %v5143 = vmul.f32 %v5002, %v4352
      %v5144 = vmul.f32 %v5002, %v4353
      %v5145 = vmul.f32 %v5002, %v4354
      %v5146 = vmul.f32 %v5002, %v4355
      %v5147 = vmul.f32 %v5002, %v4356
      %v5148 = vmul.f32 %v5002, %v4357
      %v5149 = vmul.f32 %v5002, %v4358
      %v5150 = vmul.f32 %v5002, %v4359
      %v5151 = vmul.f32 %v5002, %v4360
      %v5152 = vmul.f32 %v5002, %v4361
      %v5153 = vmul.f32 %v5002, %v4362
      %v5154 = vmul.f32 %v5002, %v4363
      %v5155 = vmul.f32 %v5002, %v4364
      %v5156 = vmul.f32 %v5002, %v4365
      %v5157 = vmul.f32 %v5002, %v4366
      %v5158 = vmul.f32 %v5002, %v4367
      %v5159 = vmul.f32 %v5002, %v4368
      %v5160 = vmul.f32 %v5002, %v4369
      %v5161 = vmul.f32 %v5002, %v4370
      %v5162 = vmul.f32 %v5002, %v4371
      %v5163 = vmul.f32 %v5002, %v4372
      %v5164 = vmul.f32 %v5002, %v4373
      %v5165 = vmul.f32 %v5002, %v4374
      %v5166 = vmul.f32 %v5002, %v4375
      %v5167 = vmul.f32 %v5002, %v4376
      %v5168 = vmul.f32 %v5002, %v4377
      %v5169 = vmul.f32 %v5002, %v4378
      %v5170 = vmul.f32 %v5002, %v4379
      %v5171 = vmul.f32 %v5002, %v4380
      %v5172 = vmul.f32 %v5002, %v4381
      %v5173 = vmul.f32 %v5002, %v4382
      %v5174 = vmul.f32 %v5002, %v4383
      %v5175 = vmul.f32 %v5002, %v4384
      %v5176 = vmul.f32 %v5002, %v4385
      %v5177 = vmul.f32 %v5002, %v4386
      %v5178 = vmul.f32 %v5002, %v4387
      %v5179 = vmul.f32 %v5002, %v4388
      %v5180 = vmul.f32 %v5002, %v4389
      %v5181 = vmul.f32 %v5002, %v4390
      %v5182 = vmul.f32 %v5002, %v4391
      %v5183 = vmul.f32 %v5002, %v4392
      %v5184 = vmul.f32 %v5002, %v4393
      %v5185 = vmul.f32 %v5002, %v4394
      %v5186 = vmul.f32 %v5002, %v4395
      %v5187 = vmul.f32 %v5002, %v4396
      %v5188 = vmul.f32 %v5002, %v4397
      %v5189 = vmul.f32 %v5002, %v4398
      %v5190 = vmul.f32 %v5002, %v4399
      %v5191 = vmul.f32 %v5002, %v4400
      %v5192 = vmul.f32 %v5002, %v4401
      %v5193 = vmul.f32 %v5002, %v4402
      %v5194 = vmul.f32 %v5002, %v4403
      %v5195 = vmul.f32 %v5002, %v4404
      %v5196 = vmul.f32 %v5002, %v4405
      %v5197 = vmul.f32 %v5002, %v4406
      %v5198 = vmul.f32 %v5002, %v4407
      %v5199 = vmul.f32 %v5002, %v4408
      %v5200 = vmul.f32 %v5002, %v4409
      %v5201 = vmul.f32 %v5002, %v4410
      %v5202 = vmul.f32 %v5002, %v4411
      %v5203 = vmul.f32 %v5002, %v4412
      %v5204 = vmul.f32 %v5002, %v4413
      %v5205 = vmul.f32 %v5002, %v4414
      %v5206 = vmul.f32 %v5002, %v4415
      %v5207 = vmul.f32 %v5002, %v4416
      %v5208 = vmul.f32 %v5002, %v4417
      %v5209 = vmul.f32 %v5002, %v4418
      %v5210 = vmul.f32 %v5002, %v4419
      %v5211 = vmul.f32 %v5002, %v4420
      %v5212 = vmul.f32 %v5002, %v4421
      %v5213 = vmul.f32 %v5002, %v4422
      %v5214 = vmul.f32 %v5002, %v4423
      %v5215 = vmul.f32 %v5002, %v4424
      %v5216 = vmul.f32 %v5002, %v4425
      %v5217 = vmul.f32 %v5002, %v4426
      %v5218 = vmul.f32 %v5002, %v4427
      %v5219 = vmul.f32 %v5002, %v4428
      %v5220 = vmul.f32 %v5002, %v4429
      %v5221 = vmul.f32 %v5002, %v4430
      %v5222 = vmul.f32 %v5002, %v4431
      %v5223 = vmul.f32 %v5002, %v4432
      %v5224 = vmul.f32 %v5002, %v4433
      %v5225 = vmul.f32 %v5002, %v4434
      %v5226 = vmul.f32 %v5002, %v4435
      %v5227 = vmul.f32 %v5002, %v4436
      %v5228 = vmul.f32 %v5002, %v4437
      %v5229 = vmul.f32 %v5002, %v4438
      %v5230 = vmul.f32 %v5002, %v4439
      %v5231 = vmul.f32 %v5002, %v4440
      %v5232 = vmul.f32 %v5002, %v4441
      %v5233 = vmul.f32 %v5002, %v4442
      %v5234 = vmul.f32 %v5002, %v4443
      %v5235 = vmul.f32 %v5002, %v4444
      %v5236 = vmul.f32 %v5002, %v4445
      %v5237 = vmul.f32 %v5002, %v4446
      %v5238 = vmul.f32 %v5002, %v4447
      %v5239 = vmul.f32 %v5002, %v4448
      %v5240 = vmul.f32 %v5002, %v4449
      %v5241 = vmul.f32 %v5002, %v4450
      %v5242 = vmul.f32 %v5002, %v4451
      %v5243 = vmul.f32 %v5002, %v4452
      %v5244 = vmul.f32 %v5002, %v4453
      %v5245 = vmul.f32 %v5002, %v4454
      %v5246 = vmul.f32 %v5002, %v4455
      %v5247 = vmul.f32 %v5002, %v4456
      %v5248 = vmul.f32 %v5002, %v4457
      %v5249 = vmul.f32 %v5002, %v4458
      %v5250 = vmul.f32 %v5002, %v4459
      %v5251 = vmul.f32 %v5002, %v4460
      %v5252 = vmul.f32 %v5002, %v4461
      %v5253 = vmul.f32 %v5002, %v4462
      %v5254 = vmul.f32 %v5002, %v4463
      %v5255 = vmul.f32 %v5002, %v4464
      %v5256 = vmul.f32 %v5002, %v4465
      %v5257 = vmul.f32 %v5002, %v4466
      %v5258 = vmul.f32 %v5002, %v4467
      %v5259 = vmul.f32 %v5002, %v4468
      %v5260 = vmul.f32 %v5002, %v4469
      %v5261 = vmul.f32 %v5002, %v4470
      %v5262 = vmul.f32 %v5002, %v4471
      %v5263 = vmul.f32 %v5002, %v4472
      %v5264 = vmul.f32 %v5002, %v4473
      %v5265 = vmul.f32 %v5002, %v4474
      %v5266 = vmul.f32 %v5002, %v4475
      %v5267 = vmul.f32 %v5002, %v4476
      %v5268 = vmul.f32 %v5002, %v4477
      %v5269 = vmul.f32 %v5002, %v4478
      %v5270 = vmul.f32 %v5002, %v4479
      %v5271 = vmul.f32 %v5002, %v4480
      %v5272 = vmul.f32 %v5002, %v4481
      %v5273 = vmul.f32 %v5002, %v4482
      %v5274 = vmul.f32 %v5002, %v4483
      %v5275 = vmul.f32 %v5002, %v4484
      %v5276 = vmul.f32 %v5002, %v4485
      %v5277 = vmul.f32 %v5002, %v4486
      %v5278 = vmul.f32 %v5002, %v4487
      %v5279 = vmul.f32 %v5002, %v4488
      %v5280 = vmul.f32 %v5002, %v4489
      %v5281 = vmul.f32 %v5002, %v4490
      %v5282 = vmul.f32 %v5002, %v4491
      %v5283 = vmul.f32 %v5002, %v4492
      %v5284 = vmul.f32 %v5002, %v4493
      %v5285 = vmul.f32 %v5002, %v4494
      %v5286 = vmul.f32 %v5002, %v4495
      %v5287 = vmul.f32 %v5002, %v4496
      %v5288 = vmul.f32 %v5002, %v4497
      %v5289 = vmul.f32 %v5002, %v4498
      %v5290 = vmul.f32 %v5002, %v4499
      %v5291 = vmul.f32 %v5002, %v4500
      %v5292 = vmul.f32 %v5002, %v4501
      %v5293 = vmul.f32 %v5002, %v4502
      %v5294 = vmul.f32 %v5002, %v4503
      %v5295 = vmul.f32 %v5002, %v4504
      %v5296 = vmul.f32 %v5002, %v4505
      %v5297 = vmul.f32 %v5002, %v4506
      %v5298 = vmul.f32 %v5002, %v4507
      %v5299 = vmul.f32 %v5002, %v4508
      %v5300 = vmul.f32 %v5002, %v4509
      %v5301 = vmul.f32 %v5002, %v4510
      %v5302 = vmul.f32 %v5002, %v4511
      %v5303 = vmul.f32 %v5002, %v4512
      %v5304 = vmul.f32 %v5002, %v4513
      %v5305 = vmul.f32 %v5002, %v4514
      %v5306 = vmul.f32 %v5002, %v4515
      %v5307 = vmul.f32 %v5002, %v4516
      %v5308 = vmul.f32 %v5002, %v4517
      %v5309 = vmul.f32 %v5002, %v4518
      %v5310 = vmul.f32 %v5002, %v4519
      %v5311 = vmul.f32 %v5002, %v4520
      %v5312 = vmul.f32 %v5002, %v4521
      %v5313 = vmul.f32 %v5002, %v4522
      %v5314 = vmul.f32 %v5002, %v4523
      %v5315 = vmul.f32 %v5002, %v4524
      %v5316 = vmul.f32 %v5002, %v4525
      %v5317 = vmul.f32 %v5002, %v4526
      %v5318 = vmul.f32 %v5002, %v4527
      %v5319 = vmul.f32 %v5002, %v4528
      %v5320 = vmul.f32 %v5002, %v4529
      %v5321 = vmul.f32 %v5002, %v4530
      %v5322 = vmul.f32 %v5002, %v4531
      %v5323 = vmul.f32 %v5002, %v4532
      %v5324 = vmul.f32 %v5002, %v4533
      %v5325 = vmul.f32 %v5002, %v4534
      %v5326 = vmul.f32 %v5002, %v4535
      %v5327 = vmul.f32 %v5002, %v4536
      %v5328 = vmul.f32 %v5002, %v4537
      %v5329 = vmul.f32 %v5002, %v4538
      %v5330 = vmul.f32 %v5002, %v4539
      %v5331 = vmul.f32 %v5002, %v4540
      %v5332 = vmul.f32 %v5002, %v4541
      %v5333 = vmul.f32 %v5002, %v4542
      %v5334 = vmul.f32 %v5002, %v4543
      %v5335 = vmul.f32 %v5002, %v4544
      %v5336 = vmul.f32 %v5002, %v4545
      %v5337 = vmul.f32 %v5002, %v4546
      %v5338 = vmul.f32 %v5002, %v4547
      %v5339 = vmul.f32 %v5002, %v4548
      %v5340 = vmul.f32 %v5002, %v4549
      %v5341 = vmul.f32 %v5002, %v4550
      %v5342 = vmul.f32 %v5002, %v4551
      %v5343 = vmul.f32 %v5002, %v4552
      %v5344 = vmul.f32 %v5002, %v4553
      %v5345 = vmul.f32 %v5002, %v4554
      %v5346 = vmul.f32 %v5002, %v4555
      %v5347 = vmul.f32 %v5002, %v4556
      %v5348 = vmul.f32 %v5002, %v4557
      %v5349 = vmul.f32 %v5002, %v4558
      %v5350 = vmul.f32 %v5002, %v4559
      %v5351 = vmul.f32 %v5002, %v4560
      %v5352 = vmul.f32 %v5002, %v4561
      %v5353 = vmul.f32 %v5002, %v4562
      %v5354 = vmul.f32 %v5002, %v4563
      %v5355 = vmul.f32 %v5002, %v4564
      %v5356 = vmul.f32 %v5002, %v4565
      %v5357 = vmul.f32 %v5002, %v4566
      %v5358 = vmul.f32 %v5002, %v4567
      %v5359 = vmul.f32 %v5002, %v4568
      %v5360 = vmul.f32 %v5002, %v4569
      %v5361 = vmul.f32 %v5002, %v4570
      %v5362 = vmul.f32 %v5002, %v4571
      %v5363 = vmul.f32 %v5002, %v4572
      %v5364 = vmul.f32 %v5002, %v4573
      %v5365 = vmul.f32 %v5002, %v4574
      %v5366 = vmul.f32 %v5002, %v4575
      %v5367 = vmul.f32 %v5002, %v4576
      %v5368 = vmul.f32 %v5002, %v4577
      %v5369 = vmul.f32 %v5002, %v4578
      %v5370 = vmul.f32 %v5002, %v4579
      %v5371 = vmul.f32 %v5002, %v4580
      %v5372 = vmul.f32 %v5002, %v4581
      %v5373 = vmul.f32 %v5002, %v4582
      %v5374 = vmul.f32 %v5002, %v4583
      %v5375 = vmul.f32 %v5002, %v4584
      %v5376 = vmul.f32 %v5002, %v4585
      %v5377 = vmul.f32 %v5002, %v4586
      %v5378 = vmul.f32 %v5002, %v4587
      %v5379 = vmul.f32 %v5002, %v4588
      %v5380 = vmul.f32 %v5002, %v4589
      %v5381 = vmul.f32 %v5002, %v4590
      %v5382 = vmul.f32 %v5002, %v4591
      %v5383 = vmul.f32 %v5002, %v4592
      %v5384 = vmul.f32 %v5002, %v4593
      %v5385 = vmul.f32 %v5002, %v4594
      %v5386 = vmul.f32 %v5002, %v4595
      %v5387 = vmul.f32 %v5002, %v4596
      %v5388 = vmul.f32 %v5002, %v4597
      %v5389 = vmul.f32 %v5002, %v4598
      %v5390 = vmul.f32 %v5002, %v4599
      %v5391 = vmul.f32 %v5002, %v4600
      %v5392 = vmul.f32 %v5002, %v4601
      %v5393 = vmul.f32 %v5002, %v4602
      %v5394 = vmul.f32 %v5002, %v4603
      %v5395 = vmul.f32 %v5002, %v4604
      %v5396 = vsel %vm4605, %v4213, %v5004
      %v5397 = vsel %vm4606, %v4214, %v5005
      %v5398 = vsel %vm4607, %v4215, %v5006
      %v5399 = vsel %vm4608, %v4216, %v5007
      %v5400 = vsel %vm4609, %v4217, %v5008
      %v5401 = vsel %vm4610, %v4218, %v5009
      %v5402 = vsel %vm4611, %v4219, %v5010
      %v5403 = vsel %vm4612, %v4220, %v5011
      %v5404 = vsel %vm4613, %v4221, %v5012
      %v5405 = vsel %vm4614, %v4222, %v5013
      %v5406 = vsel %vm4615, %v4223, %v5014
      %v5407 = vsel %vm4616, %v4224, %v5015
      %v5408 = vsel %vm4617, %v4225, %v5016
      %v5409 = vsel %vm4618, %v4226, %v5017
      %v5410 = vsel %vm4619, %v4227, %v5018
      %v5411 = vsel %vm4620, %v4228, %v5019
      %v5412 = vsel %vm4621, %v4229, %v5020
      %v5413 = vsel %vm4622, %v4230, %v5021
      %v5414 = vsel %vm4623, %v4231, %v5022
      %v5415 = vsel %vm4624, %v4232, %v5023
      %v5416 = vsel %vm4625, %v4233, %v5024
      %v5417 = vsel %vm4626, %v4234, %v5025
      %v5418 = vsel %vm4627, %v4235, %v5026
      %v5419 = vsel %vm4628, %v4236, %v5027
      %v5420 = vsel %vm4629, %v4237, %v5028
      %v5421 = vsel %vm4630, %v4238, %v5029
      %v5422 = vsel %vm4631, %v4239, %v5030
      %v5423 = vsel %vm4632, %v4240, %v5031
      %v5424 = vsel %vm4633, %v4241, %v5032
      %v5425 = vsel %vm4634, %v4242, %v5033
      %v5426 = vsel %vm4635, %v4243, %v5034
      %v5427 = vsel %vm4636, %v4244, %v5035
      %v5428 = vsel %vm4637, %v4245, %v5036
      %v5429 = vsel %vm4638, %v4246, %v5037
      %v5430 = vsel %vm4639, %v4247, %v5038
      %v5431 = vsel %vm4640, %v4248, %v5039
      %v5432 = vsel %vm4641, %v4249, %v5040
      %v5433 = vsel %vm4642, %v4250, %v5041
      %v5434 = vsel %vm4643, %v4251, %v5042
      %v5435 = vsel %vm4644, %v4252, %v5043
      %v5436 = vsel %vm4645, %v4253, %v5044
      %v5437 = vsel %vm4646, %v4254, %v5045
      %v5438 = vsel %vm4647, %v4255, %v5046
      %v5439 = vsel %vm4648, %v4256, %v5047
      %v5440 = vsel %vm4649, %v4257, %v5048
      %v5441 = vsel %vm4650, %v4258, %v5049
      %v5442 = vsel %vm4651, %v4259, %v5050
      %v5443 = vsel %vm4652, %v4260, %v5051
      %v5444 = vsel %vm4653, %v4261, %v5052
      %v5445 = vsel %vm4654, %v4262, %v5053
      %v5446 = vsel %vm4655, %v4263, %v5054
      %v5447 = vsel %vm4656, %v4264, %v5055
      %v5448 = vsel %vm4657, %v4265, %v5056
      %v5449 = vsel %vm4658, %v4266, %v5057
      %v5450 = vsel %vm4659, %v4267, %v5058
      %v5451 = vsel %vm4660, %v4268, %v5059
      %v5452 = vsel %vm4661, %v4269, %v5060
      %v5453 = vsel %vm4662, %v4270, %v5061
      %v5454 = vsel %vm4663, %v4271, %v5062
      %v5455 = vsel %vm4664, %v4272, %v5063
      %v5456 = vsel %vm4665, %v4273, %v5064
      %v5457 = vsel %vm4666, %v4274, %v5065
      %v5458 = vsel %vm4667, %v4275, %v5066
      %v5459 = vsel %vm4668, %v4276, %v5067
      %v5460 = vsel %vm4669, %v4277, %v5068
      %v5461 = vsel %vm4670, %v4278, %v5069
      %v5462 = vsel %vm4671, %v4279, %v5070
      %v5463 = vsel %vm4672, %v4280, %v5071
      %v5464 = vsel %vm4673, %v4281, %v5072
      %v5465 = vsel %vm4674, %v4282, %v5073
      %v5466 = vsel %vm4675, %v4283, %v5074
      %v5467 = vsel %vm4676, %v4284, %v5075
      %v5468 = vsel %vm4677, %v4285, %v5076
      %v5469 = vsel %vm4678, %v4286, %v5077
      %v5470 = vsel %vm4679, %v4287, %v5078
      %v5471 = vsel %vm4680, %v4288, %v5079
      %v5472 = vsel %vm4681, %v4289, %v5080
      %v5473 = vsel %vm4682, %v4290, %v5081
      %v5474 = vsel %vm4683, %v4291, %v5082
      %v5475 = vsel %vm4684, %v4292, %v5083
      %v5476 = vsel %vm4685, %v4293, %v5084
      %v5477 = vsel %vm4686, %v4294, %v5085
      %v5478 = vsel %vm4687, %v4295, %v5086
      %v5479 = vsel %vm4688, %v4296, %v5087
      %v5480 = vsel %vm4689, %v4297, %v5088
      %v5481 = vsel %vm4690, %v4298, %v5089
      %v5482 = vsel %vm4691, %v4299, %v5090
      %v5483 = vsel %vm4692, %v4300, %v5091
      %v5484 = vsel %vm4693, %v4301, %v5092
      %v5485 = vsel %vm4694, %v4302, %v5093
      %v5486 = vsel %vm4695, %v4303, %v5094
      %v5487 = vsel %vm4696, %v4304, %v5095
      %v5488 = vsel %vm4697, %v4305, %v5096
      %v5489 = vsel %vm4698, %v4306, %v5097
      %v5490 = vsel %vm4699, %v4307, %v5098
      %v5491 = vsel %vm4700, %v4308, %v5099
      %v5492 = vsel %vm4701, %v4309, %v5100
      %v5493 = vsel %vm4702, %v4310, %v5101
      %v5494 = vsel %vm4703, %v4311, %v5102
      %v5495 = vsel %vm4704, %v4312, %v5103
      %v5496 = vsel %vm4705, %v4313, %v5104
      %v5497 = vsel %vm4706, %v4314, %v5105
      %v5498 = vsel %vm4707, %v4315, %v5106
      %v5499 = vsel %vm4708, %v4316, %v5107
      %v5500 = vsel %vm4709, %v4317, %v5108
      %v5501 = vsel %vm4710, %v4318, %v5109
      %v5502 = vsel %vm4711, %v4319, %v5110
      %v5503 = vsel %vm4712, %v4320, %v5111
      %v5504 = vsel %vm4713, %v4321, %v5112
      %v5505 = vsel %vm4714, %v4322, %v5113
      %v5506 = vsel %vm4715, %v4323, %v5114
      %v5507 = vsel %vm4716, %v4324, %v5115
      %v5508 = vsel %vm4717, %v4325, %v5116
      %v5509 = vsel %vm4718, %v4326, %v5117
      %v5510 = vsel %vm4719, %v4327, %v5118
      %v5511 = vsel %vm4720, %v4328, %v5119
      %v5512 = vsel %vm4721, %v4329, %v5120
      %v5513 = vsel %vm4722, %v4330, %v5121
      %v5514 = vsel %vm4723, %v4331, %v5122
      %v5515 = vsel %vm4724, %v4332, %v5123
      %v5516 = vsel %vm4725, %v4333, %v5124
      %v5517 = vsel %vm4726, %v4334, %v5125
      %v5518 = vsel %vm4727, %v4335, %v5126
      %v5519 = vsel %vm4728, %v4336, %v5127
      %v5520 = vsel %vm4729, %v4337, %v5128
      %v5521 = vsel %vm4730, %v4338, %v5129
      %v5522 = vsel %vm4731, %v4339, %v5130
      %v5523 = vsel %vm4732, %v4340, %v5131
      %v5524 = vsel %vm4733, %v4341, %v5132
      %v5525 = vsel %vm4734, %v4342, %v5133
      %v5526 = vsel %vm4735, %v4343, %v5134
      %v5527 = vsel %vm4736, %v4344, %v5135
      %v5528 = vsel %vm4737, %v4345, %v5136
      %v5529 = vsel %vm4738, %v4346, %v5137
      %v5530 = vsel %vm4739, %v4347, %v5138
      %v5531 = vsel %vm4740, %v4348, %v5139
      %v5532 = vsel %vm4741, %v4349, %v5140
      %v5533 = vsel %vm4742, %v4350, %v5141
      %v5534 = vsel %vm4743, %v4351, %v5142
      %v5535 = vsel %vm4744, %v4352, %v5143
      %v5536 = vsel %vm4745, %v4353, %v5144
      %v5537 = vsel %vm4746, %v4354, %v5145
      %v5538 = vsel %vm4747, %v4355, %v5146
      %v5539 = vsel %vm4748, %v4356, %v5147
      %v5540 = vsel %vm4749, %v4357, %v5148
      %v5541 = vsel %vm4750, %v4358, %v5149
      %v5542 = vsel %vm4751, %v4359, %v5150
      %v5543 = vsel %vm4752, %v4360, %v5151
      %v5544 = vsel %vm4753, %v4361, %v5152
      %v5545 = vsel %vm4754, %v4362, %v5153
      %v5546 = vsel %vm4755, %v4363, %v5154
      %v5547 = vsel %vm4756, %v4364, %v5155
      %v5548 = vsel %vm4757, %v4365, %v5156
      %v5549 = vsel %vm4758, %v4366, %v5157
      %v5550 = vsel %vm4759, %v4367, %v5158
      %v5551 = vsel %vm4760, %v4368, %v5159
      %v5552 = vsel %vm4761, %v4369, %v5160
      %v5553 = vsel %vm4762, %v4370, %v5161
      %v5554 = vsel %vm4763, %v4371, %v5162
      %v5555 = vsel %vm4764, %v4372, %v5163
      %v5556 = vsel %vm4765, %v4373, %v5164
      %v5557 = vsel %vm4766, %v4374, %v5165
      %v5558 = vsel %vm4767, %v4375, %v5166
      %v5559 = vsel %vm4768, %v4376, %v5167
      %v5560 = vsel %vm4769, %v4377, %v5168
      %v5561 = vsel %vm4770, %v4378, %v5169
      %v5562 = vsel %vm4771, %v4379, %v5170
      %v5563 = vsel %vm4772, %v4380, %v5171
      %v5564 = vsel %vm4773, %v4381, %v5172
      %v5565 = vsel %vm4774, %v4382, %v5173
      %v5566 = vsel %vm4775, %v4383, %v5174
      %v5567 = vsel %vm4776, %v4384, %v5175
      %v5568 = vsel %vm4777, %v4385, %v5176
      %v5569 = vsel %vm4778, %v4386, %v5177
      %v5570 = vsel %vm4779, %v4387, %v5178
      %v5571 = vsel %vm4780, %v4388, %v5179
      %v5572 = vsel %vm4781, %v4389, %v5180
      %v5573 = vsel %vm4782, %v4390, %v5181
      %v5574 = vsel %vm4783, %v4391, %v5182
      %v5575 = vsel %vm4784, %v4392, %v5183
      %v5576 = vsel %vm4785, %v4393, %v5184
      %v5577 = vsel %vm4786, %v4394, %v5185
      %v5578 = vsel %vm4787, %v4395, %v5186
      %v5579 = vsel %vm4788, %v4396, %v5187
      %v5580 = vsel %vm4789, %v4397, %v5188
      %v5581 = vsel %vm4790, %v4398, %v5189
      %v5582 = vsel %vm4791, %v4399, %v5190
      %v5583 = vsel %vm4792, %v4400, %v5191
      %v5584 = vsel %vm4793, %v4401, %v5192
      %v5585 = vsel %vm4794, %v4402, %v5193
      %v5586 = vsel %vm4795, %v4403, %v5194
      %v5587 = vsel %vm4796, %v4404, %v5195
      %v5588 = vsel %vm4797, %v4405, %v5196
      %v5589 = vsel %vm4798, %v4406, %v5197
      %v5590 = vsel %vm4799, %v4407, %v5198
      %v5591 = vsel %vm4800, %v4408, %v5199
      %v5592 = vsel %vm4801, %v4409, %v5200
      %v5593 = vsel %vm4802, %v4410, %v5201
      %v5594 = vsel %vm4803, %v4411, %v5202
      %v5595 = vsel %vm4804, %v4412, %v5203
      %v5596 = vsel %vm4805, %v4413, %v5204
      %v5597 = vsel %vm4806, %v4414, %v5205
      %v5598 = vsel %vm4807, %v4415, %v5206
      %v5599 = vsel %vm4808, %v4416, %v5207
      %v5600 = vsel %vm4809, %v4417, %v5208
      %v5601 = vsel %vm4810, %v4418, %v5209
      %v5602 = vsel %vm4811, %v4419, %v5210
      %v5603 = vsel %vm4812, %v4420, %v5211
      %v5604 = vsel %vm4813, %v4421, %v5212
      %v5605 = vsel %vm4814, %v4422, %v5213
      %v5606 = vsel %vm4815, %v4423, %v5214
      %v5607 = vsel %vm4816, %v4424, %v5215
      %v5608 = vsel %vm4817, %v4425, %v5216
      %v5609 = vsel %vm4818, %v4426, %v5217
      %v5610 = vsel %vm4819, %v4427, %v5218
      %v5611 = vsel %vm4820, %v4428, %v5219
      %v5612 = vsel %vm4821, %v4429, %v5220
      %v5613 = vsel %vm4822, %v4430, %v5221
      %v5614 = vsel %vm4823, %v4431, %v5222
      %v5615 = vsel %vm4824, %v4432, %v5223
      %v5616 = vsel %vm4825, %v4433, %v5224
      %v5617 = vsel %vm4826, %v4434, %v5225
      %v5618 = vsel %vm4827, %v4435, %v5226
      %v5619 = vsel %vm4828, %v4436, %v5227
      %v5620 = vsel %vm4829, %v4437, %v5228
      %v5621 = vsel %vm4830, %v4438, %v5229
      %v5622 = vsel %vm4831, %v4439, %v5230
      %v5623 = vsel %vm4832, %v4440, %v5231
      %v5624 = vsel %vm4833, %v4441, %v5232
      %v5625 = vsel %vm4834, %v4442, %v5233
      %v5626 = vsel %vm4835, %v4443, %v5234
      %v5627 = vsel %vm4836, %v4444, %v5235
      %v5628 = vsel %vm4837, %v4445, %v5236
      %v5629 = vsel %vm4838, %v4446, %v5237
      %v5630 = vsel %vm4839, %v4447, %v5238
      %v5631 = vsel %vm4840, %v4448, %v5239
      %v5632 = vsel %vm4841, %v4449, %v5240
      %v5633 = vsel %vm4842, %v4450, %v5241
      %v5634 = vsel %vm4843, %v4451, %v5242
      %v5635 = vsel %vm4844, %v4452, %v5243
      %v5636 = vsel %vm4845, %v4453, %v5244
      %v5637 = vsel %vm4846, %v4454, %v5245
      %v5638 = vsel %vm4847, %v4455, %v5246
      %v5639 = vsel %vm4848, %v4456, %v5247
      %v5640 = vsel %vm4849, %v4457, %v5248
      %v5641 = vsel %vm4850, %v4458, %v5249
      %v5642 = vsel %vm4851, %v4459, %v5250
      %v5643 = vsel %vm4852, %v4460, %v5251
      %v5644 = vsel %vm4853, %v4461, %v5252
      %v5645 = vsel %vm4854, %v4462, %v5253
      %v5646 = vsel %vm4855, %v4463, %v5254
      %v5647 = vsel %vm4856, %v4464, %v5255
      %v5648 = vsel %vm4857, %v4465, %v5256
      %v5649 = vsel %vm4858, %v4466, %v5257
      %v5650 = vsel %vm4859, %v4467, %v5258
      %v5651 = vsel %vm4860, %v4468, %v5259
      %v5652 = vsel %vm4861, %v4469, %v5260
      %v5653 = vsel %vm4862, %v4470, %v5261
      %v5654 = vsel %vm4863, %v4471, %v5262
      %v5655 = vsel %vm4864, %v4472, %v5263
      %v5656 = vsel %vm4865, %v4473, %v5264
      %v5657 = vsel %vm4866, %v4474, %v5265
      %v5658 = vsel %vm4867, %v4475, %v5266
      %v5659 = vsel %vm4868, %v4476, %v5267
      %v5660 = vsel %vm4869, %v4477, %v5268
      %v5661 = vsel %vm4870, %v4478, %v5269
      %v5662 = vsel %vm4871, %v4479, %v5270
      %v5663 = vsel %vm4872, %v4480, %v5271
      %v5664 = vsel %vm4873, %v4481, %v5272
      %v5665 = vsel %vm4874, %v4482, %v5273
      %v5666 = vsel %vm4875, %v4483, %v5274
      %v5667 = vsel %vm4876, %v4484, %v5275
      %v5668 = vsel %vm4877, %v4485, %v5276
      %v5669 = vsel %vm4878, %v4486, %v5277
      %v5670 = vsel %vm4879, %v4487, %v5278
      %v5671 = vsel %vm4880, %v4488, %v5279
      %v5672 = vsel %vm4881, %v4489, %v5280
      %v5673 = vsel %vm4882, %v4490, %v5281
      %v5674 = vsel %vm4883, %v4491, %v5282
      %v5675 = vsel %vm4884, %v4492, %v5283
      %v5676 = vsel %vm4885, %v4493, %v5284
      %v5677 = vsel %vm4886, %v4494, %v5285
      %v5678 = vsel %vm4887, %v4495, %v5286
      %v5679 = vsel %vm4888, %v4496, %v5287
      %v5680 = vsel %vm4889, %v4497, %v5288
      %v5681 = vsel %vm4890, %v4498, %v5289
      %v5682 = vsel %vm4891, %v4499, %v5290
      %v5683 = vsel %vm4892, %v4500, %v5291
      %v5684 = vsel %vm4893, %v4501, %v5292
      %v5685 = vsel %vm4894, %v4502, %v5293
      %v5686 = vsel %vm4895, %v4503, %v5294
      %v5687 = vsel %vm4896, %v4504, %v5295
      %v5688 = vsel %vm4897, %v4505, %v5296
      %v5689 = vsel %vm4898, %v4506, %v5297
      %v5690 = vsel %vm4899, %v4507, %v5298
      %v5691 = vsel %vm4900, %v4508, %v5299
      %v5692 = vsel %vm4901, %v4509, %v5300
      %v5693 = vsel %vm4902, %v4510, %v5301
      %v5694 = vsel %vm4903, %v4511, %v5302
      %v5695 = vsel %vm4904, %v4512, %v5303
      %v5696 = vsel %vm4905, %v4513, %v5304
      %v5697 = vsel %vm4906, %v4514, %v5305
      %v5698 = vsel %vm4907, %v4515, %v5306
      %v5699 = vsel %vm4908, %v4516, %v5307
      %v5700 = vsel %vm4909, %v4517, %v5308
      %v5701 = vsel %vm4910, %v4518, %v5309
      %v5702 = vsel %vm4911, %v4519, %v5310
      %v5703 = vsel %vm4912, %v4520, %v5311
      %v5704 = vsel %vm4913, %v4521, %v5312
      %v5705 = vsel %vm4914, %v4522, %v5313
      %v5706 = vsel %vm4915, %v4523, %v5314
      %v5707 = vsel %vm4916, %v4524, %v5315
      %v5708 = vsel %vm4917, %v4525, %v5316
      %v5709 = vsel %vm4918, %v4526, %v5317
      %v5710 = vsel %vm4919, %v4527, %v5318
      %v5711 = vsel %vm4920, %v4528, %v5319
      %v5712 = vsel %vm4921, %v4529, %v5320
      %v5713 = vsel %vm4922, %v4530, %v5321
      %v5714 = vsel %vm4923, %v4531, %v5322
      %v5715 = vsel %vm4924, %v4532, %v5323
      %v5716 = vsel %vm4925, %v4533, %v5324
      %v5717 = vsel %vm4926, %v4534, %v5325
      %v5718 = vsel %vm4927, %v4535, %v5326
      %v5719 = vsel %vm4928, %v4536, %v5327
      %v5720 = vsel %vm4929, %v4537, %v5328
      %v5721 = vsel %vm4930, %v4538, %v5329
      %v5722 = vsel %vm4931, %v4539, %v5330
      %v5723 = vsel %vm4932, %v4540, %v5331
      %v5724 = vsel %vm4933, %v4541, %v5332
      %v5725 = vsel %vm4934, %v4542, %v5333
      %v5726 = vsel %vm4935, %v4543, %v5334
      %v5727 = vsel %vm4936, %v4544, %v5335
      %v5728 = vsel %vm4937, %v4545, %v5336
      %v5729 = vsel %vm4938, %v4546, %v5337
      %v5730 = vsel %vm4939, %v4547, %v5338
      %v5731 = vsel %vm4940, %v4548, %v5339
      %v5732 = vsel %vm4941, %v4549, %v5340
      %v5733 = vsel %vm4942, %v4550, %v5341
      %v5734 = vsel %vm4943, %v4551, %v5342
      %v5735 = vsel %vm4944, %v4552, %v5343
      %v5736 = vsel %vm4945, %v4553, %v5344
      %v5737 = vsel %vm4946, %v4554, %v5345
      %v5738 = vsel %vm4947, %v4555, %v5346
      %v5739 = vsel %vm4948, %v4556, %v5347
      %v5740 = vsel %vm4949, %v4557, %v5348
      %v5741 = vsel %vm4950, %v4558, %v5349
      %v5742 = vsel %vm4951, %v4559, %v5350
      %v5743 = vsel %vm4952, %v4560, %v5351
      %v5744 = vsel %vm4953, %v4561, %v5352
      %v5745 = vsel %vm4954, %v4562, %v5353
      %v5746 = vsel %vm4955, %v4563, %v5354
      %v5747 = vsel %vm4956, %v4564, %v5355
      %v5748 = vsel %vm4957, %v4565, %v5356
      %v5749 = vsel %vm4958, %v4566, %v5357
      %v5750 = vsel %vm4959, %v4567, %v5358
      %v5751 = vsel %vm4960, %v4568, %v5359
      %v5752 = vsel %vm4961, %v4569, %v5360
      %v5753 = vsel %vm4962, %v4570, %v5361
      %v5754 = vsel %vm4963, %v4571, %v5362
      %v5755 = vsel %vm4964, %v4572, %v5363
      %v5756 = vsel %vm4965, %v4573, %v5364
      %v5757 = vsel %vm4966, %v4574, %v5365
      %v5758 = vsel %vm4967, %v4575, %v5366
      %v5759 = vsel %vm4968, %v4576, %v5367
      %v5760 = vsel %vm4969, %v4577, %v5368
      %v5761 = vsel %vm4970, %v4578, %v5369
      %v5762 = vsel %vm4971, %v4579, %v5370
      %v5763 = vsel %vm4972, %v4580, %v5371
      %v5764 = vsel %vm4973, %v4581, %v5372
      %v5765 = vsel %vm4974, %v4582, %v5373
      %v5766 = vsel %vm4975, %v4583, %v5374
      %v5767 = vsel %vm4976, %v4584, %v5375
      %v5768 = vsel %vm4977, %v4585, %v5376
      %v5769 = vsel %vm4978, %v4586, %v5377
      %v5770 = vsel %vm4979, %v4587, %v5378
      %v5771 = vsel %vm4980, %v4588, %v5379
      %v5772 = vsel %vm4981, %v4589, %v5380
      %v5773 = vsel %vm4982, %v4590, %v5381
      %v5774 = vsel %vm4983, %v4591, %v5382
      %v5775 = vsel %vm4984, %v4592, %v5383
      %v5776 = vsel %vm4985, %v4593, %v5384
      %v5777 = vsel %vm4986, %v4594, %v5385
      %v5778 = vsel %vm4987, %v4595, %v5386
      %v5779 = vsel %vm4988, %v4596, %v5387
      %v5780 = vsel %vm4989, %v4597, %v5388
      %v5781 = vsel %vm4990, %v4598, %v5389
      %v5782 = vsel %vm4991, %v4599, %v5390
      %v5783 = vsel %vm4992, %v4600, %v5391
      %v5784 = vsel %vm4993, %v4601, %v5392
      %v5785 = vsel %vm4994, %v4602, %v5393
      %v5786 = vsel %vm4995, %v4603, %v5394
      %v5787 = vsel %vm4996, %v4604, %v5395
      %vm5788 = vcmask 523264
      %5789 = vst.msk [vmem:[%s226] sm:$0xff] %vm5788, %v5396
      %5790 = vst.msk [vmem:[%s226 + $0x8] sm:$0xff] %vm5788, %v5397
      %5791 = vst.msk [vmem:[%s226 + $0x10] sm:$0xff] %vm5788, %v5398
      %5792 = vst.msk [vmem:[%s226 + $0x18] sm:$0xff] %vm5788, %v5399
      %5793 = vst.msk [vmem:[%s226 + $0x20] sm:$0xff] %vm5788, %v5400
      %5794 = vst.msk [vmem:[%s226 + $0x28] sm:$0xff] %vm5788, %v5401
      %5795 = vst.msk [vmem:[%s226 + $0x30] sm:$0xff] %vm5788, %v5402
      %5796 = vst.msk [vmem:[%s226 + $0x38] sm:$0xff] %vm5788, %v5403
      %5797 = vst.msk [vmem:[%s226 + $0x40] sm:$0xff] %vm5788, %v5404
      %5798 = vst.msk [vmem:[%s226 + $0x48] sm:$0xff] %vm5788, %v5405
      %5799 = vst.msk [vmem:[%s226 + $0x50] sm:$0xff] %vm5788, %v5406
      %5800 = vst.msk [vmem:[%s226 + $0x58] sm:$0xff] %vm5788, %v5407
      %5801 = vst.msk [vmem:[%s226 + $0x60] sm:$0xff] %vm5788, %v5408
      %5802 = vst.msk [vmem:[%s226 + $0x68] sm:$0xff] %vm5788, %v5409
      %5803 = vst.msk [vmem:[%s226 + $0x70] sm:$0xff] %vm5788, %v5410
      %5804 = vst.msk [vmem:[%s226 + $0x78] sm:$0xff] %vm5788, %v5411
      %5805 = vst.msk [vmem:[%s226 + $0x80] sm:$0xff] %vm5788, %v5412
      %5806 = vst.msk [vmem:[%s226 + $0x88] sm:$0xff] %vm5788, %v5413
      %5807 = vst.msk [vmem:[%s226 + $0x90] sm:$0xff] %vm5788, %v5414
      %5808 = vst.msk [vmem:[%s226 + $0x98] sm:$0xff] %vm5788, %v5415
      %5809 = vst.msk [vmem:[%s226 + $0xa0] sm:$0xff] %vm5788, %v5416
      %5810 = vst.msk [vmem:[%s226 + $0xa8] sm:$0xff] %vm5788, %v5417
      %5811 = vst.msk [vmem:[%s226 + $0xb0] sm:$0xff] %vm5788, %v5418
      %5812 = vst.msk [vmem:[%s226 + $0xb8] sm:$0xff] %vm5788, %v5419
      %5813 = vst.msk [vmem:[%s226 + $0xc0] sm:$0xff] %vm5788, %v5420
      %5814 = vst.msk [vmem:[%s226 + $0xc8] sm:$0xff] %vm5788, %v5421
      %5815 = vst.msk [vmem:[%s226 + $0xd0] sm:$0xff] %vm5788, %v5422
      %5816 = vst.msk [vmem:[%s226 + $0xd8] sm:$0xff] %vm5788, %v5423
      %5817 = vst.msk [vmem:[%s226 + $0xe0] sm:$0xff] %vm5788, %v5424
      %5818 = vst.msk [vmem:[%s226 + $0xe8] sm:$0xff] %vm5788, %v5425
      %5819 = vst.msk [vmem:[%s226 + $0xf0] sm:$0xff] %vm5788, %v5426
      %5820 = vst.msk [vmem:[%s226 + $0xf8] sm:$0xff] %vm5788, %v5427
      %5821 = vst.msk [vmem:[%s226 + $0x100] sm:$0xff] %vm5788, %v5428
      %5822 = vst.msk [vmem:[%s226 + $0x108] sm:$0xff] %vm5788, %v5429
      %5823 = vst.msk [vmem:[%s226 + $0x110] sm:$0xff] %vm5788, %v5430
      %5824 = vst.msk [vmem:[%s226 + $0x118] sm:$0xff] %vm5788, %v5431
      %5825 = vst.msk [vmem:[%s226 + $0x120] sm:$0xff] %vm5788, %v5432
      %5826 = vst.msk [vmem:[%s226 + $0x128] sm:$0xff] %vm5788, %v5433
      %5827 = vst.msk [vmem:[%s226 + $0x130] sm:$0xff] %vm5788, %v5434
      %5828 = vst.msk [vmem:[%s226 + $0x138] sm:$0xff] %vm5788, %v5435
      %5829 = vst.msk [vmem:[%s226 + $0x140] sm:$0xff] %vm5788, %v5436
      %5830 = vst.msk [vmem:[%s226 + $0x148] sm:$0xff] %vm5788, %v5437
      %5831 = vst.msk [vmem:[%s226 + $0x150] sm:$0xff] %vm5788, %v5438
      %5832 = vst.msk [vmem:[%s226 + $0x158] sm:$0xff] %vm5788, %v5439
      %5833 = vst.msk [vmem:[%s226 + $0x160] sm:$0xff] %vm5788, %v5440
      %5834 = vst.msk [vmem:[%s226 + $0x168] sm:$0xff] %vm5788, %v5441
      %5835 = vst.msk [vmem:[%s226 + $0x170] sm:$0xff] %vm5788, %v5442
      %5836 = vst.msk [vmem:[%s226 + $0x178] sm:$0xff] %vm5788, %v5443
      %5837 = vst.msk [vmem:[%s226 + $0x180] sm:$0xff] %vm5788, %v5444
      %5838 = vst.msk [vmem:[%s226 + $0x188] sm:$0xff] %vm5788, %v5445
      %5839 = vst.msk [vmem:[%s226 + $0x190] sm:$0xff] %vm5788, %v5446
      %5840 = vst.msk [vmem:[%s226 + $0x198] sm:$0xff] %vm5788, %v5447
      %5841 = vst.msk [vmem:[%s226 + $0x1a0] sm:$0xff] %vm5788, %v5448
      %5842 = vst.msk [vmem:[%s226 + $0x1a8] sm:$0xff] %vm5788, %v5449
      %5843 = vst.msk [vmem:[%s226 + $0x1b0] sm:$0xff] %vm5788, %v5450
      %5844 = vst.msk [vmem:[%s226 + $0x1b8] sm:$0xff] %vm5788, %v5451
      %5845 = vst.msk [vmem:[%s226 + $0x1c0] sm:$0xff] %vm5788, %v5452
      %5846 = vst.msk [vmem:[%s226 + $0x1c8] sm:$0xff] %vm5788, %v5453
      %5847 = vst.msk [vmem:[%s226 + $0x1d0] sm:$0xff] %vm5788, %v5454
      %5848 = vst.msk [vmem:[%s226 + $0x1d8] sm:$0xff] %vm5788, %v5455
      %5849 = vst.msk [vmem:[%s226 + $0x1e0] sm:$0xff] %vm5788, %v5456
      %5850 = vst.msk [vmem:[%s226 + $0x1e8] sm:$0xff] %vm5788, %v5457
      %5851 = vst.msk [vmem:[%s226 + $0x1f0] sm:$0xff] %vm5788, %v5458
      %5852 = vst.msk [vmem:[%s226 + $0x1f8] sm:$0xff] %vm5788, %v5459
      %5853 = vst.msk [vmem:[%s226 + $0x200] sm:$0xff] %vm5788, %v5460
      %5854 = vst.msk [vmem:[%s226 + $0x208] sm:$0xff] %vm5788, %v5461
      %5855 = vst.msk [vmem:[%s226 + $0x210] sm:$0xff] %vm5788, %v5462
      %5856 = vst.msk [vmem:[%s226 + $0x218] sm:$0xff] %vm5788, %v5463
      %5857 = vst.msk [vmem:[%s226 + $0x220] sm:$0xff] %vm5788, %v5464
      %5858 = vst.msk [vmem:[%s226 + $0x228] sm:$0xff] %vm5788, %v5465
      %5859 = vst.msk [vmem:[%s226 + $0x230] sm:$0xff] %vm5788, %v5466
      %5860 = vst.msk [vmem:[%s226 + $0x238] sm:$0xff] %vm5788, %v5467
      %5861 = vst.msk [vmem:[%s226 + $0x240] sm:$0xff] %vm5788, %v5468
      %5862 = vst.msk [vmem:[%s226 + $0x248] sm:$0xff] %vm5788, %v5469
      %5863 = vst.msk [vmem:[%s226 + $0x250] sm:$0xff] %vm5788, %v5470
      %5864 = vst.msk [vmem:[%s226 + $0x258] sm:$0xff] %vm5788, %v5471
      %5865 = vst.msk [vmem:[%s226 + $0x260] sm:$0xff] %vm5788, %v5472
      %5866 = vst.msk [vmem:[%s226 + $0x268] sm:$0xff] %vm5788, %v5473
      %5867 = vst.msk [vmem:[%s226 + $0x270] sm:$0xff] %vm5788, %v5474
      %5868 = vst.msk [vmem:[%s226 + $0x278] sm:$0xff] %vm5788, %v5475
      %5869 = vst.msk [vmem:[%s226 + $0x280] sm:$0xff] %vm5788, %v5476
      %5870 = vst.msk [vmem:[%s226 + $0x288] sm:$0xff] %vm5788, %v5477
      %5871 = vst.msk [vmem:[%s226 + $0x290] sm:$0xff] %vm5788, %v5478
      %5872 = vst.msk [vmem:[%s226 + $0x298] sm:$0xff] %vm5788, %v5479
      %5873 = vst.msk [vmem:[%s226 + $0x2a0] sm:$0xff] %vm5788, %v5480
      %5874 = vst.msk [vmem:[%s226 + $0x2a8] sm:$0xff] %vm5788, %v5481
      %5875 = vst.msk [vmem:[%s226 + $0x2b0] sm:$0xff] %vm5788, %v5482
      %5876 = vst.msk [vmem:[%s226 + $0x2b8] sm:$0xff] %vm5788, %v5483
      %5877 = vst.msk [vmem:[%s226 + $0x2c0] sm:$0xff] %vm5788, %v5484
      %5878 = vst.msk [vmem:[%s226 + $0x2c8] sm:$0xff] %vm5788, %v5485
      %5879 = vst.msk [vmem:[%s226 + $0x2d0] sm:$0xff] %vm5788, %v5486
      %5880 = vst.msk [vmem:[%s226 + $0x2d8] sm:$0xff] %vm5788, %v5487
      %5881 = vst.msk [vmem:[%s226 + $0x2e0] sm:$0xff] %vm5788, %v5488
      %5882 = vst.msk [vmem:[%s226 + $0x2e8] sm:$0xff] %vm5788, %v5489
      %5883 = vst.msk [vmem:[%s226 + $0x2f0] sm:$0xff] %vm5788, %v5490
      %5884 = vst.msk [vmem:[%s226 + $0x2f8] sm:$0xff] %vm5788, %v5491
      %5885 = vst.msk [vmem:[%s226 + $0x300] sm:$0xff] %vm5788, %v5492
      %5886 = vst.msk [vmem:[%s226 + $0x308] sm:$0xff] %vm5788, %v5493
      %5887 = vst.msk [vmem:[%s226 + $0x310] sm:$0xff] %vm5788, %v5494
      %5888 = vst.msk [vmem:[%s226 + $0x318] sm:$0xff] %vm5788, %v5495
      %5889 = vst.msk [vmem:[%s226 + $0x320] sm:$0xff] %vm5788, %v5496
      %5890 = vst.msk [vmem:[%s226 + $0x328] sm:$0xff] %vm5788, %v5497
      %5891 = vst.msk [vmem:[%s226 + $0x330] sm:$0xff] %vm5788, %v5498
      %5892 = vst.msk [vmem:[%s226 + $0x338] sm:$0xff] %vm5788, %v5499
      %5893 = vst.msk [vmem:[%s226 + $0x340] sm:$0xff] %vm5788, %v5500
      %5894 = vst.msk [vmem:[%s226 + $0x348] sm:$0xff] %vm5788, %v5501
      %5895 = vst.msk [vmem:[%s226 + $0x350] sm:$0xff] %vm5788, %v5502
      %5896 = vst.msk [vmem:[%s226 + $0x358] sm:$0xff] %vm5788, %v5503
      %5897 = vst.msk [vmem:[%s226 + $0x360] sm:$0xff] %vm5788, %v5504
      %5898 = vst.msk [vmem:[%s226 + $0x368] sm:$0xff] %vm5788, %v5505
      %5899 = vst.msk [vmem:[%s226 + $0x370] sm:$0xff] %vm5788, %v5506
      %5900 = vst.msk [vmem:[%s226 + $0x378] sm:$0xff] %vm5788, %v5507
      %5901 = vst.msk [vmem:[%s226 + $0x380] sm:$0xff] %vm5788, %v5508
      %5902 = vst.msk [vmem:[%s226 + $0x388] sm:$0xff] %vm5788, %v5509
      %5903 = vst.msk [vmem:[%s226 + $0x390] sm:$0xff] %vm5788, %v5510
      %5904 = vst.msk [vmem:[%s226 + $0x398] sm:$0xff] %vm5788, %v5511
      %5905 = vst.msk [vmem:[%s226 + $0x3a0] sm:$0xff] %vm5788, %v5512
      %5906 = vst.msk [vmem:[%s226 + $0x3a8] sm:$0xff] %vm5788, %v5513
      %5907 = vst.msk [vmem:[%s226 + $0x3b0] sm:$0xff] %vm5788, %v5514
      %5908 = vst.msk [vmem:[%s226 + $0x3b8] sm:$0xff] %vm5788, %v5515
      %5909 = vst.msk [vmem:[%s226 + $0x3c0] sm:$0xff] %vm5788, %v5516
      %5910 = vst.msk [vmem:[%s226 + $0x3c8] sm:$0xff] %vm5788, %v5517
      %5911 = vst.msk [vmem:[%s226 + $0x3d0] sm:$0xff] %vm5788, %v5518
      %5912 = vst.msk [vmem:[%s226 + $0x3d8] sm:$0xff] %vm5788, %v5519
      %5913 = vst.msk [vmem:[%s226 + $0x3e0] sm:$0xff] %vm5788, %v5520
      %5914 = vst.msk [vmem:[%s226 + $0x3e8] sm:$0xff] %vm5788, %v5521
      %5915 = vst.msk [vmem:[%s226 + $0x3f0] sm:$0xff] %vm5788, %v5522
      %5916 = vst.msk [vmem:[%s226 + $0x3f8] sm:$0xff] %vm5788, %v5523
      %5917 = vst.msk [vmem:[%s226 + $0x400] sm:$0xff] %vm5788, %v5524
      %5918 = vst.msk [vmem:[%s226 + $0x408] sm:$0xff] %vm5788, %v5525
      %5919 = vst.msk [vmem:[%s226 + $0x410] sm:$0xff] %vm5788, %v5526
      %5920 = vst.msk [vmem:[%s226 + $0x418] sm:$0xff] %vm5788, %v5527
      %5921 = vst.msk [vmem:[%s226 + $0x420] sm:$0xff] %vm5788, %v5528
      %5922 = vst.msk [vmem:[%s226 + $0x428] sm:$0xff] %vm5788, %v5529
      %5923 = vst.msk [vmem:[%s226 + $0x430] sm:$0xff] %vm5788, %v5530
      %5924 = vst.msk [vmem:[%s226 + $0x438] sm:$0xff] %vm5788, %v5531
      %5925 = vst.msk [vmem:[%s226 + $0x440] sm:$0xff] %vm5788, %v5532
      %5926 = vst.msk [vmem:[%s226 + $0x448] sm:$0xff] %vm5788, %v5533
      %5927 = vst.msk [vmem:[%s226 + $0x450] sm:$0xff] %vm5788, %v5534
      %5928 = vst.msk [vmem:[%s226 + $0x458] sm:$0xff] %vm5788, %v5535
      %5929 = vst.msk [vmem:[%s226 + $0x460] sm:$0xff] %vm5788, %v5536
      %5930 = vst.msk [vmem:[%s226 + $0x468] sm:$0xff] %vm5788, %v5537
      %5931 = vst.msk [vmem:[%s226 + $0x470] sm:$0xff] %vm5788, %v5538
      %5932 = vst.msk [vmem:[%s226 + $0x478] sm:$0xff] %vm5788, %v5539
      %5933 = vst.msk [vmem:[%s226 + $0x480] sm:$0xff] %vm5788, %v5540
      %5934 = vst.msk [vmem:[%s226 + $0x488] sm:$0xff] %vm5788, %v5541
      %5935 = vst.msk [vmem:[%s226 + $0x490] sm:$0xff] %vm5788, %v5542
      %5936 = vst.msk [vmem:[%s226 + $0x498] sm:$0xff] %vm5788, %v5543
      %5937 = vst.msk [vmem:[%s226 + $0x4a0] sm:$0xff] %vm5788, %v5544
      %5938 = vst.msk [vmem:[%s226 + $0x4a8] sm:$0xff] %vm5788, %v5545
      %5939 = vst.msk [vmem:[%s226 + $0x4b0] sm:$0xff] %vm5788, %v5546
      %5940 = vst.msk [vmem:[%s226 + $0x4b8] sm:$0xff] %vm5788, %v5547
      %5941 = vst.msk [vmem:[%s226 + $0x4c0] sm:$0xff] %vm5788, %v5548
      %5942 = vst.msk [vmem:[%s226 + $0x4c8] sm:$0xff] %vm5788, %v5549
      %5943 = vst.msk [vmem:[%s226 + $0x4d0] sm:$0xff] %vm5788, %v5550
      %5944 = vst.msk [vmem:[%s226 + $0x4d8] sm:$0xff] %vm5788, %v5551
      %5945 = vst.msk [vmem:[%s226 + $0x4e0] sm:$0xff] %vm5788, %v5552
      %5946 = vst.msk [vmem:[%s226 + $0x4e8] sm:$0xff] %vm5788, %v5553
      %5947 = vst.msk [vmem:[%s226 + $0x4f0] sm:$0xff] %vm5788, %v5554
      %5948 = vst.msk [vmem:[%s226 + $0x4f8] sm:$0xff] %vm5788, %v5555
      %5949 = vst.msk [vmem:[%s226 + $0x500] sm:$0xff] %vm5788, %v5556
      %5950 = vst.msk [vmem:[%s226 + $0x508] sm:$0xff] %vm5788, %v5557
      %5951 = vst.msk [vmem:[%s226 + $0x510] sm:$0xff] %vm5788, %v5558
      %5952 = vst.msk [vmem:[%s226 + $0x518] sm:$0xff] %vm5788, %v5559
      %5953 = vst.msk [vmem:[%s226 + $0x520] sm:$0xff] %vm5788, %v5560
      %5954 = vst.msk [vmem:[%s226 + $0x528] sm:$0xff] %vm5788, %v5561
      %5955 = vst.msk [vmem:[%s226 + $0x530] sm:$0xff] %vm5788, %v5562
      %5956 = vst.msk [vmem:[%s226 + $0x538] sm:$0xff] %vm5788, %v5563
      %5957 = vst.msk [vmem:[%s226 + $0x540] sm:$0xff] %vm5788, %v5564
      %5958 = vst.msk [vmem:[%s226 + $0x548] sm:$0xff] %vm5788, %v5565
      %5959 = vst.msk [vmem:[%s226 + $0x550] sm:$0xff] %vm5788, %v5566
      %5960 = vst.msk [vmem:[%s226 + $0x558] sm:$0xff] %vm5788, %v5567
      %5961 = vst.msk [vmem:[%s226 + $0x560] sm:$0xff] %vm5788, %v5568
      %5962 = vst.msk [vmem:[%s226 + $0x568] sm:$0xff] %vm5788, %v5569
      %5963 = vst.msk [vmem:[%s226 + $0x570] sm:$0xff] %vm5788, %v5570
      %5964 = vst.msk [vmem:[%s226 + $0x578] sm:$0xff] %vm5788, %v5571
      %5965 = vst.msk [vmem:[%s226 + $0x580] sm:$0xff] %vm5788, %v5572
      %5966 = vst.msk [vmem:[%s226 + $0x588] sm:$0xff] %vm5788, %v5573
      %5967 = vst.msk [vmem:[%s226 + $0x590] sm:$0xff] %vm5788, %v5574
      %5968 = vst.msk [vmem:[%s226 + $0x598] sm:$0xff] %vm5788, %v5575
      %5969 = vst.msk [vmem:[%s226 + $0x5a0] sm:$0xff] %vm5788, %v5576
      %5970 = vst.msk [vmem:[%s226 + $0x5a8] sm:$0xff] %vm5788, %v5577
      %5971 = vst.msk [vmem:[%s226 + $0x5b0] sm:$0xff] %vm5788, %v5578
      %5972 = vst.msk [vmem:[%s226 + $0x5b8] sm:$0xff] %vm5788, %v5579
      %5973 = vst.msk [vmem:[%s226 + $0x5c0] sm:$0xff] %vm5788, %v5580
      %5974 = vst.msk [vmem:[%s226 + $0x5c8] sm:$0xff] %vm5788, %v5581
      %5975 = vst.msk [vmem:[%s226 + $0x5d0] sm:$0xff] %vm5788, %v5582
      %5976 = vst.msk [vmem:[%s226 + $0x5d8] sm:$0xff] %vm5788, %v5583
      %5977 = vst.msk [vmem:[%s226 + $0x5e0] sm:$0xff] %vm5788, %v5584
      %5978 = vst.msk [vmem:[%s226 + $0x5e8] sm:$0xff] %vm5788, %v5585
      %5979 = vst.msk [vmem:[%s226 + $0x5f0] sm:$0xff] %vm5788, %v5586
      %5980 = vst.msk [vmem:[%s226 + $0x5f8] sm:$0xff] %vm5788, %v5587
      %5981 = vst.msk [vmem:[%s226 + $0x600] sm:$0xff] %vm5788, %v5588
      %5982 = vst.msk [vmem:[%s226 + $0x608] sm:$0xff] %vm5788, %v5589
      %5983 = vst.msk [vmem:[%s226 + $0x610] sm:$0xff] %vm5788, %v5590
      %5984 = vst.msk [vmem:[%s226 + $0x618] sm:$0xff] %vm5788, %v5591
      %5985 = vst.msk [vmem:[%s226 + $0x620] sm:$0xff] %vm5788, %v5592
      %5986 = vst.msk [vmem:[%s226 + $0x628] sm:$0xff] %vm5788, %v5593
      %5987 = vst.msk [vmem:[%s226 + $0x630] sm:$0xff] %vm5788, %v5594
      %5988 = vst.msk [vmem:[%s226 + $0x638] sm:$0xff] %vm5788, %v5595
      %5989 = vst.msk [vmem:[%s226 + $0x640] sm:$0xff] %vm5788, %v5596
      %5990 = vst.msk [vmem:[%s226 + $0x648] sm:$0xff] %vm5788, %v5597
      %5991 = vst.msk [vmem:[%s226 + $0x650] sm:$0xff] %vm5788, %v5598
      %5992 = vst.msk [vmem:[%s226 + $0x658] sm:$0xff] %vm5788, %v5599
      %5993 = vst.msk [vmem:[%s226 + $0x660] sm:$0xff] %vm5788, %v5600
      %5994 = vst.msk [vmem:[%s226 + $0x668] sm:$0xff] %vm5788, %v5601
      %5995 = vst.msk [vmem:[%s226 + $0x670] sm:$0xff] %vm5788, %v5602
      %5996 = vst.msk [vmem:[%s226 + $0x678] sm:$0xff] %vm5788, %v5603
      %5997 = vst.msk [vmem:[%s226 + $0x680] sm:$0xff] %vm5788, %v5604
      %5998 = vst.msk [vmem:[%s226 + $0x688] sm:$0xff] %vm5788, %v5605
      %5999 = vst.msk [vmem:[%s226 + $0x690] sm:$0xff] %vm5788, %v5606
      %6000 = vst.msk [vmem:[%s226 + $0x698] sm:$0xff] %vm5788, %v5607
      %6001 = vst.msk [vmem:[%s226 + $0x6a0] sm:$0xff] %vm5788, %v5608
      %6002 = vst.msk [vmem:[%s226 + $0x6a8] sm:$0xff] %vm5788, %v5609
      %6003 = vst.msk [vmem:[%s226 + $0x6b0] sm:$0xff] %vm5788, %v5610
      %6004 = vst.msk [vmem:[%s226 + $0x6b8] sm:$0xff] %vm5788, %v5611
      %6005 = vst.msk [vmem:[%s226 + $0x6c0] sm:$0xff] %vm5788, %v5612
      %6006 = vst.msk [vmem:[%s226 + $0x6c8] sm:$0xff] %vm5788, %v5613
      %6007 = vst.msk [vmem:[%s226 + $0x6d0] sm:$0xff] %vm5788, %v5614
      %6008 = vst.msk [vmem:[%s226 + $0x6d8] sm:$0xff] %vm5788, %v5615
      %6009 = vst.msk [vmem:[%s226 + $0x6e0] sm:$0xff] %vm5788, %v5616
      %6010 = vst.msk [vmem:[%s226 + $0x6e8] sm:$0xff] %vm5788, %v5617
      %6011 = vst.msk [vmem:[%s226 + $0x6f0] sm:$0xff] %vm5788, %v5618
      %6012 = vst.msk [vmem:[%s226 + $0x6f8] sm:$0xff] %vm5788, %v5619
      %6013 = vst.msk [vmem:[%s226 + $0x700] sm:$0xff] %vm5788, %v5620
      %6014 = vst.msk [vmem:[%s226 + $0x708] sm:$0xff] %vm5788, %v5621
      %6015 = vst.msk [vmem:[%s226 + $0x710] sm:$0xff] %vm5788, %v5622
      %6016 = vst.msk [vmem:[%s226 + $0x718] sm:$0xff] %vm5788, %v5623
      %6017 = vst.msk [vmem:[%s226 + $0x720] sm:$0xff] %vm5788, %v5624
      %6018 = vst.msk [vmem:[%s226 + $0x728] sm:$0xff] %vm5788, %v5625
      %6019 = vst.msk [vmem:[%s226 + $0x730] sm:$0xff] %vm5788, %v5626
      %6020 = vst.msk [vmem:[%s226 + $0x738] sm:$0xff] %vm5788, %v5627
      %6021 = vst.msk [vmem:[%s226 + $0x740] sm:$0xff] %vm5788, %v5628
      %6022 = vst.msk [vmem:[%s226 + $0x748] sm:$0xff] %vm5788, %v5629
      %6023 = vst.msk [vmem:[%s226 + $0x750] sm:$0xff] %vm5788, %v5630
      %6024 = vst.msk [vmem:[%s226 + $0x758] sm:$0xff] %vm5788, %v5631
      %6025 = vst.msk [vmem:[%s226 + $0x760] sm:$0xff] %vm5788, %v5632
      %6026 = vst.msk [vmem:[%s226 + $0x768] sm:$0xff] %vm5788, %v5633
      %6027 = vst.msk [vmem:[%s226 + $0x770] sm:$0xff] %vm5788, %v5634
      %6028 = vst.msk [vmem:[%s226 + $0x778] sm:$0xff] %vm5788, %v5635
      %6029 = vst.msk [vmem:[%s226 + $0x780] sm:$0xff] %vm5788, %v5636
      %6030 = vst.msk [vmem:[%s226 + $0x788] sm:$0xff] %vm5788, %v5637
      %6031 = vst.msk [vmem:[%s226 + $0x790] sm:$0xff] %vm5788, %v5638
      %6032 = vst.msk [vmem:[%s226 + $0x798] sm:$0xff] %vm5788, %v5639
      %6033 = vst.msk [vmem:[%s226 + $0x7a0] sm:$0xff] %vm5788, %v5640
      %6034 = vst.msk [vmem:[%s226 + $0x7a8] sm:$0xff] %vm5788, %v5641
      %6035 = vst.msk [vmem:[%s226 + $0x7b0] sm:$0xff] %vm5788, %v5642
      %6036 = vst.msk [vmem:[%s226 + $0x7b8] sm:$0xff] %vm5788, %v5643
      %6037 = vst.msk [vmem:[%s226 + $0x7c0] sm:$0xff] %vm5788, %v5644
      %6038 = vst.msk [vmem:[%s226 + $0x7c8] sm:$0xff] %vm5788, %v5645
      %6039 = vst.msk [vmem:[%s226 + $0x7d0] sm:$0xff] %vm5788, %v5646
      %6040 = vst.msk [vmem:[%s226 + $0x7d8] sm:$0xff] %vm5788, %v5647
      %6041 = vst.msk [vmem:[%s226 + $0x7e0] sm:$0xff] %vm5788, %v5648
      %6042 = vst.msk [vmem:[%s226 + $0x7e8] sm:$0xff] %vm5788, %v5649
      %6043 = vst.msk [vmem:[%s226 + $0x7f0] sm:$0xff] %vm5788, %v5650
      %6044 = vst.msk [vmem:[%s226 + $0x7f8] sm:$0xff] %vm5788, %v5651
      %6045 = vst.msk [vmem:[%s226 + $0x800] sm:$0xff] %vm5788, %v5652
      %6046 = vst.msk [vmem:[%s226 + $0x808] sm:$0xff] %vm5788, %v5653
      %6047 = vst.msk [vmem:[%s226 + $0x810] sm:$0xff] %vm5788, %v5654
      %6048 = vst.msk [vmem:[%s226 + $0x818] sm:$0xff] %vm5788, %v5655
      %6049 = vst.msk [vmem:[%s226 + $0x820] sm:$0xff] %vm5788, %v5656
      %6050 = vst.msk [vmem:[%s226 + $0x828] sm:$0xff] %vm5788, %v5657
      %6051 = vst.msk [vmem:[%s226 + $0x830] sm:$0xff] %vm5788, %v5658
      %6052 = vst.msk [vmem:[%s226 + $0x838] sm:$0xff] %vm5788, %v5659
      %6053 = vst.msk [vmem:[%s226 + $0x840] sm:$0xff] %vm5788, %v5660
      %6054 = vst.msk [vmem:[%s226 + $0x848] sm:$0xff] %vm5788, %v5661
      %6055 = vst.msk [vmem:[%s226 + $0x850] sm:$0xff] %vm5788, %v5662
      %6056 = vst.msk [vmem:[%s226 + $0x858] sm:$0xff] %vm5788, %v5663
      %6057 = vst.msk [vmem:[%s226 + $0x860] sm:$0xff] %vm5788, %v5664
      %6058 = vst.msk [vmem:[%s226 + $0x868] sm:$0xff] %vm5788, %v5665
      %6059 = vst.msk [vmem:[%s226 + $0x870] sm:$0xff] %vm5788, %v5666
      %6060 = vst.msk [vmem:[%s226 + $0x878] sm:$0xff] %vm5788, %v5667
      %6061 = vst.msk [vmem:[%s226 + $0x880] sm:$0xff] %vm5788, %v5668
      %6062 = vst.msk [vmem:[%s226 + $0x888] sm:$0xff] %vm5788, %v5669
      %6063 = vst.msk [vmem:[%s226 + $0x890] sm:$0xff] %vm5788, %v5670
      %6064 = vst.msk [vmem:[%s226 + $0x898] sm:$0xff] %vm5788, %v5671
      %6065 = vst.msk [vmem:[%s226 + $0x8a0] sm:$0xff] %vm5788, %v5672
      %6066 = vst.msk [vmem:[%s226 + $0x8a8] sm:$0xff] %vm5788, %v5673
      %6067 = vst.msk [vmem:[%s226 + $0x8b0] sm:$0xff] %vm5788, %v5674
      %6068 = vst.msk [vmem:[%s226 + $0x8b8] sm:$0xff] %vm5788, %v5675
      %6069 = vst.msk [vmem:[%s226 + $0x8c0] sm:$0xff] %vm5788, %v5676
      %6070 = vst.msk [vmem:[%s226 + $0x8c8] sm:$0xff] %vm5788, %v5677
      %6071 = vst.msk [vmem:[%s226 + $0x8d0] sm:$0xff] %vm5788, %v5678
      %6072 = vst.msk [vmem:[%s226 + $0x8d8] sm:$0xff] %vm5788, %v5679
      %6073 = vst.msk [vmem:[%s226 + $0x8e0] sm:$0xff] %vm5788, %v5680
      %6074 = vst.msk [vmem:[%s226 + $0x8e8] sm:$0xff] %vm5788, %v5681
      %6075 = vst.msk [vmem:[%s226 + $0x8f0] sm:$0xff] %vm5788, %v5682
      %6076 = vst.msk [vmem:[%s226 + $0x8f8] sm:$0xff] %vm5788, %v5683
      %6077 = vst.msk [vmem:[%s226 + $0x900] sm:$0xff] %vm5788, %v5684
      %6078 = vst.msk [vmem:[%s226 + $0x908] sm:$0xff] %vm5788, %v5685
      %6079 = vst.msk [vmem:[%s226 + $0x910] sm:$0xff] %vm5788, %v5686
      %6080 = vst.msk [vmem:[%s226 + $0x918] sm:$0xff] %vm5788, %v5687
      %6081 = vst.msk [vmem:[%s226 + $0x920] sm:$0xff] %vm5788, %v5688
      %6082 = vst.msk [vmem:[%s226 + $0x928] sm:$0xff] %vm5788, %v5689
      %6083 = vst.msk [vmem:[%s226 + $0x930] sm:$0xff] %vm5788, %v5690
      %6084 = vst.msk [vmem:[%s226 + $0x938] sm:$0xff] %vm5788, %v5691
      %6085 = vst.msk [vmem:[%s226 + $0x940] sm:$0xff] %vm5788, %v5692
      %6086 = vst.msk [vmem:[%s226 + $0x948] sm:$0xff] %vm5788, %v5693
      %6087 = vst.msk [vmem:[%s226 + $0x950] sm:$0xff] %vm5788, %v5694
      %6088 = vst.msk [vmem:[%s226 + $0x958] sm:$0xff] %vm5788, %v5695
      %6089 = vst.msk [vmem:[%s226 + $0x960] sm:$0xff] %vm5788, %v5696
      %6090 = vst.msk [vmem:[%s226 + $0x968] sm:$0xff] %vm5788, %v5697
      %6091 = vst.msk [vmem:[%s226 + $0x970] sm:$0xff] %vm5788, %v5698
      %6092 = vst.msk [vmem:[%s226 + $0x978] sm:$0xff] %vm5788, %v5699
      %6093 = vst.msk [vmem:[%s226 + $0x980] sm:$0xff] %vm5788, %v5700
      %6094 = vst.msk [vmem:[%s226 + $0x988] sm:$0xff] %vm5788, %v5701
      %6095 = vst.msk [vmem:[%s226 + $0x990] sm:$0xff] %vm5788, %v5702
      %6096 = vst.msk [vmem:[%s226 + $0x998] sm:$0xff] %vm5788, %v5703
      %6097 = vst.msk [vmem:[%s226 + $0x9a0] sm:$0xff] %vm5788, %v5704
      %6098 = vst.msk [vmem:[%s226 + $0x9a8] sm:$0xff] %vm5788, %v5705
      %6099 = vst.msk [vmem:[%s226 + $0x9b0] sm:$0xff] %vm5788, %v5706
      %6100 = vst.msk [vmem:[%s226 + $0x9b8] sm:$0xff] %vm5788, %v5707
      %6101 = vst.msk [vmem:[%s226 + $0x9c0] sm:$0xff] %vm5788, %v5708
      %6102 = vst.msk [vmem:[%s226 + $0x9c8] sm:$0xff] %vm5788, %v5709
      %6103 = vst.msk [vmem:[%s226 + $0x9d0] sm:$0xff] %vm5788, %v5710
      %6104 = vst.msk [vmem:[%s226 + $0x9d8] sm:$0xff] %vm5788, %v5711
      %6105 = vst.msk [vmem:[%s226 + $0x9e0] sm:$0xff] %vm5788, %v5712
      %6106 = vst.msk [vmem:[%s226 + $0x9e8] sm:$0xff] %vm5788, %v5713
      %6107 = vst.msk [vmem:[%s226 + $0x9f0] sm:$0xff] %vm5788, %v5714
      %6108 = vst.msk [vmem:[%s226 + $0x9f8] sm:$0xff] %vm5788, %v5715
      %6109 = vst.msk [vmem:[%s226 + $0xa00] sm:$0xff] %vm5788, %v5716
      %6110 = vst.msk [vmem:[%s226 + $0xa08] sm:$0xff] %vm5788, %v5717
      %6111 = vst.msk [vmem:[%s226 + $0xa10] sm:$0xff] %vm5788, %v5718
      %6112 = vst.msk [vmem:[%s226 + $0xa18] sm:$0xff] %vm5788, %v5719
      %6113 = vst.msk [vmem:[%s226 + $0xa20] sm:$0xff] %vm5788, %v5720
      %6114 = vst.msk [vmem:[%s226 + $0xa28] sm:$0xff] %vm5788, %v5721
      %6115 = vst.msk [vmem:[%s226 + $0xa30] sm:$0xff] %vm5788, %v5722
      %6116 = vst.msk [vmem:[%s226 + $0xa38] sm:$0xff] %vm5788, %v5723
      %6117 = vst.msk [vmem:[%s226 + $0xa40] sm:$0xff] %vm5788, %v5724
      %6118 = vst.msk [vmem:[%s226 + $0xa48] sm:$0xff] %vm5788, %v5725
      %6119 = vst.msk [vmem:[%s226 + $0xa50] sm:$0xff] %vm5788, %v5726
      %6120 = vst.msk [vmem:[%s226 + $0xa58] sm:$0xff] %vm5788, %v5727
      %6121 = vst.msk [vmem:[%s226 + $0xa60] sm:$0xff] %vm5788, %v5728
      %6122 = vst.msk [vmem:[%s226 + $0xa68] sm:$0xff] %vm5788, %v5729
      %6123 = vst.msk [vmem:[%s226 + $0xa70] sm:$0xff] %vm5788, %v5730
      %6124 = vst.msk [vmem:[%s226 + $0xa78] sm:$0xff] %vm5788, %v5731
      %6125 = vst.msk [vmem:[%s226 + $0xa80] sm:$0xff] %vm5788, %v5732
      %6126 = vst.msk [vmem:[%s226 + $0xa88] sm:$0xff] %vm5788, %v5733
      %6127 = vst.msk [vmem:[%s226 + $0xa90] sm:$0xff] %vm5788, %v5734
      %6128 = vst.msk [vmem:[%s226 + $0xa98] sm:$0xff] %vm5788, %v5735
      %6129 = vst.msk [vmem:[%s226 + $0xaa0] sm:$0xff] %vm5788, %v5736
      %6130 = vst.msk [vmem:[%s226 + $0xaa8] sm:$0xff] %vm5788, %v5737
      %6131 = vst.msk [vmem:[%s226 + $0xab0] sm:$0xff] %vm5788, %v5738
      %6132 = vst.msk [vmem:[%s226 + $0xab8] sm:$0xff] %vm5788, %v5739
      %6133 = vst.msk [vmem:[%s226 + $0xac0] sm:$0xff] %vm5788, %v5740
      %6134 = vst.msk [vmem:[%s226 + $0xac8] sm:$0xff] %vm5788, %v5741
      %6135 = vst.msk [vmem:[%s226 + $0xad0] sm:$0xff] %vm5788, %v5742
      %6136 = vst.msk [vmem:[%s226 + $0xad8] sm:$0xff] %vm5788, %v5743
      %6137 = vst.msk [vmem:[%s226 + $0xae0] sm:$0xff] %vm5788, %v5744
      %6138 = vst.msk [vmem:[%s226 + $0xae8] sm:$0xff] %vm5788, %v5745
      %6139 = vst.msk [vmem:[%s226 + $0xaf0] sm:$0xff] %vm5788, %v5746
      %6140 = vst.msk [vmem:[%s226 + $0xaf8] sm:$0xff] %vm5788, %v5747
      %6141 = vst.msk [vmem:[%s226 + $0xb00] sm:$0xff] %vm5788, %v5748
      %6142 = vst.msk [vmem:[%s226 + $0xb08] sm:$0xff] %vm5788, %v5749
      %6143 = vst.msk [vmem:[%s226 + $0xb10] sm:$0xff] %vm5788, %v5750
      %6144 = vst.msk [vmem:[%s226 + $0xb18] sm:$0xff] %vm5788, %v5751
      %6145 = vst.msk [vmem:[%s226 + $0xb20] sm:$0xff] %vm5788, %v5752
      %6146 = vst.msk [vmem:[%s226 + $0xb28] sm:$0xff] %vm5788, %v5753
      %6147 = vst.msk [vmem:[%s226 + $0xb30] sm:$0xff] %vm5788, %v5754
      %6148 = vst.msk [vmem:[%s226 + $0xb38] sm:$0xff] %vm5788, %v5755
      %6149 = vst.msk [vmem:[%s226 + $0xb40] sm:$0xff] %vm5788, %v5756
      %6150 = vst.msk [vmem:[%s226 + $0xb48] sm:$0xff] %vm5788, %v5757
      %6151 = vst.msk [vmem:[%s226 + $0xb50] sm:$0xff] %vm5788, %v5758
      %6152 = vst.msk [vmem:[%s226 + $0xb58] sm:$0xff] %vm5788, %v5759
      %6153 = vst.msk [vmem:[%s226 + $0xb60] sm:$0xff] %vm5788, %v5760
      %6154 = vst.msk [vmem:[%s226 + $0xb68] sm:$0xff] %vm5788, %v5761
      %6155 = vst.msk [vmem:[%s226 + $0xb70] sm:$0xff] %vm5788, %v5762
      %6156 = vst.msk [vmem:[%s226 + $0xb78] sm:$0xff] %vm5788, %v5763
      %6157 = vst.msk [vmem:[%s226 + $0xb80] sm:$0xff] %vm5788, %v5764
      %6158 = vst.msk [vmem:[%s226 + $0xb88] sm:$0xff] %vm5788, %v5765
      %6159 = vst.msk [vmem:[%s226 + $0xb90] sm:$0xff] %vm5788, %v5766
      %6160 = vst.msk [vmem:[%s226 + $0xb98] sm:$0xff] %vm5788, %v5767
      %6161 = vst.msk [vmem:[%s226 + $0xba0] sm:$0xff] %vm5788, %v5768
      %6162 = vst.msk [vmem:[%s226 + $0xba8] sm:$0xff] %vm5788, %v5769
      %6163 = vst.msk [vmem:[%s226 + $0xbb0] sm:$0xff] %vm5788, %v5770
      %6164 = vst.msk [vmem:[%s226 + $0xbb8] sm:$0xff] %vm5788, %v5771
      %6165 = vst.msk [vmem:[%s226 + $0xbc0] sm:$0xff] %vm5788, %v5772
      %6166 = vst.msk [vmem:[%s226 + $0xbc8] sm:$0xff] %vm5788, %v5773
      %6167 = vst.msk [vmem:[%s226 + $0xbd0] sm:$0xff] %vm5788, %v5774
      %6168 = vst.msk [vmem:[%s226 + $0xbd8] sm:$0xff] %vm5788, %v5775
      %6169 = vst.msk [vmem:[%s226 + $0xbe0] sm:$0xff] %vm5788, %v5776
      %6170 = vst.msk [vmem:[%s226 + $0xbe8] sm:$0xff] %vm5788, %v5777
      %6171 = vst.msk [vmem:[%s226 + $0xbf0] sm:$0xff] %vm5788, %v5778
      %6172 = vst.msk [vmem:[%s226 + $0xbf8] sm:$0xff] %vm5788, %v5779
      %6173 = vst.msk [vmem:[%s226 + $0xc00] sm:$0xff] %vm5788, %v5780
      %6174 = vst.msk [vmem:[%s226 + $0xc08] sm:$0xff] %vm5788, %v5781
      %6175 = vst.msk [vmem:[%s226 + $0xc10] sm:$0xff] %vm5788, %v5782
      %6176 = vst.msk [vmem:[%s226 + $0xc18] sm:$0xff] %vm5788, %v5783
      %6177 = vst.msk [vmem:[%s226 + $0xc20] sm:$0xff] %vm5788, %v5784
      %6178 = vst.msk [vmem:[%s226 + $0xc28] sm:$0xff] %vm5788, %v5785
      %6179 = vst.msk [vmem:[%s226 + $0xc30] sm:$0xff] %vm5788, %v5786
      %6180 = vst.msk [vmem:[%s226 + $0xc38] sm:$0xff] %vm5788, %v5787
      %s6181 = smul.u32 392, %s16
      %p6182 = scmp.lt.s32.totalorder %s6181, 3135
      %s6183 = scalar_select %p6182, %s6181, 3135
      %s6184 = smul.addr %s6183, 8
      %s6185 = scalar_lea.vmem %s5, %s6184
      // Predicated region
      $region41: #{tpu_custom_call.1} parent=39 // pred_check
        %p6186 = pneg %p144
      $region42: #{tpu_custom_call.1} parent=39 // pred_check_branch
        %6188 = sbr.rel (%p6186) target = $region44
      $region43: #{tpu_custom_call.1} parent=39 // pred_region
        %s6189 = smul.u32 392, %s16
      $region44: #{tpu_custom_call.1} parent=39 // pred_fallthru
        _
    $region40: #{tpu_custom_call.1} parent=5 // pred_fallthru
      _
    %p6190 = scmp.le.s32.totalorder 2, %s11
    // Predicated region
    $region45: #{tpu_custom_call.1} parent=5 // pred_check
      %p6191 = pneg %p6190
    $region46: #{tpu_custom_call.1} parent=5 // pred_check_branch
      %6193 = sbr.rel (%p6191) target = $region48
    $region47: #{tpu_custom_call.1} parent=5 // pred_region
      %s6194 = ssub.s32 %s11, 2
      // Predicated region
      $region49: #{tpu_custom_call.1} parent=47 // pred_check
        %p6195 = pneg %p150
      $region50: #{tpu_custom_call.1} parent=47 // pred_check_branch
        %6197 = sbr.rel (%p6195) target = $region52
      $region51: #{tpu_custom_call.1} parent=47 // pred_region
        %s6198 = smul.u32 392, %s17
        %p6199 = scmp.lt.s32.totalorder %s6198, 3135
        %s6200 = scalar_select %p6199, %s6198, 3135
        %s6201 = smul.addr %s6200, 8
        %s6202 = scalar_lea.vmem %s5, %s6201
      $region52: #{tpu_custom_call.1} parent=47 // pred_fallthru
        _
    $region48: #{tpu_custom_call.1} parent=5 // pred_fallthru
      _
  $region6: #{tpu_custom_call.1} parent=0 // loop_footer
    %s15 = sadd.s32 1, %s11
  $region7: #{tpu_custom_call.1} parent=0 // loop_footer_branch
    %10 = sbr.rel target = $region3
  $region8: #{tpu_custom_call.1} parent=0 // loop_exit
    _

</llo_original>
